<compile_context>
chip_gen: v5e
topology: v5e:2x2
jax: 0.10.0
libtpu: 0.0.40
codegen_flags: <defaults>
</compile_context>

<pallas_src>
import functools
import math

import jax
import jax.numpy as jnp
from jax.experimental import pallas as pl
from jax.experimental.pallas import tpu as pltpu

EPS = 1e-5


# ---------------------------------------------------------------------------
# kernels (each grid step = one image: channels on sublanes, flattened padded
# spatial grid Hp*Wp on lanes)
# ---------------------------------------------------------------------------

def _conv3x3_taps(w_ref, src_ref, *, Wp, Lout, mm_dtype):
    """3x3 conv as 9 accumulating tap matmuls over contiguous lane slices."""
    cout = w_ref.shape[1]
    acc = jnp.zeros((cout, Lout), jnp.float32)
    # TODO(synk): for 8 <= C < 128, pack 2-4 taps per matmul (K = 2C..4C) to
    # better fill the MXU K dimension (cheap with v7x's accumulating MRB).
    for t in range(9):
        off = (t // 3) * Wp + (t % 3)          # tap (ky, kx) -> lane shift
        rhs = src_ref[:, off:off + Lout].astype(mm_dtype)
        acc = acc + jnp.dot(w_ref[t], rhs, preferred_element_type=jnp.float32)
    return acc


def _conv1_stats_kernel(x_ref, mask_ref, w_ref, b_ref, y_ref, s_ref,
                        *, Wp, Lout, mm_dtype):
    """conv1 + bias; emit the pre-BN activation and per-image BN partials.

    x_ref   : (C, Hp*Wp) zero-padded input image, f32
    mask_ref: (1, Lout)  1.0 at anchors that are real output pixels
    w_ref   : (9, C, C)  tap weights [tap, cout, cin], mm_dtype
    b_ref   : (C, 1)
    y_ref   : (C, Lout)  pre-BN conv1 output (anchor layout)
    s_ref   : (C, 2)     [sum(y*mask), sum(y*y*mask)] -- one-pass BN stats
    """
    y = _conv3x3_taps(w_ref, x_ref, Wp=Wp, Lout=Lout, mm_dtype=mm_dtype) \
        + b_ref[...]
    y_ref[...] = y
    ym = y * mask_ref[...]
    s_ref[:, 0:1] = jnp.sum(ym, axis=1, keepdims=True)
    s_ref[:, 1:2] = jnp.sum(ym * y, axis=1, keepdims=True)


def _bn1_conv2_stats_kernel(y1_ref, mask_ref, sc1_ref, sh1_ref, w_ref, b_ref,
                            y2_ref, s_ref, hpad_ref, *, Wp, Lout, mm_dtype):
    """BN1 (folded affine) + ReLU + conv2 + bias; emit BN2 partials.

    hpad_ref: (C, Hp*Wp) VMEM scratch.  Masked h1 written once at lane offset
    Wp+1 (plus two (Wp+1)-lane zero fills) gives the exact zero-padded conv2
    input, so all 9 taps are contiguous unmasked lane slices.
    """
    C = y1_ref.shape[0]
    m = mask_ref[...]
    h1 = jnp.maximum(y1_ref[...] * sc1_ref[...] + sh1_ref[...], 0.0) * m
    hpad_ref[:, 0:Wp + 1] = jnp.zeros((C, Wp + 1), mm_dtype)
    hpad_ref[:, Wp + 1:Wp + 1 + Lout] = h1.astype(mm_dtype)
    hpad_ref[:, Wp + 1 + Lout:] = jnp.zeros((C, Wp + 1), mm_dtype)

    y2 = _conv3x3_taps(w_ref, hpad_ref, Wp=Wp, Lout=Lout, mm_dtype=mm_dtype) \
        + b_ref[...]
    y2_ref[...] = y2
    ym = y2 * m
    s_ref[:, 0:1] = jnp.sum(ym, axis=1, keepdims=True)
    s_ref[:, 1:2] = jnp.sum(ym * y2, axis=1, keepdims=True)


def _bn2_residual_relu_kernel(y2_ref, x_ref, sc2_ref, sh2_ref, out_ref,
                              *, Wp, Lout):
    """BN2 (folded affine) + residual add + ReLU, written in padded layout."""
    C = y2_ref.shape[0]
    identity = x_ref[:, Wp + 1:Wp + 1 + Lout]          # center tap of input
    res = jnp.maximum(y2_ref[...] * sc2_ref[...] + sh2_ref[...] + identity, 0.0)
    out_ref[:, 0:Wp + 1] = jnp.zeros((C, Wp + 1), jnp.float32)
    out_ref[:, Wp + 1:Wp + 1 + Lout] = res
    out_ref[:, Wp + 1 + Lout:] = jnp.zeros((C, Wp + 1), jnp.float32)


# ---------------------------------------------------------------------------
# wrapper
# ---------------------------------------------------------------------------

def _block_bytes(*specs):
    return sum(math.prod(shape) * jnp.dtype(dtype).itemsize
               for shape, dtype in specs)


def _compiler_params(tile_bytes):
    # Derive the VMEM budget from the per-image tile footprint (double-buffered
    # pipeline + headroom); cap at v7x's 64 MiB physical VMEM.
    limit = int(min(max(2 * tile_bytes + (4 << 20), 16 << 20), 64 << 20))
    return pltpu.CompilerParams(dimension_semantics=("parallel",),
                                vmem_limit_bytes=limit)


@functools.partial(jax.jit, static_argnames=("matmul_dtype",))
def residual_block_pallas(x_nchw, params, matmul_dtype=jnp.float32):
    """x_nchw: (N, C, H, W) f32.  params: dict of conv/BN parameters.

    matmul_dtype=jnp.bfloat16 is the v6e/v7x MXU configuration (all BN/ReLU/
    residual math stays f32); jnp.float32 matches the PyTorch module exactly.
    """
    N, C, H, W = x_nchw.shape
    Hp, Wp = H + 2, W + 2
    HpWp = Hp * Wp
    Lout = HpWp - 2 * Wp - 2
    n_valid = float(N * H * W)

    # NCHW pad + free reshape (no transpose): per-image (C, Hp*Wp) slabs.
    xpad = jnp.pad(x_nchw.astype(jnp.float32),
                   ((0, 0), (0, 0), (1, 1), (1, 1))).reshape(N, C, HpWp)

    # anchor j sits at padded flat position p = j + Wp + 1 within the image
    p = jnp.arange(Lout, dtype=jnp.int32) + Wp + 1
    yp, xp = p // Wp, p % Wp
    mask = ((yp >= 1) & (yp <= H) & (xp >= 1) & (xp <= W)
            ).astype(jnp.float32).reshape(1, Lout)

    def taps(w):   # OIHW -> (9, Cout, Cin), tap index = ky*3 + kx
        return jnp.transpose(w, (2, 3, 0, 1)).reshape(9, C, C).astype(matmul_dtype)

    def col(v):
        return v.reshape(C, 1).astype(jnp.float32)

    def fold_bn(stats, g, be):
        # reduce per-image partials -> per-channel affine (scale, shift)
        tot = jnp.sum(stats, axis=0)                      # (C, 2)
        mean = tot[:, 0] / n_valid
        var = tot[:, 1] / n_valid - mean * mean           # biased, one-pass
        scale = g.astype(jnp.float32) * jax.lax.rsqrt(var + EPS)
        shift = be.astype(jnp.float32) - mean * scale
        return scale.reshape(C, 1), shift.reshape(C, 1)

    img_spec = pl.BlockSpec((None, C, HpWp), lambda i: (i, 0, 0))
    anchor_spec = pl.BlockSpec((None, C, Lout), lambda i: (i, 0, 0))
    stat_spec = pl.BlockSpec((None, C, 2), lambda i: (i, 0, 0))
    mask_spec = pl.BlockSpec((1, Lout), lambda i: (0, 0))
    w_spec = pl.BlockSpec((9, C, C), lambda i: (0, 0, 0))
    vec_spec = pl.BlockSpec((C, 1), lambda i: (0, 0))

    # TODO(synk): for very large H*W, add a second grid axis over row tiles
    # (with a 1-row halo on the conv2 input) and sweep tile width / Buffered(3)
    # on the input spec; per-image tiles are plenty small for typical shapes.

    # ---- pass 1: conv1 + BN1 partial stats ---------------------------------
    tile1 = _block_bytes(((C, HpWp), jnp.float32), ((C, Lout), jnp.float32),
                         ((9, C, C), matmul_dtype))
    y1, s1 = pl.pallas_call(
        functools.partial(_conv1_stats_kernel, Wp=Wp, Lout=Lout,
                          mm_dtype=matmul_dtype),
        out_shape=(jax.ShapeDtypeStruct((N, C, Lout), jnp.float32),
                   jax.ShapeDtypeStruct((N, C, 2), jnp.float32)),
        grid_spec=pltpu.PrefetchScalarGridSpec(
            num_scalar_prefetch=0, grid=(N,),
            in_specs=[img_spec, mask_spec, w_spec, vec_spec],
            out_specs=(anchor_spec, stat_spec)),
        compiler_params=_compiler_params(tile1),
    )(xpad, mask, taps(params["w1"]), col(params["b1"]))
    scale1, shift1 = fold_bn(s1, params["g1"], params["be1"])

    # ---- pass 2: BN1 + ReLU + conv2 + BN2 partial stats --------------------
    tile2 = _block_bytes(((C, Lout), jnp.float32), ((C, Lout), jnp.float32),
                         ((C, HpWp), matmul_dtype), ((9, C, C), matmul_dtype))
    y2, s2 = pl.pallas_call(
        functools.partial(_bn1_conv2_stats_kernel, Wp=Wp, Lout=Lout,
                          mm_dtype=matmul_dtype),
        out_shape=(jax.ShapeDtypeStruct((N, C, Lout), jnp.float32),
                   jax.ShapeDtypeStruct((N, C, 2), jnp.float32)),
        grid_spec=pltpu.PrefetchScalarGridSpec(
            num_scalar_prefetch=0, grid=(N,),
            in_specs=[anchor_spec, mask_spec, vec_spec, vec_spec, w_spec,
                      vec_spec],
            out_specs=(anchor_spec, stat_spec),
            scratch_shapes=[pltpu.VMEM((C, HpWp), matmul_dtype)]),
        compiler_params=_compiler_params(tile2),
    )(y1, mask, scale1, shift1, taps(params["w2"]), col(params["b2"]))
    scale2, shift2 = fold_bn(s2, params["g2"], params["be2"])

    # ---- pass 3: BN2 + residual + ReLU (padded layout) ---------------------
    tile3 = _block_bytes(((C, Lout), jnp.float32), ((C, HpWp), jnp.float32),
                         ((C, HpWp), jnp.float32))
    out_pad = pl.pallas_call(
        functools.partial(_bn2_residual_relu_kernel, Wp=Wp, Lout=Lout),
        out_shape=jax.ShapeDtypeStruct((N, C, HpWp), jnp.float32),
        grid_spec=pltpu.PrefetchScalarGridSpec(
            num_scalar_prefetch=0, grid=(N,),
            in_specs=[anchor_spec, img_spec, vec_spec, vec_spec],
            out_specs=img_spec),
        compiler_params=_compiler_params(tile3),
    )(y2, xpad, scale2, shift2)

    # crop padding rows/cols back to NCHW (single slice, no transpose)
    return out_pad.reshape(N, C, Hp, Wp)[:, :, 1:H + 1, 1:W + 1]


# ---------------------------------------------------------------------------
# reference / params / test
# ---------------------------------------------------------------------------

def residual_block_ref(x, p):
    """Pure-JAX reference (NCHW), mirrors the PyTorch forward (train-mode BN)."""
    def conv(x, w, b):
        y = jax.lax.conv_general_dilated(
            x, w, window_strides=(1, 1), padding=((1, 1), (1, 1)),
            dimension_numbers=("NCHW", "OIHW", "NCHW"))
        return y + b[None, :, None, None]

    def bn(y, g, be):
        mean = y.mean(axis=(0, 2, 3), keepdims=True)
        var = ((y - mean) ** 2).mean(axis=(0, 2, 3), keepdims=True)
        return (y - mean) / jnp.sqrt(var + EPS) * g[None, :, None, None] \
            + be[None, :, None, None]

    h = jax.nn.relu(bn(conv(x, p["w1"], p["b1"]), p["g1"], p["be1"]))
    h = bn(conv(h, p["w2"], p["b2"]), p["g2"], p["be2"])
    return jax.nn.relu(h + x)


def init_params(key, channels):
    """Deterministic init mimicking nn.Conv2d / nn.BatchNorm2d defaults."""
    k1, k2, k3, k4 = jax.random.split(key, 4)
    fan_in = channels * 3 * 3
    bound = 1.0 / jnp.sqrt(fan_in)
    return {
        "w1": jax.random.uniform(k1, (channels, channels, 3, 3),
                                 jnp.float32, -bound, bound),
        "b1": jax.random.uniform(k2, (channels,), jnp.float32, -bound, bound),
        "g1": jnp.ones((channels,), jnp.float32),
        "be1": jnp.zeros((channels,), jnp.float32),
        "w2": jax.random.uniform(k3, (channels, channels, 3, 3),
                                 jnp.float32, -bound, bound),
        "b2": jax.random.uniform(k4, (channels,), jnp.float32, -bound, bound),
        "g2": jnp.ones((channels,), jnp.float32),
        "be2": jnp.zeros((channels,), jnp.float32),
    }


if __name__ == "__main__":
    N, C, H, W = 2, 4, 16, 16
    key = jax.random.PRNGKey(0)
    kx, kp = jax.random.split(key)
    x = jax.random.normal(kx, (N, C, H, W), jnp.float32)
    params = init_params(kp, C)

    ref = jax.block_until_ready(residual_block_ref(x, params))

    # exact f32 path (matches the f32 PyTorch module)
    out = jax.block_until_ready(residual_block_pallas(x, params))
    if not jnp.allclose(out, ref, atol=2e-4, rtol=2e-4):
        raise AssertionError(
            f"f32 Pallas mismatch, max abs err = {jnp.abs(out - ref).max()}")

    # bf16 MXU operands: the v6e/v7x perf configuration (looser numerics)
    out_bf16 = jax.block_until_ready(
        residual_block_pallas(x, params, matmul_dtype=jnp.bfloat16))
    if not jnp.allclose(out_bf16, ref, atol=2.5e-1, rtol=2.5e-1):
        raise AssertionError(
            f"bf16 Pallas mismatch, max abs err = {jnp.abs(out_bf16 - ref).max()}")

    print("KERNEL_OK")
</pallas_src>

<mosaic_0001>
module attributes {stable_mosaic.version = 11 : i64} {
  func.func @_conv1_stats_kernel(%arg0: i32, %arg1: memref<1x4x324xf32, #tpu.memory_space<vmem>>, %arg2: memref<1x286xf32, #tpu.memory_space<vmem>>, %arg3: memref<9x4x4xf32, #tpu.memory_space<vmem>>, %arg4: memref<4x1xf32, #tpu.memory_space<vmem>>, %arg5: memref<1x4x286xf32, #tpu.memory_space<vmem>>, %arg6: memref<1x4x2xf32, #tpu.memory_space<vmem>>) attributes {dimension_semantics = [#tpu.dimension_semantics<parallel>], iteration_bounds = array<i64: 2>, scalar_prefetch = 0 : i64, scratch_operands = 0 : i64, tpu.core_type = #tpu.core_type<tc>, window_params = [{transform_indices = @transform_0, window_bounds = array<i64: 1, 4, 324>}, {pipeline_mode = #tpu.pipeline_mode<synchronous>, transform_indices = @transform_1, window_bounds = array<i64: 1, 286>}, {pipeline_mode = #tpu.pipeline_mode<synchronous>, transform_indices = @transform_2, window_bounds = array<i64: 9, 4, 4>}, {pipeline_mode = #tpu.pipeline_mode<synchronous>, transform_indices = @transform_3, window_bounds = array<i64: 4, 1>}, {transform_indices = @transform_4, window_bounds = array<i64: 1, 4, 286>}, {transform_indices = @transform_5, window_bounds = array<i64: 1, 4, 2>}]} {
    %cst = arith.constant 0.000000e+00 : f32
    %0 = vector.broadcast %cst : f32 to vector<4x286xf32>
    %c0 = arith.constant 0 : index
    %c0_0 = arith.constant 0 : index
    %c0_1 = arith.constant 0 : index
    %1 = vector.load %arg1[%c0, %c0_0, %c0_1] : memref<1x4x324xf32, #tpu.memory_space<vmem>>, vector<1x4x286xf32>
    %2 = vector.shape_cast %1 : vector<1x4x286xf32> to vector<4x286xf32>
    %c0_2 = arith.constant 0 : index
    %c0_3 = arith.constant 0 : index
    %c0_4 = arith.constant 0 : index
    %3 = vector.load %arg3[%c0_2, %c0_3, %c0_4] : memref<9x4x4xf32, #tpu.memory_space<vmem>>, vector<1x4x4xf32>
    %4 = vector.shape_cast %3 : vector<1x4x4xf32> to vector<4x4xf32>
    %cst_5 = arith.constant dense<0.000000e+00> : vector<4x286xf32>
    %5 = tpu.matmul %4, %2, %cst_5 {dimension_numbers = #tpu.dot_dimension_numbers<[1], [0], [0], [1], [0, 0, 1, 1], [], []>} : vector<4x4xf32>, vector<4x286xf32>, vector<4x286xf32> -> vector<4x286xf32>
    %6 = arith.addf %0, %5 : vector<4x286xf32>
    %c0_6 = arith.constant 0 : index
    %c0_7 = arith.constant 0 : index
    %c1 = arith.constant 1 : index
    %7 = vector.load %arg1[%c0_6, %c0_7, %c1] : memref<1x4x324xf32, #tpu.memory_space<vmem>>, vector<1x4x286xf32>
    %8 = vector.shape_cast %7 : vector<1x4x286xf32> to vector<4x286xf32>
    %c1_8 = arith.constant 1 : index
    %c0_9 = arith.constant 0 : index
    %c0_10 = arith.constant 0 : index
    %9 = vector.load %arg3[%c1_8, %c0_9, %c0_10] : memref<9x4x4xf32, #tpu.memory_space<vmem>>, vector<1x4x4xf32>
    %10 = vector.shape_cast %9 : vector<1x4x4xf32> to vector<4x4xf32>
    %cst_11 = arith.constant dense<0.000000e+00> : vector<4x286xf32>
    %11 = tpu.matmul %10, %8, %cst_11 {dimension_numbers = #tpu.dot_dimension_numbers<[1], [0], [0], [1], [0, 0, 1, 1], [], []>} : vector<4x4xf32>, vector<4x286xf32>, vector<4x286xf32> -> vector<4x286xf32>
    %12 = arith.addf %6, %11 : vector<4x286xf32>
    %c0_12 = arith.constant 0 : index
    %c0_13 = arith.constant 0 : index
    %c2 = arith.constant 2 : index
    %13 = vector.load %arg1[%c0_12, %c0_13, %c2] : memref<1x4x324xf32, #tpu.memory_space<vmem>>, vector<1x4x286xf32>
    %14 = vector.shape_cast %13 : vector<1x4x286xf32> to vector<4x286xf32>
    %c2_14 = arith.constant 2 : index
    %c0_15 = arith.constant 0 : index
    %c0_16 = arith.constant 0 : index
    %15 = vector.load %arg3[%c2_14, %c0_15, %c0_16] : memref<9x4x4xf32, #tpu.memory_space<vmem>>, vector<1x4x4xf32>
    %16 = vector.shape_cast %15 : vector<1x4x4xf32> to vector<4x4xf32>
    %cst_17 = arith.constant dense<0.000000e+00> : vector<4x286xf32>
    %17 = tpu.matmul %16, %14, %cst_17 {dimension_numbers = #tpu.dot_dimension_numbers<[1], [0], [0], [1], [0, 0, 1, 1], [], []>} : vector<4x4xf32>, vector<4x286xf32>, vector<4x286xf32> -> vector<4x286xf32>
    %18 = arith.addf %12, %17 : vector<4x286xf32>
    %c0_18 = arith.constant 0 : index
    %c0_19 = arith.constant 0 : index
    %c18 = arith.constant 18 : index
    %19 = vector.load %arg1[%c0_18, %c0_19, %c18] : memref<1x4x324xf32, #tpu.memory_space<vmem>>, vector<1x4x286xf32>
    %20 = vector.shape_cast %19 : vector<1x4x286xf32> to vector<4x286xf32>
    %c3 = arith.constant 3 : index
    %c0_20 = arith.constant 0 : index
    %c0_21 = arith.constant 0 : index
    %21 = vector.load %arg3[%c3, %c0_20, %c0_21] : memref<9x4x4xf32, #tpu.memory_space<vmem>>, vector<1x4x4xf32>
    %22 = vector.shape_cast %21 : vector<1x4x4xf32> to vector<4x4xf32>
    %cst_22 = arith.constant dense<0.000000e+00> : vector<4x286xf32>
    %23 = tpu.matmul %22, %20, %cst_22 {dimension_numbers = #tpu.dot_dimension_numbers<[1], [0], [0], [1], [0, 0, 1, 1], [], []>} : vector<4x4xf32>, vector<4x286xf32>, vector<4x286xf32> -> vector<4x286xf32>
    %24 = arith.addf %18, %23 : vector<4x286xf32>
    %c0_23 = arith.constant 0 : index
    %c0_24 = arith.constant 0 : index
    %c19 = arith.constant 19 : index
    %25 = vector.load %arg1[%c0_23, %c0_24, %c19] : memref<1x4x324xf32, #tpu.memory_space<vmem>>, vector<1x4x286xf32>
    %26 = vector.shape_cast %25 : vector<1x4x286xf32> to vector<4x286xf32>
    %c4 = arith.constant 4 : index
    %c0_25 = arith.constant 0 : index
    %c0_26 = arith.constant 0 : index
    %27 = vector.load %arg3[%c4, %c0_25, %c0_26] : memref<9x4x4xf32, #tpu.memory_space<vmem>>, vector<1x4x4xf32>
    %28 = vector.shape_cast %27 : vector<1x4x4xf32> to vector<4x4xf32>
    %cst_27 = arith.constant dense<0.000000e+00> : vector<4x286xf32>
    %29 = tpu.matmul %28, %26, %cst_27 {dimension_numbers = #tpu.dot_dimension_numbers<[1], [0], [0], [1], [0, 0, 1, 1], [], []>} : vector<4x4xf32>, vector<4x286xf32>, vector<4x286xf32> -> vector<4x286xf32>
    %30 = arith.addf %24, %29 : vector<4x286xf32>
    %c0_28 = arith.constant 0 : index
    %c0_29 = arith.constant 0 : index
    %c20 = arith.constant 20 : index
    %31 = vector.load %arg1[%c0_28, %c0_29, %c20] : memref<1x4x324xf32, #tpu.memory_space<vmem>>, vector<1x4x286xf32>
    %32 = vector.shape_cast %31 : vector<1x4x286xf32> to vector<4x286xf32>
    %c5 = arith.constant 5 : index
    %c0_30 = arith.constant 0 : index
    %c0_31 = arith.constant 0 : index
    %33 = vector.load %arg3[%c5, %c0_30, %c0_31] : memref<9x4x4xf32, #tpu.memory_space<vmem>>, vector<1x4x4xf32>
    %34 = vector.shape_cast %33 : vector<1x4x4xf32> to vector<4x4xf32>
    %cst_32 = arith.constant dense<0.000000e+00> : vector<4x286xf32>
    %35 = tpu.matmul %34, %32, %cst_32 {dimension_numbers = #tpu.dot_dimension_numbers<[1], [0], [0], [1], [0, 0, 1, 1], [], []>} : vector<4x4xf32>, vector<4x286xf32>, vector<4x286xf32> -> vector<4x286xf32>
    %36 = arith.addf %30, %35 : vector<4x286xf32>
    %c0_33 = arith.constant 0 : index
    %c0_34 = arith.constant 0 : index
    %c36 = arith.constant 36 : index
    %37 = vector.load %arg1[%c0_33, %c0_34, %c36] : memref<1x4x324xf32, #tpu.memory_space<vmem>>, vector<1x4x286xf32>
    %38 = vector.shape_cast %37 : vector<1x4x286xf32> to vector<4x286xf32>
    %c6 = arith.constant 6 : index
    %c0_35 = arith.constant 0 : index
    %c0_36 = arith.constant 0 : index
    %39 = vector.load %arg3[%c6, %c0_35, %c0_36] : memref<9x4x4xf32, #tpu.memory_space<vmem>>, vector<1x4x4xf32>
    %40 = vector.shape_cast %39 : vector<1x4x4xf32> to vector<4x4xf32>
    %cst_37 = arith.constant dense<0.000000e+00> : vector<4x286xf32>
    %41 = tpu.matmul %40, %38, %cst_37 {dimension_numbers = #tpu.dot_dimension_numbers<[1], [0], [0], [1], [0, 0, 1, 1], [], []>} : vector<4x4xf32>, vector<4x286xf32>, vector<4x286xf32> -> vector<4x286xf32>
    %42 = arith.addf %36, %41 : vector<4x286xf32>
    %c0_38 = arith.constant 0 : index
    %c0_39 = arith.constant 0 : index
    %c37 = arith.constant 37 : index
    %43 = vector.load %arg1[%c0_38, %c0_39, %c37] : memref<1x4x324xf32, #tpu.memory_space<vmem>>, vector<1x4x286xf32>
    %44 = vector.shape_cast %43 : vector<1x4x286xf32> to vector<4x286xf32>
    %c7 = arith.constant 7 : index
    %c0_40 = arith.constant 0 : index
    %c0_41 = arith.constant 0 : index
    %45 = vector.load %arg3[%c7, %c0_40, %c0_41] : memref<9x4x4xf32, #tpu.memory_space<vmem>>, vector<1x4x4xf32>
    %46 = vector.shape_cast %45 : vector<1x4x4xf32> to vector<4x4xf32>
    %cst_42 = arith.constant dense<0.000000e+00> : vector<4x286xf32>
    %47 = tpu.matmul %46, %44, %cst_42 {dimension_numbers = #tpu.dot_dimension_numbers<[1], [0], [0], [1], [0, 0, 1, 1], [], []>} : vector<4x4xf32>, vector<4x286xf32>, vector<4x286xf32> -> vector<4x286xf32>
    %48 = arith.addf %42, %47 : vector<4x286xf32>
    %c0_43 = arith.constant 0 : index
    %c0_44 = arith.constant 0 : index
    %c38 = arith.constant 38 : index
    %49 = vector.load %arg1[%c0_43, %c0_44, %c38] : memref<1x4x324xf32, #tpu.memory_space<vmem>>, vector<1x4x286xf32>
    %50 = vector.shape_cast %49 : vector<1x4x286xf32> to vector<4x286xf32>
    %c8 = arith.constant 8 : index
    %c0_45 = arith.constant 0 : index
    %c0_46 = arith.constant 0 : index
    %51 = vector.load %arg3[%c8, %c0_45, %c0_46] : memref<9x4x4xf32, #tpu.memory_space<vmem>>, vector<1x4x4xf32>
    %52 = vector.shape_cast %51 : vector<1x4x4xf32> to vector<4x4xf32>
    %cst_47 = arith.constant dense<0.000000e+00> : vector<4x286xf32>
    %53 = tpu.matmul %52, %50, %cst_47 {dimension_numbers = #tpu.dot_dimension_numbers<[1], [0], [0], [1], [0, 0, 1, 1], [], []>} : vector<4x4xf32>, vector<4x286xf32>, vector<4x286xf32> -> vector<4x286xf32>
    %54 = arith.addf %48, %53 : vector<4x286xf32>
    %c0_48 = arith.constant 0 : index
    %c0_49 = arith.constant 0 : index
    %55 = vector.load %arg4[%c0_48, %c0_49] : memref<4x1xf32, #tpu.memory_space<vmem>>, vector<4x1xf32>
    %56 = vector.broadcast %55 : vector<4x1xf32> to vector<4x286xf32>
    %57 = arith.addf %54, %56 : vector<4x286xf32>
    %c0_50 = arith.constant 0 : index
    %c0_51 = arith.constant 0 : index
    %c0_52 = arith.constant 0 : index
    %58 = vector.load %arg5[%c0_50, %c0_51, %c0_52] : memref<1x4x286xf32, #tpu.memory_space<vmem>>, vector<1x4x286xf32>
    %59 = vector.shape_cast %58 : vector<1x4x286xf32> to vector<4x286xf32>
    %60 = vector.shape_cast %57 : vector<4x286xf32> to vector<1x4x286xf32>
    tpu.vector_store %arg5[%c0_50, %c0_51, %c0_52], %60 {strides = array<i32>} : memref<1x4x286xf32, #tpu.memory_space<vmem>>, vector<1x4x286xf32>,
    %c0_53 = arith.constant 0 : index
    %c0_54 = arith.constant 0 : index
    %61 = vector.load %arg2[%c0_53, %c0_54] : memref<1x286xf32, #tpu.memory_space<vmem>>, vector<1x286xf32>
    %62 = vector.broadcast %61 : vector<1x286xf32> to vector<4x286xf32>
    %63 = arith.mulf %57, %62 : vector<4x286xf32>
    %cst_55 = arith.constant dense<0.000000e+00> : vector<4xf32>
    %64 = vector.multi_reduction <add>, %63, %cst_55 [1] : vector<4x286xf32> to vector<4xf32>
    %65 = vector.shape_cast %64 : vector<4xf32> to vector<4x1xf32>
    %c0_56 = arith.constant 0 : index
    %c0_57 = arith.constant 0 : index
    %c0_58 = arith.constant 0 : index
    %66 = vector.load %arg6[%c0_56, %c0_57, %c0_58] : memref<1x4x2xf32, #tpu.memory_space<vmem>>, vector<1x4x1xf32>
    %67 = vector.shape_cast %66 : vector<1x4x1xf32> to vector<4x1xf32>
    %68 = vector.shape_cast %65 : vector<4x1xf32> to vector<1x4x1xf32>
    tpu.vector_store %arg6[%c0_56, %c0_57, %c0_58], %68 {strides = array<i32>} : memref<1x4x2xf32, #tpu.memory_space<vmem>>, vector<1x4x1xf32>,
    %69 = arith.mulf %63, %57 : vector<4x286xf32>
    %cst_59 = arith.constant dense<0.000000e+00> : vector<4xf32>
    %70 = vector.multi_reduction <add>, %69, %cst_59 [1] : vector<4x286xf32> to vector<4xf32>
    %71 = vector.shape_cast %70 : vector<4xf32> to vector<4x1xf32>
    %c0_60 = arith.constant 0 : index
    %c0_61 = arith.constant 0 : index
    %c1_62 = arith.constant 1 : index
    %72 = vector.load %arg6[%c0_60, %c0_61, %c1_62] : memref<1x4x2xf32, #tpu.memory_space<vmem>>, vector<1x4x1xf32>
    %73 = vector.shape_cast %72 : vector<1x4x1xf32> to vector<4x1xf32>
    %74 = vector.shape_cast %71 : vector<4x1xf32> to vector<1x4x1xf32>
    tpu.vector_store %arg6[%c0_60, %c0_61, %c1_62], %74 {strides = array<i32>} : memref<1x4x2xf32, #tpu.memory_space<vmem>>, vector<1x4x1xf32>,
    return
  }
  func.func @transform_0(%arg0: i32) -> (i32, i32, i32) {
    %c0_i32 = arith.constant 0 : i32
    %c0_i32_0 = arith.constant 0 : i32
    %c0_i32_1 = arith.constant 0 : i32
    return %arg0, %c0_i32, %c0_i32_0 : i32, i32, i32
  }
  func.func @transform_1(%arg0: i32) -> (i32, i32) {
    %c0_i32 = arith.constant 0 : i32
    %c0_i32_0 = arith.constant 0 : i32
    %c0_i32_1 = arith.constant 0 : i32
    return %c0_i32, %c0_i32_0 : i32, i32
  }
  func.func @transform_2(%arg0: i32) -> (i32, i32, i32) {
    %c0_i32 = arith.constant 0 : i32
    %c0_i32_0 = arith.constant 0 : i32
    %c0_i32_1 = arith.constant 0 : i32
    %c0_i32_2 = arith.constant 0 : i32
    return %c0_i32, %c0_i32_0, %c0_i32_1 : i32, i32, i32
  }
  func.func @transform_3(%arg0: i32) -> (i32, i32) {
    %c0_i32 = arith.constant 0 : i32
    %c0_i32_0 = arith.constant 0 : i32
    %c0_i32_1 = arith.constant 0 : i32
    return %c0_i32, %c0_i32_0 : i32, i32
  }
  func.func @transform_4(%arg0: i32) -> (i32, i32, i32) {
    %c0_i32 = arith.constant 0 : i32
    %c0_i32_0 = arith.constant 0 : i32
    %c0_i32_1 = arith.constant 0 : i32
    return %arg0, %c0_i32, %c0_i32_0 : i32, i32, i32
  }
  func.func @transform_5(%arg0: i32) -> (i32, i32, i32) {
    %c0_i32 = arith.constant 0 : i32
    %c0_i32_0 = arith.constant 0 : i32
    %c0_i32_1 = arith.constant 0 : i32
    return %arg0, %c0_i32, %c0_i32_0 : i32, i32, i32
  }
}

module attributes {stable_mosaic.version = 11 : i64} {
  func.func @_bn2_residual_relu_kernel(%arg0: i32, %arg1: memref<1x4x286xf32, #tpu.memory_space<vmem>>, %arg2: memref<1x4x324xf32, #tpu.memory_space<vmem>>, %arg3: memref<4x1xf32, #tpu.memory_space<vmem>>, %arg4: memref<4x1xf32, #tpu.memory_space<vmem>>, %arg5: memref<1x4x324xf32, #tpu.memory_space<vmem>>) attributes {dimension_semantics = [#tpu.dimension_semantics<parallel>], iteration_bounds = array<i64: 2>, scalar_prefetch = 0 : i64, scratch_operands = 0 : i64, tpu.core_type = #tpu.core_type<tc>, window_params = [{transform_indices = @transform_0, window_bounds = array<i64: 1, 4, 286>}, {transform_indices = @transform_1, window_bounds = array<i64: 1, 4, 324>}, {pipeline_mode = #tpu.pipeline_mode<synchronous>, transform_indices = @transform_2, window_bounds = array<i64: 4, 1>}, {pipeline_mode = #tpu.pipeline_mode<synchronous>, transform_indices = @transform_3, window_bounds = array<i64: 4, 1>}, {transform_indices = @transform_4, window_bounds = array<i64: 1, 4, 324>}]} {
    %c0 = arith.constant 0 : index
    %c0_0 = arith.constant 0 : index
    %c19 = arith.constant 19 : index
    %0 = vector.load %arg2[%c0, %c0_0, %c19] : memref<1x4x324xf32, #tpu.memory_space<vmem>>, vector<1x4x286xf32>
    %1 = vector.shape_cast %0 : vector<1x4x286xf32> to vector<4x286xf32>
    %c0_1 = arith.constant 0 : index
    %c0_2 = arith.constant 0 : index
    %c0_3 = arith.constant 0 : index
    %2 = vector.load %arg1[%c0_1, %c0_2, %c0_3] : memref<1x4x286xf32, #tpu.memory_space<vmem>>, vector<1x4x286xf32>
    %3 = vector.shape_cast %2 : vector<1x4x286xf32> to vector<4x286xf32>
    %c0_4 = arith.constant 0 : index
    %c0_5 = arith.constant 0 : index
    %4 = vector.load %arg3[%c0_4, %c0_5] : memref<4x1xf32, #tpu.memory_space<vmem>>, vector<4x1xf32>
    %5 = vector.broadcast %4 : vector<4x1xf32> to vector<4x286xf32>
    %6 = arith.mulf %3, %5 : vector<4x286xf32>
    %c0_6 = arith.constant 0 : index
    %c0_7 = arith.constant 0 : index
    %7 = vector.load %arg4[%c0_6, %c0_7] : memref<4x1xf32, #tpu.memory_space<vmem>>, vector<4x1xf32>
    %8 = vector.broadcast %7 : vector<4x1xf32> to vector<4x286xf32>
    %9 = arith.addf %6, %8 : vector<4x286xf32>
    %10 = arith.addf %9, %1 : vector<4x286xf32>
    %cst = arith.constant 0.000000e+00 : f32
    %11 = vector.broadcast %cst : f32 to vector<4x286xf32>
    %12 = arith.maximumf %10, %11 : vector<4x286xf32>
    %cst_8 = arith.constant 0.000000e+00 : f32
    %13 = vector.broadcast %cst_8 : f32 to vector<4x19xf32>
    %c0_9 = arith.constant 0 : index
    %c0_10 = arith.constant 0 : index
    %c0_11 = arith.constant 0 : index
    %14 = vector.load %arg5[%c0_9, %c0_10, %c0_11] : memref<1x4x324xf32, #tpu.memory_space<vmem>>, vector<1x4x19xf32>
    %15 = vector.shape_cast %14 : vector<1x4x19xf32> to vector<4x19xf32>
    %16 = vector.shape_cast %13 : vector<4x19xf32> to vector<1x4x19xf32>
    tpu.vector_store %arg5[%c0_9, %c0_10, %c0_11], %16 {strides = array<i32>} : memref<1x4x324xf32, #tpu.memory_space<vmem>>, vector<1x4x19xf32>,
    %c0_12 = arith.constant 0 : index
    %c0_13 = arith.constant 0 : index
    %c19_14 = arith.constant 19 : index
    %17 = vector.load %arg5[%c0_12, %c0_13, %c19_14] : memref<1x4x324xf32, #tpu.memory_space<vmem>>, vector<1x4x286xf32>
    %18 = vector.shape_cast %17 : vector<1x4x286xf32> to vector<4x286xf32>
    %19 = vector.shape_cast %12 : vector<4x286xf32> to vector<1x4x286xf32>
    tpu.vector_store %arg5[%c0_12, %c0_13, %c19_14], %19 {strides = array<i32>} : memref<1x4x324xf32, #tpu.memory_space<vmem>>, vector<1x4x286xf32>,
    %cst_15 = arith.constant 0.000000e+00 : f32
    %20 = vector.broadcast %cst_15 : f32 to vector<4x19xf32>
    %c0_16 = arith.constant 0 : index
    %c0_17 = arith.constant 0 : index
    %c305 = arith.constant 305 : index
    %21 = vector.load %arg5[%c0_16, %c0_17, %c305] : memref<1x4x324xf32, #tpu.memory_space<vmem>>, vector<1x4x19xf32>
    %22 = vector.shape_cast %21 : vector<1x4x19xf32> to vector<4x19xf32>
    %23 = vector.shape_cast %20 : vector<4x19xf32> to vector<1x4x19xf32>
    tpu.vector_store %arg5[%c0_16, %c0_17, %c305], %23 {strides = array<i32>} : memref<1x4x324xf32, #tpu.memory_space<vmem>>, vector<1x4x19xf32>,
    return
  }
  func.func @transform_0(%arg0: i32) -> (i32, i32, i32) {
    %c0_i32 = arith.constant 0 : i32
    %c0_i32_0 = arith.constant 0 : i32
    %c0_i32_1 = arith.constant 0 : i32
    return %arg0, %c0_i32, %c0_i32_0 : i32, i32, i32
  }
  func.func @transform_1(%arg0: i32) -> (i32, i32, i32) {
    %c0_i32 = arith.constant 0 : i32
    %c0_i32_0 = arith.constant 0 : i32
    %c0_i32_1 = arith.constant 0 : i32
    return %arg0, %c0_i32, %c0_i32_0 : i32, i32, i32
  }
  func.func @transform_2(%arg0: i32) -> (i32, i32) {
    %c0_i32 = arith.constant 0 : i32
    %c0_i32_0 = arith.constant 0 : i32
    %c0_i32_1 = arith.constant 0 : i32
    return %c0_i32, %c0_i32_0 : i32, i32
  }
  func.func @transform_3(%arg0: i32) -> (i32, i32) {
    %c0_i32 = arith.constant 0 : i32
    %c0_i32_0 = arith.constant 0 : i32
    %c0_i32_1 = arith.constant 0 : i32
    return %c0_i32, %c0_i32_0 : i32, i32
  }
  func.func @transform_4(%arg0: i32) -> (i32, i32, i32) {
    %c0_i32 = arith.constant 0 : i32
    %c0_i32_0 = arith.constant 0 : i32
    %c0_i32_1 = arith.constant 0 : i32
    return %arg0, %c0_i32, %c0_i32_0 : i32, i32, i32
  }
}

module attributes {stable_mosaic.version = 11 : i64} {
  func.func @_bn1_conv2_stats_kernel(%arg0: i32, %arg1: memref<1x4x286xf32, #tpu.memory_space<vmem>>, %arg2: memref<1x286xf32, #tpu.memory_space<vmem>>, %arg3: memref<4x1xf32, #tpu.memory_space<vmem>>, %arg4: memref<4x1xf32, #tpu.memory_space<vmem>>, %arg5: memref<9x4x4xf32, #tpu.memory_space<vmem>>, %arg6: memref<4x1xf32, #tpu.memory_space<vmem>>, %arg7: memref<1x4x286xf32, #tpu.memory_space<vmem>>, %arg8: memref<1x4x2xf32, #tpu.memory_space<vmem>>, %arg9: memref<4x324xf32, #tpu.memory_space<vmem>>) attributes {dimension_semantics = [#tpu.dimension_semantics<parallel>], iteration_bounds = array<i64: 2>, scalar_prefetch = 0 : i64, scratch_operands = 1 : i64, tpu.core_type = #tpu.core_type<tc>, window_params = [{transform_indices = @transform_0, window_bounds = array<i64: 1, 4, 286>}, {pipeline_mode = #tpu.pipeline_mode<synchronous>, transform_indices = @transform_1, window_bounds = array<i64: 1, 286>}, {pipeline_mode = #tpu.pipeline_mode<synchronous>, transform_indices = @transform_2, window_bounds = array<i64: 4, 1>}, {pipeline_mode = #tpu.pipeline_mode<synchronous>, transform_indices = @transform_3, window_bounds = array<i64: 4, 1>}, {pipeline_mode = #tpu.pipeline_mode<synchronous>, transform_indices = @transform_4, window_bounds = array<i64: 9, 4, 4>}, {pipeline_mode = #tpu.pipeline_mode<synchronous>, transform_indices = @transform_5, window_bounds = array<i64: 4, 1>}, {transform_indices = @transform_6, window_bounds = array<i64: 1, 4, 286>}, {transform_indices = @transform_7, window_bounds = array<i64: 1, 4, 2>}]} {
    %c0 = arith.constant 0 : index
    %c0_0 = arith.constant 0 : index
    %0 = vector.load %arg2[%c0, %c0_0] : memref<1x286xf32, #tpu.memory_space<vmem>>, vector<1x286xf32>
    %c0_1 = arith.constant 0 : index
    %c0_2 = arith.constant 0 : index
    %c0_3 = arith.constant 0 : index
    %1 = vector.load %arg1[%c0_1, %c0_2, %c0_3] : memref<1x4x286xf32, #tpu.memory_space<vmem>>, vector<1x4x286xf32>
    %2 = vector.shape_cast %1 : vector<1x4x286xf32> to vector<4x286xf32>
    %c0_4 = arith.constant 0 : index
    %c0_5 = arith.constant 0 : index
    %3 = vector.load %arg3[%c0_4, %c0_5] : memref<4x1xf32, #tpu.memory_space<vmem>>, vector<4x1xf32>
    %4 = vector.broadcast %3 : vector<4x1xf32> to vector<4x286xf32>
    %5 = arith.mulf %2, %4 : vector<4x286xf32>
    %c0_6 = arith.constant 0 : index
    %c0_7 = arith.constant 0 : index
    %6 = vector.load %arg4[%c0_6, %c0_7] : memref<4x1xf32, #tpu.memory_space<vmem>>, vector<4x1xf32>
    %7 = vector.broadcast %6 : vector<4x1xf32> to vector<4x286xf32>
    %8 = arith.addf %5, %7 : vector<4x286xf32>
    %cst = arith.constant 0.000000e+00 : f32
    %9 = vector.broadcast %cst : f32 to vector<4x286xf32>
    %10 = arith.maximumf %8, %9 : vector<4x286xf32>
    %11 = vector.broadcast %0 : vector<1x286xf32> to vector<4x286xf32>
    %12 = arith.mulf %10, %11 : vector<4x286xf32>
    %cst_8 = arith.constant 0.000000e+00 : f32
    %13 = vector.broadcast %cst_8 : f32 to vector<4x19xf32>
    %c0_9 = arith.constant 0 : index
    %c0_10 = arith.constant 0 : index
    %14 = vector.load %arg9[%c0_9, %c0_10] : memref<4x324xf32, #tpu.memory_space<vmem>>, vector<4x19xf32>
    tpu.vector_store %arg9[%c0_9, %c0_10], %13 {strides = array<i32>} : memref<4x324xf32, #tpu.memory_space<vmem>>, vector<4x19xf32>,
    %c0_11 = arith.constant 0 : index
    %c19 = arith.constant 19 : index
    %15 = vector.load %arg9[%c0_11, %c19] : memref<4x324xf32, #tpu.memory_space<vmem>>, vector<4x286xf32>
    tpu.vector_store %arg9[%c0_11, %c19], %12 {strides = array<i32>} : memref<4x324xf32, #tpu.memory_space<vmem>>, vector<4x286xf32>,
    %cst_12 = arith.constant 0.000000e+00 : f32
    %16 = vector.broadcast %cst_12 : f32 to vector<4x19xf32>
    %c0_13 = arith.constant 0 : index
    %c305 = arith.constant 305 : index
    %17 = vector.load %arg9[%c0_13, %c305] : memref<4x324xf32, #tpu.memory_space<vmem>>, vector<4x19xf32>
    tpu.vector_store %arg9[%c0_13, %c305], %16 {strides = array<i32>} : memref<4x324xf32, #tpu.memory_space<vmem>>, vector<4x19xf32>,
    %cst_14 = arith.constant 0.000000e+00 : f32
    %18 = vector.broadcast %cst_14 : f32 to vector<4x286xf32>
    %c0_15 = arith.constant 0 : index
    %c0_16 = arith.constant 0 : index
    %19 = vector.load %arg9[%c0_15, %c0_16] : memref<4x324xf32, #tpu.memory_space<vmem>>, vector<4x286xf32>
    %c0_17 = arith.constant 0 : index
    %c0_18 = arith.constant 0 : index
    %c0_19 = arith.constant 0 : index
    %20 = vector.load %arg5[%c0_17, %c0_18, %c0_19] : memref<9x4x4xf32, #tpu.memory_space<vmem>>, vector<1x4x4xf32>
    %21 = vector.shape_cast %20 : vector<1x4x4xf32> to vector<4x4xf32>
    %cst_20 = arith.constant dense<0.000000e+00> : vector<4x286xf32>
    %22 = tpu.matmul %21, %19, %cst_20 {dimension_numbers = #tpu.dot_dimension_numbers<[1], [0], [0], [1], [0, 0, 1, 1], [], []>} : vector<4x4xf32>, vector<4x286xf32>, vector<4x286xf32> -> vector<4x286xf32>
    %23 = arith.addf %18, %22 : vector<4x286xf32>
    %c0_21 = arith.constant 0 : index
    %c1 = arith.constant 1 : index
    %24 = vector.load %arg9[%c0_21, %c1] : memref<4x324xf32, #tpu.memory_space<vmem>>, vector<4x286xf32>
    %c1_22 = arith.constant 1 : index
    %c0_23 = arith.constant 0 : index
    %c0_24 = arith.constant 0 : index
    %25 = vector.load %arg5[%c1_22, %c0_23, %c0_24] : memref<9x4x4xf32, #tpu.memory_space<vmem>>, vector<1x4x4xf32>
    %26 = vector.shape_cast %25 : vector<1x4x4xf32> to vector<4x4xf32>
    %cst_25 = arith.constant dense<0.000000e+00> : vector<4x286xf32>
    %27 = tpu.matmul %26, %24, %cst_25 {dimension_numbers = #tpu.dot_dimension_numbers<[1], [0], [0], [1], [0, 0, 1, 1], [], []>} : vector<4x4xf32>, vector<4x286xf32>, vector<4x286xf32> -> vector<4x286xf32>
    %28 = arith.addf %23, %27 : vector<4x286xf32>
    %c0_26 = arith.constant 0 : index
    %c2 = arith.constant 2 : index
    %29 = vector.load %arg9[%c0_26, %c2] : memref<4x324xf32, #tpu.memory_space<vmem>>, vector<4x286xf32>
    %c2_27 = arith.constant 2 : index
    %c0_28 = arith.constant 0 : index
    %c0_29 = arith.constant 0 : index
    %30 = vector.load %arg5[%c2_27, %c0_28, %c0_29] : memref<9x4x4xf32, #tpu.memory_space<vmem>>, vector<1x4x4xf32>
    %31 = vector.shape_cast %30 : vector<1x4x4xf32> to vector<4x4xf32>
    %cst_30 = arith.constant dense<0.000000e+00> : vector<4x286xf32>
    %32 = tpu.matmul %31, %29, %cst_30 {dimension_numbers = #tpu.dot_dimension_numbers<[1], [0], [0], [1], [0, 0, 1, 1], [], []>} : vector<4x4xf32>, vector<4x286xf32>, vector<4x286xf32> -> vector<4x286xf32>
    %33 = arith.addf %28, %32 : vector<4x286xf32>
    %c0_31 = arith.constant 0 : index
    %c18 = arith.constant 18 : index
    %34 = vector.load %arg9[%c0_31, %c18] : memref<4x324xf32, #tpu.memory_space<vmem>>, vector<4x286xf32>
    %c3 = arith.constant 3 : index
    %c0_32 = arith.constant 0 : index
    %c0_33 = arith.constant 0 : index
    %35 = vector.load %arg5[%c3, %c0_32, %c0_33] : memref<9x4x4xf32, #tpu.memory_space<vmem>>, vector<1x4x4xf32>
    %36 = vector.shape_cast %35 : vector<1x4x4xf32> to vector<4x4xf32>
    %cst_34 = arith.constant dense<0.000000e+00> : vector<4x286xf32>
    %37 = tpu.matmul %36, %34, %cst_34 {dimension_numbers = #tpu.dot_dimension_numbers<[1], [0], [0], [1], [0, 0, 1, 1], [], []>} : vector<4x4xf32>, vector<4x286xf32>, vector<4x286xf32> -> vector<4x286xf32>
    %38 = arith.addf %33, %37 : vector<4x286xf32>
    %c0_35 = arith.constant 0 : index
    %c19_36 = arith.constant 19 : index
    %39 = vector.load %arg9[%c0_35, %c19_36] : memref<4x324xf32, #tpu.memory_space<vmem>>, vector<4x286xf32>
    %c4 = arith.constant 4 : index
    %c0_37 = arith.constant 0 : index
    %c0_38 = arith.constant 0 : index
    %40 = vector.load %arg5[%c4, %c0_37, %c0_38] : memref<9x4x4xf32, #tpu.memory_space<vmem>>, vector<1x4x4xf32>
    %41 = vector.shape_cast %40 : vector<1x4x4xf32> to vector<4x4xf32>
    %cst_39 = arith.constant dense<0.000000e+00> : vector<4x286xf32>
    %42 = tpu.matmul %41, %39, %cst_39 {dimension_numbers = #tpu.dot_dimension_numbers<[1], [0], [0], [1], [0, 0, 1, 1], [], []>} : vector<4x4xf32>, vector<4x286xf32>, vector<4x286xf32> -> vector<4x286xf32>
    %43 = arith.addf %38, %42 : vector<4x286xf32>
    %c0_40 = arith.constant 0 : index
    %c20 = arith.constant 20 : index
    %44 = vector.load %arg9[%c0_40, %c20] : memref<4x324xf32, #tpu.memory_space<vmem>>, vector<4x286xf32>
    %c5 = arith.constant 5 : index
    %c0_41 = arith.constant 0 : index
    %c0_42 = arith.constant 0 : index
    %45 = vector.load %arg5[%c5, %c0_41, %c0_42] : memref<9x4x4xf32, #tpu.memory_space<vmem>>, vector<1x4x4xf32>
    %46 = vector.shape_cast %45 : vector<1x4x4xf32> to vector<4x4xf32>
    %cst_43 = arith.constant dense<0.000000e+00> : vector<4x286xf32>
    %47 = tpu.matmul %46, %44, %cst_43 {dimension_numbers = #tpu.dot_dimension_numbers<[1], [0], [0], [1], [0, 0, 1, 1], [], []>} : vector<4x4xf32>, vector<4x286xf32>, vector<4x286xf32> -> vector<4x286xf32>
    %48 = arith.addf %43, %47 : vector<4x286xf32>
    %c0_44 = arith.constant 0 : index
    %c36 = arith.constant 36 : index
    %49 = vector.load %arg9[%c0_44, %c36] : memref<4x324xf32, #tpu.memory_space<vmem>>, vector<4x286xf32>
    %c6 = arith.constant 6 : index
    %c0_45 = arith.constant 0 : index
    %c0_46 = arith.constant 0 : index
    %50 = vector.load %arg5[%c6, %c0_45, %c0_46] : memref<9x4x4xf32, #tpu.memory_space<vmem>>, vector<1x4x4xf32>
    %51 = vector.shape_cast %50 : vector<1x4x4xf32> to vector<4x4xf32>
    %cst_47 = arith.constant dense<0.000000e+00> : vector<4x286xf32>
    %52 = tpu.matmul %51, %49, %cst_47 {dimension_numbers = #tpu.dot_dimension_numbers<[1], [0], [0], [1], [0, 0, 1, 1], [], []>} : vector<4x4xf32>, vector<4x286xf32>, vector<4x286xf32> -> vector<4x286xf32>
    %53 = arith.addf %48, %52 : vector<4x286xf32>
    %c0_48 = arith.constant 0 : index
    %c37 = arith.constant 37 : index
    %54 = vector.load %arg9[%c0_48, %c37] : memref<4x324xf32, #tpu.memory_space<vmem>>, vector<4x286xf32>
    %c7 = arith.constant 7 : index
    %c0_49 = arith.constant 0 : index
    %c0_50 = arith.constant 0 : index
    %55 = vector.load %arg5[%c7, %c0_49, %c0_50] : memref<9x4x4xf32, #tpu.memory_space<vmem>>, vector<1x4x4xf32>
    %56 = vector.shape_cast %55 : vector<1x4x4xf32> to vector<4x4xf32>
    %cst_51 = arith.constant dense<0.000000e+00> : vector<4x286xf32>
    %57 = tpu.matmul %56, %54, %cst_51 {dimension_numbers = #tpu.dot_dimension_numbers<[1], [0], [0], [1], [0, 0, 1, 1], [], []>} : vector<4x4xf32>, vector<4x286xf32>, vector<4x286xf32> -> vector<4x286xf32>
    %58 = arith.addf %53, %57 : vector<4x286xf32>
    %c0_52 = arith.constant 0 : index
    %c38 = arith.constant 38 : index
    %59 = vector.load %arg9[%c0_52, %c38] : memref<4x324xf32, #tpu.memory_space<vmem>>, vector<4x286xf32>
    %c8 = arith.constant 8 : index
    %c0_53 = arith.constant 0 : index
    %c0_54 = arith.constant 0 : index
    %60 = vector.load %arg5[%c8, %c0_53, %c0_54] : memref<9x4x4xf32, #tpu.memory_space<vmem>>, vector<1x4x4xf32>
    %61 = vector.shape_cast %60 : vector<1x4x4xf32> to vector<4x4xf32>
    %cst_55 = arith.constant dense<0.000000e+00> : vector<4x286xf32>
    %62 = tpu.matmul %61, %59, %cst_55 {dimension_numbers = #tpu.dot_dimension_numbers<[1], [0], [0], [1], [0, 0, 1, 1], [], []>} : vector<4x4xf32>, vector<4x286xf32>, vector<4x286xf32> -> vector<4x286xf32>
    %63 = arith.addf %58, %62 : vector<4x286xf32>
    %c0_56 = arith.constant 0 : index
    %c0_57 = arith.constant 0 : index
    %64 = vector.load %arg6[%c0_56, %c0_57] : memref<4x1xf32, #tpu.memory_space<vmem>>, vector<4x1xf32>
    %65 = vector.broadcast %64 : vector<4x1xf32> to vector<4x286xf32>
    %66 = arith.addf %63, %65 : vector<4x286xf32>
    %c0_58 = arith.constant 0 : index
    %c0_59 = arith.constant 0 : index
    %c0_60 = arith.constant 0 : index
    %67 = vector.load %arg7[%c0_58, %c0_59, %c0_60] : memref<1x4x286xf32, #tpu.memory_space<vmem>>, vector<1x4x286xf32>
    %68 = vector.shape_cast %67 : vector<1x4x286xf32> to vector<4x286xf32>
    %69 = vector.shape_cast %66 : vector<4x286xf32> to vector<1x4x286xf32>
    tpu.vector_store %arg7[%c0_58, %c0_59, %c0_60], %69 {strides = array<i32>} : memref<1x4x286xf32, #tpu.memory_space<vmem>>, vector<1x4x286xf32>,
    %70 = vector.broadcast %0 : vector<1x286xf32> to vector<4x286xf32>
    %71 = arith.mulf %66, %70 : vector<4x286xf32>
    %cst_61 = arith.constant dense<0.000000e+00> : vector<4xf32>
    %72 = vector.multi_reduction <add>, %71, %cst_61 [1] : vector<4x286xf32> to vector<4xf32>
    %73 = vector.shape_cast %72 : vector<4xf32> to vector<4x1xf32>
    %c0_62 = arith.constant 0 : index
    %c0_63 = arith.constant 0 : index
    %c0_64 = arith.constant 0 : index
    %74 = vector.load %arg8[%c0_62, %c0_63, %c0_64] : memref<1x4x2xf32, #tpu.memory_space<vmem>>, vector<1x4x1xf32>
    %75 = vector.shape_cast %74 : vector<1x4x1xf32> to vector<4x1xf32>
    %76 = vector.shape_cast %73 : vector<4x1xf32> to vector<1x4x1xf32>
    tpu.vector_store %arg8[%c0_62, %c0_63, %c0_64], %76 {strides = array<i32>} : memref<1x4x2xf32, #tpu.memory_space<vmem>>, vector<1x4x1xf32>,
    %77 = arith.mulf %71, %66 : vector<4x286xf32>
    %cst_65 = arith.constant dense<0.000000e+00> : vector<4xf32>
    %78 = vector.multi_reduction <add>, %77, %cst_65 [1] : vector<4x286xf32> to vector<4xf32>
    %79 = vector.shape_cast %78 : vector<4xf32> to vector<4x1xf32>
    %c0_66 = arith.constant 0 : index
    %c0_67 = arith.constant 0 : index
    %c1_68 = arith.constant 1 : index
    %80 = vector.load %arg8[%c0_66, %c0_67, %c1_68] : memref<1x4x2xf32, #tpu.memory_space<vmem>>, vector<1x4x1xf32>
    %81 = vector.shape_cast %80 : vector<1x4x1xf32> to vector<4x1xf32>
    %82 = vector.shape_cast %79 : vector<4x1xf32> to vector<1x4x1xf32>
    tpu.vector_store %arg8[%c0_66, %c0_67, %c1_68], %82 {strides = array<i32>} : memref<1x4x2xf32, #tpu.memory_space<vmem>>, vector<1x4x1xf32>,
    return
  }
  func.func @transform_0(%arg0: i32) -> (i32, i32, i32) {
    %c0_i32 = arith.constant 0 : i32
    %c0_i32_0 = arith.constant 0 : i32
    %c0_i32_1 = arith.constant 0 : i32
    return %arg0, %c0_i32, %c0_i32_0 : i32, i32, i32
  }
  func.func @transform_1(%arg0: i32) -> (i32, i32) {
    %c0_i32 = arith.constant 0 : i32
    %c0_i32_0 = arith.constant 0 : i32
    %c0_i32_1 = arith.constant 0 : i32
    return %c0_i32, %c0_i32_0 : i32, i32
  }
  func.func @transform_2(%arg0: i32) -> (i32, i32) {
    %c0_i32 = arith.constant 0 : i32
    %c0_i32_0 = arith.constant 0 : i32
    %c0_i32_1 = arith.constant 0 : i32
    return %c0_i32, %c0_i32_0 : i32, i32
  }
  func.func @transform_3(%arg0: i32) -> (i32, i32) {
    %c0_i32 = arith.constant 0 : i32
    %c0_i32_0 = arith.constant 0 : i32
    %c0_i32_1 = arith.constant 0 : i32
    return %c0_i32, %c0_i32_0 : i32, i32
  }
  func.func @transform_4(%arg0: i32) -> (i32, i32, i32) {
    %c0_i32 = arith.constant 0 : i32
    %c0_i32_0 = arith.constant 0 : i32
    %c0_i32_1 = arith.constant 0 : i32
    %c0_i32_2 = arith.constant 0 : i32
    return %c0_i32, %c0_i32_0, %c0_i32_1 : i32, i32, i32
  }
  func.func @transform_5(%arg0: i32) -> (i32, i32) {
    %c0_i32 = arith.constant 0 : i32
    %c0_i32_0 = arith.constant 0 : i32
    %c0_i32_1 = arith.constant 0 : i32
    return %c0_i32, %c0_i32_0 : i32, i32
  }
  func.func @transform_6(%arg0: i32) -> (i32, i32, i32) {
    %c0_i32 = arith.constant 0 : i32
    %c0_i32_0 = arith.constant 0 : i32
    %c0_i32_1 = arith.constant 0 : i32
    return %arg0, %c0_i32, %c0_i32_0 : i32, i32, i32
  }
  func.func @transform_7(%arg0: i32) -> (i32, i32, i32) {
    %c0_i32 = arith.constant 0 : i32
    %c0_i32_0 = arith.constant 0 : i32
    %c0_i32_1 = arith.constant 0 : i32
    return %arg0, %c0_i32, %c0_i32_0 : i32, i32, i32
  }
}

</mosaic_0001>

<llo_original>
// kernel: residual_block_pallas.5
$region0: #{residual_block_pallas.5}
  #allocation0 [shape = 'u32[]', space=smem, size = 0x4, offset = 0x4, fixed_abs, tag = 'smem constant byte address 0x4 - core index']
  #allocation1 [shape = 'u32[72,128]{1,0:T(1,128)}', space=vmem, size = 0x9000, scoped, tag = 'internal scratch']
  %s0 = inlined_call_operand.vmem [shape: f32[2,4,286], index: 0, kind: input, shape index: {}]
  %s1 = inlined_call_operand.vmem [shape: f32[2,4,324], index: 1, kind: input, shape index: {}]
  %s2 = inlined_call_operand.vmem [shape: f32[4,1], index: 2, kind: input, shape index: {}]
  %s3 = inlined_call_operand.vmem [shape: f32[4,1], index: 3, kind: input, shape index: {}]
  %s4 = inlined_call_operand.vmem [shape: f32[2,4,324], index: 4, kind: output, shape index: {}]
  %s5 = sld [smem:[#allocation0]]
  $region49: #{residual_block_pallas.5} parent=0
    _
  %s7 = ssub.s32 1, %s5
  %s8 = scalar_select 0, %s7, %s5
  loop: start=0, step=1, limit=4
  $region2: #{residual_block_pallas.5} parent=0 // loop_pre_header
    _
  $region3: #{residual_block_pallas.5} parent=0 // loop_header
    %s10 = sphi 0, %s14
    %p11 = scmp.ge.s32.totalorder %s10, 4
    %s20 = sphi 0, %s22
    %s23 = sphi 0, %s20
    %s24 = sphi 0, %s23
    %s40 = sphi 0, %s24
    %s46 = sphi 0, %s48
    %s49 = sphi 0, %s46
    %s50 = sphi 0, %s49
    %s66 = sphi 0, %s50
    %s70 = sphi 0, %s70
    %s72 = sphi 0, %s70
    %s73 = sphi 0, %s72
    %s87 = sphi 0, %s73
    %s91 = sphi 0, %s91
    %s93 = sphi 0, %s91
    %s94 = sphi 0, %s93
    %s108 = sphi 0, %s94
    %s114 = sphi 0, %s116
    %s117 = sphi 0, %s114
    %s118 = sphi 0, %s117
    %s134 = sphi 0, %s118
  $region4: #{residual_block_pallas.5} parent=0 // loop_header_branch
    %13 = sbr.rel (%p11) target = $region8
  $region5: #{residual_block_pallas.5} parent=0 // loop_body
    %s15 = ssub.s32 %s10, 1
    %s16 = ssub.s32 %s10, 2
    %s17 = sadd.s32 %s10, 1
    %s18 = ssub.s32 %s10, %s17
    %p19 = scmp.eq.s32.totalorder %s18, 0
    %s21 = sadd.s32 %s20, 1
    %s22 = scalar_select %p19, %s20, %s21
    %p25 = pneg %p19
    %p26 = scmp.eq.s32.totalorder %s10, 1
    %p27 = por %p25, %p26
    %p28 = scmp.ne.s32.totalorder %s20, %s23
    %p29 = scmp.eq.s32.totalorder %s10, 0
    %p30 = por %p28, %p29
    %p31 = scmp.ne.s32.totalorder %s20, %s23
    %p32 = scmp.eq.s32.totalorder %s15, 1
    %p33 = por %p31, %p32
    %p34 = scmp.ne.s32.totalorder %s23, %s24
    %p35 = scmp.eq.s32.totalorder %s15, 0
    %p36 = por %p34, %p35
    %p37 = scmp.ne.s32.totalorder %s23, %s24
    %p38 = scmp.eq.s32.totalorder %s16, 1
    %p39 = por %p37, %p38
    %p41 = scmp.ne.s32.totalorder %s24, %s40
    %p42 = scmp.eq.s32.totalorder %s16, 0
    %p43 = por %p41, %p42
    %s44 = ssub.s32 %s10, %s17
    %p45 = scmp.eq.s32.totalorder %s44, 0
    %s47 = sadd.s32 %s46, 1
    %s48 = scalar_select %p45, %s46, %s47
    %p51 = pneg %p45
    %p52 = scmp.eq.s32.totalorder %s10, 1
    %p53 = por %p51, %p52
    %p54 = scmp.ne.s32.totalorder %s46, %s49
    %p55 = scmp.eq.s32.totalorder %s10, 0
    %p56 = por %p54, %p55
    %p57 = scmp.ne.s32.totalorder %s46, %s49
    %p58 = scmp.eq.s32.totalorder %s15, 1
    %p59 = por %p57, %p58
    %p60 = scmp.ne.s32.totalorder %s49, %s50
    %p61 = scmp.eq.s32.totalorder %s15, 0
    %p62 = por %p60, %p61
    %p63 = scmp.ne.s32.totalorder %s49, %s50
    %p64 = scmp.eq.s32.totalorder %s16, 1
    %p65 = por %p63, %p64
    %p67 = scmp.ne.s32.totalorder %s50, %s66
    %p68 = scmp.eq.s32.totalorder %s16, 0
    %p69 = por %p67, %p68
    %s71 = sadd.s32 %s70, 1
    %p74 = scmp.eq.s32.totalorder %s10, 1
    %p75 = scmp.ne.s32.totalorder %s70, %s72
    %p76 = scmp.eq.s32.totalorder %s10, 0
    %p77 = por %p75, %p76
    %p78 = scmp.ne.s32.totalorder %s70, %s72
    %p79 = scmp.eq.s32.totalorder %s15, 1
    %p80 = por %p78, %p79
    %p81 = scmp.ne.s32.totalorder %s72, %s73
    %p82 = scmp.eq.s32.totalorder %s15, 0
    %p83 = por %p81, %p82
    %p84 = scmp.ne.s32.totalorder %s72, %s73
    %p85 = scmp.eq.s32.totalorder %s16, 1
    %p86 = por %p84, %p85
    %p88 = scmp.ne.s32.totalorder %s73, %s87
    %p89 = scmp.eq.s32.totalorder %s16, 0
    %p90 = por %p88, %p89
    %s92 = sadd.s32 %s91, 1
    %p95 = scmp.eq.s32.totalorder %s10, 1
    %p96 = scmp.ne.s32.totalorder %s91, %s93
    %p97 = scmp.eq.s32.totalorder %s10, 0
    %p98 = por %p96, %p97
    %p99 = scmp.ne.s32.totalorder %s91, %s93
    %p100 = scmp.eq.s32.totalorder %s15, 1
    %p101 = por %p99, %p100
    %p102 = scmp.ne.s32.totalorder %s93, %s94
    %p103 = scmp.eq.s32.totalorder %s15, 0
    %p104 = por %p102, %p103
    %p105 = scmp.ne.s32.totalorder %s93, %s94
    %p106 = scmp.eq.s32.totalorder %s16, 1
    %p107 = por %p105, %p106
    %p109 = scmp.ne.s32.totalorder %s94, %s108
    %p110 = scmp.eq.s32.totalorder %s16, 0
    %p111 = por %p109, %p110
    %s112 = ssub.s32 %s10, %s17
    %p113 = scmp.eq.s32.totalorder %s112, 0
    %s115 = sadd.s32 %s114, 1
    %s116 = scalar_select %p113, %s114, %s115
    %p119 = pneg %p113
    %p120 = scmp.eq.s32.totalorder %s10, 1
    %p121 = por %p119, %p120
    %p122 = scmp.ne.s32.totalorder %s114, %s117
    %p123 = scmp.eq.s32.totalorder %s10, 0
    %p124 = por %p122, %p123
    %p125 = scmp.ne.s32.totalorder %s114, %s117
    %p126 = scmp.eq.s32.totalorder %s15, 1
    %p127 = por %p125, %p126
    %p128 = scmp.ne.s32.totalorder %s117, %s118
    %p129 = scmp.eq.s32.totalorder %s15, 0
    %p130 = por %p128, %p129
    %p131 = scmp.ne.s32.totalorder %s117, %s118
    %p132 = scmp.eq.s32.totalorder %s16, 1
    %p133 = por %p131, %p132
    %p135 = scmp.ne.s32.totalorder %s118, %s134
    %p136 = scmp.eq.s32.totalorder %s16, 0
    %p137 = por %p135, %p136
    %p138 = scmp.le.s32.totalorder 1, %s10
    %p139 = scmp.lt.s32.totalorder %s10, 3
    %p140 = pnand %p138, %p139
    %p141 = pneg %p140
    // Predicated region
    $region9: #{residual_block_pallas.5} parent=5 // pred_check
      _
    $region10: #{residual_block_pallas.5} parent=5 // pred_check_branch
      %143 = sbr.rel (%p140) target = $region12
    $region11: #{residual_block_pallas.5} parent=5 // pred_region
      %s144 = ssub.s32 %s10, 1
      // Predicated region
      $region13: #{residual_block_pallas.5} parent=11 // pred_check
        %p145 = pneg %p83
      $region14: #{residual_block_pallas.5} parent=11 // pred_check_branch
        %147 = sbr.rel (%p145) target = $region16
      $region15: #{residual_block_pallas.5} parent=11 // pred_region
        _
      $region16: #{residual_block_pallas.5} parent=11 // pred_fallthru
        _
      // Predicated region
      $region17: #{residual_block_pallas.5} parent=11 // pred_check
        %p148 = pneg %p104
      $region18: #{residual_block_pallas.5} parent=11 // pred_check_branch
        %150 = sbr.rel (%p148) target = $region20
      $region19: #{residual_block_pallas.5} parent=11 // pred_region
        _
      $region20: #{residual_block_pallas.5} parent=11 // pred_fallthru
        _
    $region12: #{residual_block_pallas.5} parent=5 // pred_fallthru
      _
    %p151 = scmp.lt.s32.totalorder %s10, 2
    // Predicated region
    $region21: #{residual_block_pallas.5} parent=5 // pred_check
      %p152 = pneg %p151
    $region22: #{residual_block_pallas.5} parent=5 // pred_check_branch
      %154 = sbr.rel (%p152) target = $region24
    $region23: #{residual_block_pallas.5} parent=5 // pred_region
      // Predicated region
      $region25: #{residual_block_pallas.5} parent=23 // pred_check
        %p155 = pneg %p30
      $region26: #{residual_block_pallas.5} parent=23 // pred_check_branch
        %157 = sbr.rel (%p155) target = $region28
      $region27: #{residual_block_pallas.5} parent=23 // pred_region
        %p158 = scmp.lt.s32.totalorder %s10, 1
        %s159 = scalar_select %p158, %s10, 1
        %s160 = smul.addr %s159, 3
        %s161 = smul.addr %s160, 4
        %s162 = scalar_lea.vmem %s0, %s161
      $region28: #{residual_block_pallas.5} parent=23 // pred_fallthru
        _
      // Predicated region
      $region29: #{residual_block_pallas.5} parent=23 // pred_check
        %p163 = pneg %p56
      $region30: #{residual_block_pallas.5} parent=23 // pred_check_branch
        %165 = sbr.rel (%p163) target = $region32
      $region31: #{residual_block_pallas.5} parent=23 // pred_region
        %p166 = scmp.lt.s32.totalorder %s10, 1
        %s167 = scalar_select %p166, %s10, 1
        %s168 = smul.addr %s167, 3
        %s169 = smul.addr %s168, 4
        %s170 = scalar_lea.vmem %s1, %s169
      $region32: #{residual_block_pallas.5} parent=23 // pred_fallthru
        _
    $region24: #{residual_block_pallas.5} parent=5 // pred_fallthru
      _
    %p171 = scmp.le.s32.totalorder 1, %s10
    %p172 = scmp.lt.s32.totalorder %s10, 3
    %p173 = pnand %p171, %p172
    %p174 = pneg %p173
    // Predicated region
    $region33: #{residual_block_pallas.5} parent=5 // pred_check
      _
    $region34: #{residual_block_pallas.5} parent=5 // pred_check_branch
      %176 = sbr.rel (%p173) target = $region36
    $region35: #{residual_block_pallas.5} parent=5 // pred_region
      %s177 = ssub.s32 %s10, 1
      %p178 = scmp.lt.s32.totalorder %s15, 1
      %s179 = scalar_select %p178, %s15, 1
      %s180 = smul.addr %s179, 3
      %s181 = smul.addr %s180, 4
      %s182 = scalar_lea.vmem %s0, %s181
      %p183 = pneg %p36
      %p184 = pneg %p33
      %p185 = scmp.lt.s32.totalorder %s15, 1
      %s186 = scalar_select %p185, %s15, 1
      %s187 = smul.addr %s186, 3
      %s188 = smul.addr %s187, 4
      %s189 = scalar_lea.vmem %s1, %s188
      %p190 = pneg %p62
      %p191 = pneg %p59
      %p192 = pneg %p83
      %p193 = pneg %p80
      %p194 = pneg %p104
      %p195 = pneg %p101
      %p196 = pneg %p130
      %p197 = pneg %p127
      %p198 = scmp.lt.s32.totalorder %s15, 1
      %s199 = scalar_select %p198, %s15, 1
      %s200 = smul.addr %s199, 3
      %s201 = smul.addr %s200, 4
      %s202 = scalar_lea.vmem %s4, %s201
      %p203 = scmp.lt.s32.totalorder %s15, 1
      %s204 = scalar_select %p203, %s15, 1
      %s205 = smul.addr %s204, 3
      %s206 = smul.addr %s205, 4
      %s207 = scalar_lea.vmem %s0, %s206
      %p208 = scmp.lt.s32.totalorder %s15, 1
      %s209 = scalar_select %p208, %s15, 1
      %s210 = smul.addr %s209, 3
      %s211 = smul.addr %s210, 4
      %s212 = scalar_lea.vmem %s1, %s211
      %p213 = scmp.lt.s32.totalorder %s15, 1
      %s214 = scalar_select %p213, %s15, 1
      %s215 = smul.addr %s214, 3
      %s216 = smul.addr %s215, 4
      %s217 = scalar_lea.vmem %s4, %s216
      %v218 = vld [vmem:[%s212] sm:$0xff]
      %v219 = vld [vmem:[%s212 + $0x8] sm:$0xf]
      %v220 = vld [vmem:[%s207] sm:$0xff]
      %v221 = vld [vmem:[%s207 + $0x8] sm:$0xf]
      %v222 = vld [vmem:[%s2] sm:$0xf]
      %224 = vset.pattern.permute.xlu0 0
      %225 = vperm.xlu0 %224, %v222
      %v226 = vpop.permute.xlu0 %225
      %v228 = vunpack.c.l.s4 839922192
      %v229 = vunpack.c.0.s8 %v228
      %v230 = vperm.slane %v226, %v229
      %v232 = vmul.f32 %v220, %v230
      %v233 = vmul.f32 %v221, %v230
      %v234 = vld [vmem:[%s3] sm:$0xf]
      %236 = vset.pattern.permute.xlu0 0
      %237 = vperm.xlu0 %236, %v234
      %v238 = vpop.permute.xlu0 %237
      %v240 = vunpack.c.l.s4 839922192
      %v241 = vunpack.c.0.s8 %v240
      %v242 = vperm.slane %v238, %v241
      %v244 = vadd.f32 %v232, %v242
      %v245 = vadd.f32 %v233, %v242
      %248 = vrot.lane.b32.xlu0 %v218, 109
      %v249 = vpop.permute.xlu0 %248
      %250 = vrot.lane.b32.xlu0 %v219, 109
      %v251 = vpop.permute.xlu0 %250
      %v252 = vrot.slane %v249, 4
      %v253 = vrot.slane %v251, 4
      %vm254 = vcmask 1043456
      %v255 = vsel %vm254, %v252, %v253
      %vm256 = vcmask 891904
      %v257 = vsel %vm256, %v249, %v255
      %v260 = vadd.f32 %v244, %v257
      %v261 = vadd.f32 %v245, %v251
      %v262 = vmax.f32 %v260, 0.0
      %v263 = vmax.f32 %v261, 0.0
      %vm264 = vcmask 150528
      %265 = vst.msk [vmem:[%s217] sm:$0xf] %vm264, 0.0
      %268 = vrot.lane.b32.xlu0 %v262, 19
      %v269 = vpop.permute.xlu0 %268
      %270 = vrot.lane.b32.xlu0 %v263, 19
      %v271 = vpop.permute.xlu0 %270
      %v272 = vrot.slane %v269, 4
      %vm273 = vcmask 154624
      %v274 = vsel %vm273, %v272, %v269
      %v275 = vsel %vm273, %v272, %v271
      %vm278 = vcmask 1043608
      %vm279 = vcmask 1047556
      %vm280 = vmor %vm279, %vm278
      %281 = vst.msk [vmem:[%s217] sm:$0xff] %vm280, %v274
      %vm282 = vcmask 396288
      %283 = vst.msk [vmem:[%s217 + $0x8] sm:$0xf] %vm282, %v275
      %vm284 = vcmask 552328
      %285 = vst.msk [vmem:[%s217 + $0x8] sm:$0xf] %vm284, 0.0
      %p286 = scmp.lt.s32.totalorder %s15, 1
      %s287 = scalar_select %p286, %s15, 1
      %s288 = smul.addr %s287, 3
      %s289 = smul.addr %s288, 4
      %s290 = scalar_lea.vmem %s4, %s289
      // Predicated region
      $region37: #{residual_block_pallas.5} parent=35 // pred_check
        %p291 = pneg %p127
      $region38: #{residual_block_pallas.5} parent=35 // pred_check_branch
        %293 = sbr.rel (%p291) target = $region40
      $region39: #{residual_block_pallas.5} parent=35 // pred_region
        _
      $region40: #{residual_block_pallas.5} parent=35 // pred_fallthru
        _
    $region36: #{residual_block_pallas.5} parent=5 // pred_fallthru
      _
    %p294 = scmp.le.s32.totalorder 2, %s10
    // Predicated region
    $region41: #{residual_block_pallas.5} parent=5 // pred_check
      %p295 = pneg %p294
    $region42: #{residual_block_pallas.5} parent=5 // pred_check_branch
      %297 = sbr.rel (%p295) target = $region44
    $region43: #{residual_block_pallas.5} parent=5 // pred_region
      %s298 = ssub.s32 %s10, 2
      // Predicated region
      $region45: #{residual_block_pallas.5} parent=43 // pred_check
        %p299 = pneg %p133
      $region46: #{residual_block_pallas.5} parent=43 // pred_check_branch
        %301 = sbr.rel (%p299) target = $region48
      $region47: #{residual_block_pallas.5} parent=43 // pred_region
        %p302 = scmp.lt.s32.totalorder %s16, 1
        %s303 = scalar_select %p302, %s16, 1
        %s304 = smul.addr %s303, 3
        %s305 = smul.addr %s304, 4
        %s306 = scalar_lea.vmem %s4, %s305
      $region48: #{residual_block_pallas.5} parent=43 // pred_fallthru
        _
    $region44: #{residual_block_pallas.5} parent=5 // pred_fallthru
      _
  $region6: #{residual_block_pallas.5} parent=0 // loop_footer
    %s14 = sadd.s32 1, %s10
  $region7: #{residual_block_pallas.5} parent=0 // loop_footer_branch
    %9 = sbr.rel target = $region3
  $region8: #{residual_block_pallas.5} parent=0 // loop_exit
    _

// kernel: residual_block_pallas.3
$region0: #{residual_block_pallas.3}
  #allocation0 [shape = 'u32[]', space=smem, size = 0x4, offset = 0x4, fixed_abs, tag = 'smem constant byte address 0x4 - core index']
  #allocation1 [shape = 'u32[72,128]{1,0:T(1,128)}', space=vmem, size = 0x9000, scoped, tag = 'internal scratch']
  %s0 = inlined_call_operand.vmem [shape: f32[2,4,324], index: 0, kind: input, shape index: {}]
  %s1 = inlined_call_operand.vmem [shape: f32[1,286], index: 1, kind: input, shape index: {}]
  %s2 = inlined_call_operand.vmem [shape: f32[9,4,4], index: 2, kind: input, shape index: {}]
  %s3 = inlined_call_operand.vmem [shape: f32[4,1], index: 3, kind: input, shape index: {}]
  %s4 = inlined_call_operand.vmem [shape: f32[2,4,286], index: 4, kind: output, shape index: {0}]
  %s5 = inlined_call_operand.vmem [shape: f32[2,4,2], index: 5, kind: output, shape index: {1}]
  %6 = xla_tuple %s4, %s5
  %s7 = sld [smem:[#allocation0]]
  $region57: #{residual_block_pallas.3} parent=0
    _
  %s9 = ssub.s32 1, %s7
  %s10 = scalar_select 0, %s9, %s7
  loop: start=0, step=1, limit=4
  $region2: #{residual_block_pallas.3} parent=0 // loop_pre_header
    _
  $region3: #{residual_block_pallas.3} parent=0 // loop_header
    %s12 = sphi 0, %s16
    %p13 = scmp.ge.s32.totalorder %s12, 4
    %s22 = sphi 0, %s24
    %s25 = sphi 0, %s22
    %s26 = sphi 0, %s25
    %s42 = sphi 0, %s26
    %s46 = sphi 0, %s46
    %s48 = sphi 0, %s46
    %s49 = sphi 0, %s48
    %s63 = sphi 0, %s49
    %s67 = sphi 0, %s67
    %s69 = sphi 0, %s67
    %s70 = sphi 0, %s69
    %s84 = sphi 0, %s70
    %s88 = sphi 0, %s88
    %s90 = sphi 0, %s88
    %s91 = sphi 0, %s90
    %s105 = sphi 0, %s91
    %s111 = sphi 0, %s113
    %s114 = sphi 0, %s111
    %s115 = sphi 0, %s114
    %s131 = sphi 0, %s115
    %s137 = sphi 0, %s139
    %s140 = sphi 0, %s137
    %s141 = sphi 0, %s140
    %s157 = sphi 0, %s141
  $region4: #{residual_block_pallas.3} parent=0 // loop_header_branch
    %15 = sbr.rel (%p13) target = $region8
  $region5: #{residual_block_pallas.3} parent=0 // loop_body
    %s17 = ssub.s32 %s12, 1
    %s18 = ssub.s32 %s12, 2
    %s19 = sadd.s32 %s12, 1
    %s20 = ssub.s32 %s12, %s19
    %p21 = scmp.eq.s32.totalorder %s20, 0
    %s23 = sadd.s32 %s22, 1
    %s24 = scalar_select %p21, %s22, %s23
    %p27 = pneg %p21
    %p28 = scmp.eq.s32.totalorder %s12, 1
    %p29 = por %p27, %p28
    %p30 = scmp.ne.s32.totalorder %s22, %s25
    %p31 = scmp.eq.s32.totalorder %s12, 0
    %p32 = por %p30, %p31
    %p33 = scmp.ne.s32.totalorder %s22, %s25
    %p34 = scmp.eq.s32.totalorder %s17, 1
    %p35 = por %p33, %p34
    %p36 = scmp.ne.s32.totalorder %s25, %s26
    %p37 = scmp.eq.s32.totalorder %s17, 0
    %p38 = por %p36, %p37
    %p39 = scmp.ne.s32.totalorder %s25, %s26
    %p40 = scmp.eq.s32.totalorder %s18, 1
    %p41 = por %p39, %p40
    %p43 = scmp.ne.s32.totalorder %s26, %s42
    %p44 = scmp.eq.s32.totalorder %s18, 0
    %p45 = por %p43, %p44
    %s47 = sadd.s32 %s46, 1
    %p50 = scmp.eq.s32.totalorder %s12, 1
    %p51 = scmp.ne.s32.totalorder %s46, %s48
    %p52 = scmp.eq.s32.totalorder %s12, 0
    %p53 = por %p51, %p52
    %p54 = scmp.ne.s32.totalorder %s46, %s48
    %p55 = scmp.eq.s32.totalorder %s17, 1
    %p56 = por %p54, %p55
    %p57 = scmp.ne.s32.totalorder %s48, %s49
    %p58 = scmp.eq.s32.totalorder %s17, 0
    %p59 = por %p57, %p58
    %p60 = scmp.ne.s32.totalorder %s48, %s49
    %p61 = scmp.eq.s32.totalorder %s18, 1
    %p62 = por %p60, %p61
    %p64 = scmp.ne.s32.totalorder %s49, %s63
    %p65 = scmp.eq.s32.totalorder %s18, 0
    %p66 = por %p64, %p65
    %s68 = sadd.s32 %s67, 1
    %p71 = scmp.eq.s32.totalorder %s12, 1
    %p72 = scmp.ne.s32.totalorder %s67, %s69
    %p73 = scmp.eq.s32.totalorder %s12, 0
    %p74 = por %p72, %p73
    %p75 = scmp.ne.s32.totalorder %s67, %s69
    %p76 = scmp.eq.s32.totalorder %s17, 1
    %p77 = por %p75, %p76
    %p78 = scmp.ne.s32.totalorder %s69, %s70
    %p79 = scmp.eq.s32.totalorder %s17, 0
    %p80 = por %p78, %p79
    %p81 = scmp.ne.s32.totalorder %s69, %s70
    %p82 = scmp.eq.s32.totalorder %s18, 1
    %p83 = por %p81, %p82
    %p85 = scmp.ne.s32.totalorder %s70, %s84
    %p86 = scmp.eq.s32.totalorder %s18, 0
    %p87 = por %p85, %p86
    %s89 = sadd.s32 %s88, 1
    %p92 = scmp.eq.s32.totalorder %s12, 1
    %p93 = scmp.ne.s32.totalorder %s88, %s90
    %p94 = scmp.eq.s32.totalorder %s12, 0
    %p95 = por %p93, %p94
    %p96 = scmp.ne.s32.totalorder %s88, %s90
    %p97 = scmp.eq.s32.totalorder %s17, 1
    %p98 = por %p96, %p97
    %p99 = scmp.ne.s32.totalorder %s90, %s91
    %p100 = scmp.eq.s32.totalorder %s17, 0
    %p101 = por %p99, %p100
    %p102 = scmp.ne.s32.totalorder %s90, %s91
    %p103 = scmp.eq.s32.totalorder %s18, 1
    %p104 = por %p102, %p103
    %p106 = scmp.ne.s32.totalorder %s91, %s105
    %p107 = scmp.eq.s32.totalorder %s18, 0
    %p108 = por %p106, %p107
    %s109 = ssub.s32 %s12, %s19
    %p110 = scmp.eq.s32.totalorder %s109, 0
    %s112 = sadd.s32 %s111, 1
    %s113 = scalar_select %p110, %s111, %s112
    %p116 = pneg %p110
    %p117 = scmp.eq.s32.totalorder %s12, 1
    %p118 = por %p116, %p117
    %p119 = scmp.ne.s32.totalorder %s111, %s114
    %p120 = scmp.eq.s32.totalorder %s12, 0
    %p121 = por %p119, %p120
    %p122 = scmp.ne.s32.totalorder %s111, %s114
    %p123 = scmp.eq.s32.totalorder %s17, 1
    %p124 = por %p122, %p123
    %p125 = scmp.ne.s32.totalorder %s114, %s115
    %p126 = scmp.eq.s32.totalorder %s17, 0
    %p127 = por %p125, %p126
    %p128 = scmp.ne.s32.totalorder %s114, %s115
    %p129 = scmp.eq.s32.totalorder %s18, 1
    %p130 = por %p128, %p129
    %p132 = scmp.ne.s32.totalorder %s115, %s131
    %p133 = scmp.eq.s32.totalorder %s18, 0
    %p134 = por %p132, %p133
    %s135 = ssub.s32 %s12, %s19
    %p136 = scmp.eq.s32.totalorder %s135, 0
    %s138 = sadd.s32 %s137, 1
    %s139 = scalar_select %p136, %s137, %s138
    %p142 = pneg %p136
    %p143 = scmp.eq.s32.totalorder %s12, 1
    %p144 = por %p142, %p143
    %p145 = scmp.ne.s32.totalorder %s137, %s140
    %p146 = scmp.eq.s32.totalorder %s12, 0
    %p147 = por %p145, %p146
    %p148 = scmp.ne.s32.totalorder %s137, %s140
    %p149 = scmp.eq.s32.totalorder %s17, 1
    %p150 = por %p148, %p149
    %p151 = scmp.ne.s32.totalorder %s140, %s141
    %p152 = scmp.eq.s32.totalorder %s17, 0
    %p153 = por %p151, %p152
    %p154 = scmp.ne.s32.totalorder %s140, %s141
    %p155 = scmp.eq.s32.totalorder %s18, 1
    %p156 = por %p154, %p155
    %p158 = scmp.ne.s32.totalorder %s141, %s157
    %p159 = scmp.eq.s32.totalorder %s18, 0
    %p160 = por %p158, %p159
    %p161 = scmp.le.s32.totalorder 1, %s12
    %p162 = scmp.lt.s32.totalorder %s12, 3
    %p163 = pnand %p161, %p162
    %p164 = pneg %p163
    // Predicated region
    $region9: #{residual_block_pallas.3} parent=5 // pred_check
      _
    $region10: #{residual_block_pallas.3} parent=5 // pred_check_branch
      %166 = sbr.rel (%p163) target = $region12
    $region11: #{residual_block_pallas.3} parent=5 // pred_region
      %s167 = ssub.s32 %s12, 1
      // Predicated region
      $region13: #{residual_block_pallas.3} parent=11 // pred_check
        %p168 = pneg %p59
      $region14: #{residual_block_pallas.3} parent=11 // pred_check_branch
        %170 = sbr.rel (%p168) target = $region16
      $region15: #{residual_block_pallas.3} parent=11 // pred_region
        _
      $region16: #{residual_block_pallas.3} parent=11 // pred_fallthru
        _
      // Predicated region
      $region17: #{residual_block_pallas.3} parent=11 // pred_check
        %p171 = pneg %p80
      $region18: #{residual_block_pallas.3} parent=11 // pred_check_branch
        %173 = sbr.rel (%p171) target = $region20
      $region19: #{residual_block_pallas.3} parent=11 // pred_region
        _
      $region20: #{residual_block_pallas.3} parent=11 // pred_fallthru
        _
      // Predicated region
      $region21: #{residual_block_pallas.3} parent=11 // pred_check
        %p174 = pneg %p101
      $region22: #{residual_block_pallas.3} parent=11 // pred_check_branch
        %176 = sbr.rel (%p174) target = $region24
      $region23: #{residual_block_pallas.3} parent=11 // pred_region
        _
      $region24: #{residual_block_pallas.3} parent=11 // pred_fallthru
        _
    $region12: #{residual_block_pallas.3} parent=5 // pred_fallthru
      _
    %p177 = scmp.lt.s32.totalorder %s12, 2
    // Predicated region
    $region25: #{residual_block_pallas.3} parent=5 // pred_check
      %p178 = pneg %p177
    $region26: #{residual_block_pallas.3} parent=5 // pred_check_branch
      %180 = sbr.rel (%p178) target = $region28
    $region27: #{residual_block_pallas.3} parent=5 // pred_region
      // Predicated region
      $region29: #{residual_block_pallas.3} parent=27 // pred_check
        %p181 = pneg %p32
      $region30: #{residual_block_pallas.3} parent=27 // pred_check_branch
        %183 = sbr.rel (%p181) target = $region32
      $region31: #{residual_block_pallas.3} parent=27 // pred_region
        %p184 = scmp.lt.s32.totalorder %s12, 1
        %s185 = scalar_select %p184, %s12, 1
        %s186 = smul.addr %s185, 3
        %s187 = smul.addr %s186, 4
        %s188 = scalar_lea.vmem %s0, %s187
      $region32: #{residual_block_pallas.3} parent=27 // pred_fallthru
        _
    $region28: #{residual_block_pallas.3} parent=5 // pred_fallthru
      _
    %p189 = scmp.le.s32.totalorder 1, %s12
    %p190 = scmp.lt.s32.totalorder %s12, 3
    %p191 = pnand %p189, %p190
    %p192 = pneg %p191
    // Predicated region
    $region33: #{residual_block_pallas.3} parent=5 // pred_check
      _
    $region34: #{residual_block_pallas.3} parent=5 // pred_check_branch
      %194 = sbr.rel (%p191) target = $region36
    $region35: #{residual_block_pallas.3} parent=5 // pred_region
      %s195 = ssub.s32 %s12, 1
      %p196 = scmp.lt.s32.totalorder %s17, 1
      %s197 = scalar_select %p196, %s17, 1
      %s198 = smul.addr %s197, 3
      %s199 = smul.addr %s198, 4
      %s200 = scalar_lea.vmem %s0, %s199
      %p201 = pneg %p38
      %p202 = pneg %p35
      %p203 = pneg %p59
      %p204 = pneg %p56
      %p205 = pneg %p80
      %p206 = pneg %p77
      %p207 = pneg %p101
      %p208 = pneg %p98
      %p209 = pneg %p127
      %p210 = pneg %p124
      %p211 = scmp.lt.s32.totalorder %s17, 1
      %s212 = scalar_select %p211, %s17, 1
      %s213 = smul.addr %s212, 3
      %s214 = smul.addr %s213, 4
      %s215 = scalar_lea.vmem %s4, %s214
      %p216 = pneg %p153
      %p217 = pneg %p150
      %p218 = scmp.lt.s32.totalorder %s17, 1
      %s219 = scalar_select %p218, %s17, 1
      %s220 = smul.addr %s219, 4
      %s221 = scalar_lea.vmem %s5, %s220
      %p222 = scmp.lt.s32.totalorder %s17, 1
      %s223 = scalar_select %p222, %s17, 1
      %s224 = smul.addr %s223, 3
      %s225 = smul.addr %s224, 4
      %s226 = scalar_lea.vmem %s0, %s225
      %p227 = scmp.lt.s32.totalorder %s17, 1
      %s228 = scalar_select %p227, %s17, 1
      %s229 = smul.addr %s228, 3
      %s230 = smul.addr %s229, 4
      %s231 = scalar_lea.vmem %s4, %s230
      %p232 = scmp.lt.s32.totalorder %s17, 1
      %s233 = scalar_select %p232, %s17, 1
      %s234 = smul.addr %s233, 4
      %s235 = scalar_lea.vmem %s5, %s234
      %v236 = vld [vmem:[%s226] sm:$0xff]
      %v237 = vld [vmem:[%s226 + $0x8] sm:$0xf]
      %v238 = vld [vmem:[%s2] sm:$0xf]
      %s239 = scalar_lea.vmem %s2, 4
      %v240 = vld [vmem:[%s239] sm:$0xf]
      %243 = vst [vmem:[#allocation1] ss:$2 sm:$0xff] %v236
      %s244 = scalar_lea.vmem [#allocation1], 16
      %245 = vst [vmem:[%s244] ss:$2 sm:$0xff] %v237
      %v246 = vld.sshfl [vmem:[#allocation1] sm:$0xff pattern:$0x75316420]
      %v247 = vld.sshfl [vmem:[#allocation1 + $0x8] sm:$0xff pattern:$0x75316420]
      %v248 = vld.sshfl [vmem:[#allocation1 + $0x10] sm:$0xff pattern:$0x75316420]
      %249 = vrot.lane.b32.xlu0 %v246, 127
      %v250 = vpop.permute.xlu0 %249
      %251 = vrot.lane.b32.xlu0 %v247, 127
      %v252 = vpop.permute.xlu0 %251
      %253 = vrot.lane.b32.xlu0 %v248, 127
      %v254 = vpop.permute.xlu0 %253
      %vm255 = vcmask 1039360
      %v256 = vsel %vm255, %v250, %v252
      %v257 = vsel %vm255, %v252, %v254
      %vm258 = vcmask 31744
      %v260 = vsel %vm258, %v240, 0
      %vm262 = vcmask 1043456
      %v263 = vsel %vm262, %v256, 0
      %v265 = vsel %vm262, %v257, 0
      %v267 = vsel %vm262, %v254, 0
      %269 = vmatpush.msra.mxu0 0.0
      %270 = vmatpush.msra.mxu0 0.0
      %271 = vmatpush.msra.mxu0 0.0
      %272 = vmatpush.msra.mxu0 0.0
      %273 = vmatpush.msra.mxu0 0.0
      %274 = vmatpush.msra.mxu0 0.0
      %275 = vmatpush.msra.mxu0 0.0
      %276 = vmatpush.msra.mxu0 0.0
      %277 = vmatpush.msra.mxu0 0.0
      %278 = vmatpush.msra.mxu0 0.0
      %279 = vmatpush.msra.mxu0 0.0
      %280 = vmatpush.msra.mxu0 0.0
      %281 = vmatpush.msra.mxu0 0.0
      %282 = vmatpush.msra.mxu0 0.0
      %283 = vmatpush.msra.mxu0 0.0
      %284 = vmatpush.msra.mxu0 %v263
      %285 = vmatmul.f32.gmra.mxu0 %v260
      %v286 = vpop.f32.mrf.mxu0
      %v287 = vadd.f32 0.0, %v286
      %288 = vdwg.mxu0
      %289 = vmatpush.msra.mxu0 0.0
      %290 = vmatpush.msra.mxu0 0.0
      %291 = vmatpush.msra.mxu0 0.0
      %292 = vmatpush.msra.mxu0 0.0
      %293 = vmatpush.msra.mxu0 0.0
      %294 = vmatpush.msra.mxu0 0.0
      %295 = vmatpush.msra.mxu0 0.0
      %296 = vmatpush.msra.mxu0 0.0
      %297 = vmatpush.msra.mxu0 0.0
      %298 = vmatpush.msra.mxu0 0.0
      %299 = vmatpush.msra.mxu0 0.0
      %300 = vmatpush.msra.mxu0 0.0
      %301 = vmatpush.msra.mxu0 0.0
      %302 = vmatpush.msra.mxu0 0.0
      %303 = vmatpush.msra.mxu0 0.0
      %304 = vmatpush.msra.mxu0 %v265
      %305 = vmatmul.f32.gmra.mxu0 %v260
      %v306 = vpop.f32.mrf.mxu0
      %v307 = vadd.f32 0.0, %v306
      %308 = vdwg.mxu0
      %309 = vmatpush.msra.mxu0 0.0
      %310 = vmatpush.msra.mxu0 0.0
      %311 = vmatpush.msra.mxu0 0.0
      %312 = vmatpush.msra.mxu0 0.0
      %313 = vmatpush.msra.mxu0 0.0
      %314 = vmatpush.msra.mxu0 0.0
      %315 = vmatpush.msra.mxu0 0.0
      %316 = vmatpush.msra.mxu0 0.0
      %317 = vmatpush.msra.mxu0 0.0
      %318 = vmatpush.msra.mxu0 0.0
      %319 = vmatpush.msra.mxu0 0.0
      %320 = vmatpush.msra.mxu0 0.0
      %321 = vmatpush.msra.mxu0 0.0
      %322 = vmatpush.msra.mxu0 0.0
      %323 = vmatpush.msra.mxu0 0.0
      %324 = vmatpush.msra.mxu0 %v267
      %325 = vmatmul.f32.gmra.mxu0 %v260
      %v326 = vpop.f32.mrf.mxu0
      %v327 = vadd.f32 0.0, %v326
      %328 = vdwg.mxu0
      %329 = vst [vmem:[#allocation1] ss:$2 sm:$0xff] %v236
      %s330 = scalar_lea.vmem [#allocation1], 16
      %331 = vst [vmem:[%s330] ss:$2 sm:$0xff] %v237
      %v332 = vld.sshfl [vmem:[#allocation1] sm:$0xff pattern:$0x75316420]
      %v333 = vld.sshfl [vmem:[#allocation1 + $0x8] sm:$0xff pattern:$0x75316420]
      %v334 = vld.sshfl [vmem:[#allocation1 + $0x10] sm:$0xff pattern:$0x75316420]
      %v336 = vsel %vm258, %v238, 0
      %v338 = vsel %vm262, %v332, 0
      %v340 = vsel %vm262, %v333, 0
      %v342 = vsel %vm262, %v334, 0
      %344 = vmatpush.msra.mxu0 0.0
      %345 = vmatpush.msra.mxu0 0.0
      %346 = vmatpush.msra.mxu0 0.0
      %347 = vmatpush.msra.mxu0 0.0
      %348 = vmatpush.msra.mxu0 0.0
      %349 = vmatpush.msra.mxu0 0.0
      %350 = vmatpush.msra.mxu0 0.0
      %351 = vmatpush.msra.mxu0 0.0
      %352 = vmatpush.msra.mxu0 0.0
      %353 = vmatpush.msra.mxu0 0.0
      %354 = vmatpush.msra.mxu0 0.0
      %355 = vmatpush.msra.mxu0 0.0
      %356 = vmatpush.msra.mxu0 0.0
      %357 = vmatpush.msra.mxu0 0.0
      %358 = vmatpush.msra.mxu0 0.0
      %359 = vmatpush.msra.mxu0 %v338
      %360 = vmatmul.f32.gmra.mxu0 %v336
      %v361 = vpop.f32.mrf.mxu0
      %v362 = vadd.f32 %v287, %v361
      %363 = vdwg.mxu0
      %364 = vmatpush.msra.mxu0 0.0
      %365 = vmatpush.msra.mxu0 0.0
      %366 = vmatpush.msra.mxu0 0.0
      %367 = vmatpush.msra.mxu0 0.0
      %368 = vmatpush.msra.mxu0 0.0
      %369 = vmatpush.msra.mxu0 0.0
      %370 = vmatpush.msra.mxu0 0.0
      %371 = vmatpush.msra.mxu0 0.0
      %372 = vmatpush.msra.mxu0 0.0
      %373 = vmatpush.msra.mxu0 0.0
      %374 = vmatpush.msra.mxu0 0.0
      %375 = vmatpush.msra.mxu0 0.0
      %376 = vmatpush.msra.mxu0 0.0
      %377 = vmatpush.msra.mxu0 0.0
      %378 = vmatpush.msra.mxu0 0.0
      %379 = vmatpush.msra.mxu0 %v340
      %380 = vmatmul.f32.gmra.mxu0 %v336
      %v381 = vpop.f32.mrf.mxu0
      %v382 = vadd.f32 %v307, %v381
      %383 = vdwg.mxu0
      %384 = vmatpush.msra.mxu0 0.0
      %385 = vmatpush.msra.mxu0 0.0
      %386 = vmatpush.msra.mxu0 0.0
      %387 = vmatpush.msra.mxu0 0.0
      %388 = vmatpush.msra.mxu0 0.0
      %389 = vmatpush.msra.mxu0 0.0
      %390 = vmatpush.msra.mxu0 0.0
      %391 = vmatpush.msra.mxu0 0.0
      %392 = vmatpush.msra.mxu0 0.0
      %393 = vmatpush.msra.mxu0 0.0
      %394 = vmatpush.msra.mxu0 0.0
      %395 = vmatpush.msra.mxu0 0.0
      %396 = vmatpush.msra.mxu0 0.0
      %397 = vmatpush.msra.mxu0 0.0
      %398 = vmatpush.msra.mxu0 0.0
      %399 = vmatpush.msra.mxu0 %v342
      %400 = vmatmul.f32.gmra.mxu0 %v336
      %v401 = vpop.f32.mrf.mxu0
      %v402 = vadd.f32 %v327, %v401
      %403 = vdwg.mxu0
      %v404 = vld [vmem:[%s226] sm:$0xff]
      %v405 = vld [vmem:[%s226 + $0x8] sm:$0xf]
      %s406 = scalar_lea.vmem %s2, 8
      %v407 = vld [vmem:[%s406] sm:$0xf]
      %410 = vst [vmem:[#allocation1] ss:$2 sm:$0xff] %v404
      %s411 = scalar_lea.vmem [#allocation1], 16
      %412 = vst [vmem:[%s411] ss:$2 sm:$0xff] %v405
      %v413 = vld.sshfl [vmem:[#allocation1] sm:$0xff pattern:$0x75316420]
      %v414 = vld.sshfl [vmem:[#allocation1 + $0x8] sm:$0xff pattern:$0x75316420]
      %v415 = vld.sshfl [vmem:[#allocation1 + $0x10] sm:$0xff pattern:$0x75316420]
      %416 = vrot.lane.b32.xlu0 %v413, 126
      %v417 = vpop.permute.xlu0 %416
      %418 = vrot.lane.b32.xlu0 %v414, 126
      %v419 = vpop.permute.xlu0 %418
      %420 = vrot.lane.b32.xlu0 %v415, 126
      %v421 = vpop.permute.xlu0 %420
      %vm422 = vcmask 1031168
      %v423 = vsel %vm422, %v417, %v419
      %v424 = vsel %vm422, %v419, %v421
      %v426 = vsel %vm258, %v407, 0
      %v428 = vsel %vm262, %v423, 0
      %v430 = vsel %vm262, %v424, 0
      %v432 = vsel %vm262, %v421, 0
      %434 = vmatpush.msra.mxu0 0.0
      %435 = vmatpush.msra.mxu0 0.0
      %436 = vmatpush.msra.mxu0 0.0
      %437 = vmatpush.msra.mxu0 0.0
      %438 = vmatpush.msra.mxu0 0.0
      %439 = vmatpush.msra.mxu0 0.0
      %440 = vmatpush.msra.mxu0 0.0
      %441 = vmatpush.msra.mxu0 0.0
      %442 = vmatpush.msra.mxu0 0.0
      %443 = vmatpush.msra.mxu0 0.0
      %444 = vmatpush.msra.mxu0 0.0
      %445 = vmatpush.msra.mxu0 0.0
      %446 = vmatpush.msra.mxu0 0.0
      %447 = vmatpush.msra.mxu0 0.0
      %448 = vmatpush.msra.mxu0 0.0
      %449 = vmatpush.msra.mxu0 %v428
      %450 = vmatmul.f32.gmra.mxu0 %v426
      %v451 = vpop.f32.mrf.mxu0
      %v452 = vadd.f32 0.0, %v451
      %453 = vdwg.mxu0
      %454 = vmatpush.msra.mxu0 0.0
      %455 = vmatpush.msra.mxu0 0.0
      %456 = vmatpush.msra.mxu0 0.0
      %457 = vmatpush.msra.mxu0 0.0
      %458 = vmatpush.msra.mxu0 0.0
      %459 = vmatpush.msra.mxu0 0.0
      %460 = vmatpush.msra.mxu0 0.0
      %461 = vmatpush.msra.mxu0 0.0
      %462 = vmatpush.msra.mxu0 0.0
      %463 = vmatpush.msra.mxu0 0.0
      %464 = vmatpush.msra.mxu0 0.0
      %465 = vmatpush.msra.mxu0 0.0
      %466 = vmatpush.msra.mxu0 0.0
      %467 = vmatpush.msra.mxu0 0.0
      %468 = vmatpush.msra.mxu0 0.0
      %469 = vmatpush.msra.mxu0 %v430
      %470 = vmatmul.f32.gmra.mxu0 %v426
      %v471 = vpop.f32.mrf.mxu0
      %v472 = vadd.f32 0.0, %v471
      %473 = vdwg.mxu0
      %474 = vmatpush.msra.mxu0 0.0
      %475 = vmatpush.msra.mxu0 0.0
      %476 = vmatpush.msra.mxu0 0.0
      %477 = vmatpush.msra.mxu0 0.0
      %478 = vmatpush.msra.mxu0 0.0
      %479 = vmatpush.msra.mxu0 0.0
      %480 = vmatpush.msra.mxu0 0.0
      %481 = vmatpush.msra.mxu0 0.0
      %482 = vmatpush.msra.mxu0 0.0
      %483 = vmatpush.msra.mxu0 0.0
      %484 = vmatpush.msra.mxu0 0.0
      %485 = vmatpush.msra.mxu0 0.0
      %486 = vmatpush.msra.mxu0 0.0
      %487 = vmatpush.msra.mxu0 0.0
      %488 = vmatpush.msra.mxu0 0.0
      %489 = vmatpush.msra.mxu0 %v432
      %490 = vmatmul.f32.gmra.mxu0 %v426
      %v491 = vpop.f32.mrf.mxu0
      %v492 = vadd.f32 0.0, %v491
      %493 = vdwg.mxu0
      %v494 = vadd.f32 %v362, %v452
      %v495 = vadd.f32 %v382, %v472
      %v496 = vadd.f32 %v402, %v492
      %v497 = vld [vmem:[%s226] sm:$0xff]
      %v498 = vld [vmem:[%s226 + $0x8] sm:$0xf]
      %s499 = scalar_lea.vmem %s2, 12
      %v500 = vld [vmem:[%s499] sm:$0xf]
      %503 = vst [vmem:[#allocation1] ss:$2 sm:$0xff] %v497
      %s504 = scalar_lea.vmem [#allocation1], 16
      %505 = vst [vmem:[%s504] ss:$2 sm:$0xff] %v498
      %v506 = vld.sshfl [vmem:[#allocation1] sm:$0xff pattern:$0x75316420]
      %v507 = vld.sshfl [vmem:[#allocation1 + $0x8] sm:$0xff pattern:$0x75316420]
      %v508 = vld.sshfl [vmem:[#allocation1 + $0x10] sm:$0xff pattern:$0x75316420]
      %509 = vrot.lane.b32.xlu0 %v506, 110
      %v510 = vpop.permute.xlu0 %509
      %511 = vrot.lane.b32.xlu0 %v507, 110
      %v512 = vpop.permute.xlu0 %511
      %513 = vrot.lane.b32.xlu0 %v508, 110
      %v514 = vpop.permute.xlu0 %513
      %vm515 = vcmask 900096
      %v516 = vsel %vm515, %v510, %v512
      %v517 = vsel %vm515, %v512, %v514
      %v519 = vsel %vm258, %v500, 0
      %v521 = vsel %vm262, %v516, 0
      %v523 = vsel %vm262, %v517, 0
      %v525 = vsel %vm262, %v514, 0
      %527 = vmatpush.msra.mxu0 0.0
      %528 = vmatpush.msra.mxu0 0.0
      %529 = vmatpush.msra.mxu0 0.0
      %530 = vmatpush.msra.mxu0 0.0
      %531 = vmatpush.msra.mxu0 0.0
      %532 = vmatpush.msra.mxu0 0.0
      %533 = vmatpush.msra.mxu0 0.0
      %534 = vmatpush.msra.mxu0 0.0
      %535 = vmatpush.msra.mxu0 0.0
      %536 = vmatpush.msra.mxu0 0.0
      %537 = vmatpush.msra.mxu0 0.0
      %538 = vmatpush.msra.mxu0 0.0
      %539 = vmatpush.msra.mxu0 0.0
      %540 = vmatpush.msra.mxu0 0.0
      %541 = vmatpush.msra.mxu0 0.0
      %542 = vmatpush.msra.mxu0 %v521
      %543 = vmatmul.f32.gmra.mxu0 %v519
      %v544 = vpop.f32.mrf.mxu0
      %v545 = vadd.f32 0.0, %v544
      %546 = vdwg.mxu0
      %547 = vmatpush.msra.mxu0 0.0
      %548 = vmatpush.msra.mxu0 0.0
      %549 = vmatpush.msra.mxu0 0.0
      %550 = vmatpush.msra.mxu0 0.0
      %551 = vmatpush.msra.mxu0 0.0
      %552 = vmatpush.msra.mxu0 0.0
      %553 = vmatpush.msra.mxu0 0.0
      %554 = vmatpush.msra.mxu0 0.0
      %555 = vmatpush.msra.mxu0 0.0
      %556 = vmatpush.msra.mxu0 0.0
      %557 = vmatpush.msra.mxu0 0.0
      %558 = vmatpush.msra.mxu0 0.0
      %559 = vmatpush.msra.mxu0 0.0
      %560 = vmatpush.msra.mxu0 0.0
      %561 = vmatpush.msra.mxu0 0.0
      %562 = vmatpush.msra.mxu0 %v523
      %563 = vmatmul.f32.gmra.mxu0 %v519
      %v564 = vpop.f32.mrf.mxu0
      %v565 = vadd.f32 0.0, %v564
      %566 = vdwg.mxu0
      %567 = vmatpush.msra.mxu0 0.0
      %568 = vmatpush.msra.mxu0 0.0
      %569 = vmatpush.msra.mxu0 0.0
      %570 = vmatpush.msra.mxu0 0.0
      %571 = vmatpush.msra.mxu0 0.0
      %572 = vmatpush.msra.mxu0 0.0
      %573 = vmatpush.msra.mxu0 0.0
      %574 = vmatpush.msra.mxu0 0.0
      %575 = vmatpush.msra.mxu0 0.0
      %576 = vmatpush.msra.mxu0 0.0
      %577 = vmatpush.msra.mxu0 0.0
      %578 = vmatpush.msra.mxu0 0.0
      %579 = vmatpush.msra.mxu0 0.0
      %580 = vmatpush.msra.mxu0 0.0
      %581 = vmatpush.msra.mxu0 0.0
      %582 = vmatpush.msra.mxu0 %v525
      %583 = vmatmul.f32.gmra.mxu0 %v519
      %v584 = vpop.f32.mrf.mxu0
      %v585 = vadd.f32 0.0, %v584
      %586 = vdwg.mxu0
      %v587 = vadd.f32 %v494, %v545
      %v588 = vadd.f32 %v495, %v565
      %v589 = vadd.f32 %v496, %v585
      %v590 = vld [vmem:[%s226] sm:$0xff]
      %v591 = vld [vmem:[%s226 + $0x8] sm:$0xf]
      %s592 = scalar_lea.vmem %s2, 16
      %v593 = vld [vmem:[%s592] sm:$0xf]
      %596 = vst [vmem:[#allocation1] ss:$2 sm:$0xff] %v590
      %s597 = scalar_lea.vmem [#allocation1], 16
      %598 = vst [vmem:[%s597] ss:$2 sm:$0xff] %v591
      %v599 = vld.sshfl [vmem:[#allocation1] sm:$0xff pattern:$0x75316420]
      %v600 = vld.sshfl [vmem:[#allocation1 + $0x8] sm:$0xff pattern:$0x75316420]
      %v601 = vld.sshfl [vmem:[#allocation1 + $0x10] sm:$0xff pattern:$0x75316420]
      %602 = vrot.lane.b32.xlu0 %v599, 109
      %v603 = vpop.permute.xlu0 %602
      %604 = vrot.lane.b32.xlu0 %v600, 109
      %v605 = vpop.permute.xlu0 %604
      %606 = vrot.lane.b32.xlu0 %v601, 109
      %v607 = vpop.permute.xlu0 %606
      %vm608 = vcmask 891904
      %v609 = vsel %vm608, %v603, %v605
      %v610 = vsel %vm608, %v605, %v607
      %v612 = vsel %vm258, %v593, 0
      %v614 = vsel %vm262, %v609, 0
      %v616 = vsel %vm262, %v610, 0
      %v618 = vsel %vm262, %v607, 0
      %620 = vmatpush.msra.mxu0 0.0
      %621 = vmatpush.msra.mxu0 0.0
      %622 = vmatpush.msra.mxu0 0.0
      %623 = vmatpush.msra.mxu0 0.0
      %624 = vmatpush.msra.mxu0 0.0
      %625 = vmatpush.msra.mxu0 0.0
      %626 = vmatpush.msra.mxu0 0.0
      %627 = vmatpush.msra.mxu0 0.0
      %628 = vmatpush.msra.mxu0 0.0
      %629 = vmatpush.msra.mxu0 0.0
      %630 = vmatpush.msra.mxu0 0.0
      %631 = vmatpush.msra.mxu0 0.0
      %632 = vmatpush.msra.mxu0 0.0
      %633 = vmatpush.msra.mxu0 0.0
      %634 = vmatpush.msra.mxu0 0.0
      %635 = vmatpush.msra.mxu0 %v614
      %636 = vmatmul.f32.gmra.mxu0 %v612
      %v637 = vpop.f32.mrf.mxu0
      %v638 = vadd.f32 0.0, %v637
      %639 = vdwg.mxu0
      %640 = vmatpush.msra.mxu0 0.0
      %641 = vmatpush.msra.mxu0 0.0
      %642 = vmatpush.msra.mxu0 0.0
      %643 = vmatpush.msra.mxu0 0.0
      %644 = vmatpush.msra.mxu0 0.0
      %645 = vmatpush.msra.mxu0 0.0
      %646 = vmatpush.msra.mxu0 0.0
      %647 = vmatpush.msra.mxu0 0.0
      %648 = vmatpush.msra.mxu0 0.0
      %649 = vmatpush.msra.mxu0 0.0
      %650 = vmatpush.msra.mxu0 0.0
      %651 = vmatpush.msra.mxu0 0.0
      %652 = vmatpush.msra.mxu0 0.0
      %653 = vmatpush.msra.mxu0 0.0
      %654 = vmatpush.msra.mxu0 0.0
      %655 = vmatpush.msra.mxu0 %v616
      %656 = vmatmul.f32.gmra.mxu0 %v612
      %v657 = vpop.f32.mrf.mxu0
      %v658 = vadd.f32 0.0, %v657
      %659 = vdwg.mxu0
      %660 = vmatpush.msra.mxu0 0.0
      %661 = vmatpush.msra.mxu0 0.0
      %662 = vmatpush.msra.mxu0 0.0
      %663 = vmatpush.msra.mxu0 0.0
      %664 = vmatpush.msra.mxu0 0.0
      %665 = vmatpush.msra.mxu0 0.0
      %666 = vmatpush.msra.mxu0 0.0
      %667 = vmatpush.msra.mxu0 0.0
      %668 = vmatpush.msra.mxu0 0.0
      %669 = vmatpush.msra.mxu0 0.0
      %670 = vmatpush.msra.mxu0 0.0
      %671 = vmatpush.msra.mxu0 0.0
      %672 = vmatpush.msra.mxu0 0.0
      %673 = vmatpush.msra.mxu0 0.0
      %674 = vmatpush.msra.mxu0 0.0
      %675 = vmatpush.msra.mxu0 %v618
      %676 = vmatmul.f32.gmra.mxu0 %v612
      %v677 = vpop.f32.mrf.mxu0
      %v678 = vadd.f32 0.0, %v677
      %679 = vdwg.mxu0
      %v680 = vadd.f32 %v587, %v638
      %v681 = vadd.f32 %v588, %v658
      %v682 = vadd.f32 %v589, %v678
      %v683 = vld [vmem:[%s226] sm:$0xff]
      %v684 = vld [vmem:[%s226 + $0x8] sm:$0xf]
      %s685 = scalar_lea.vmem %s2, 20
      %v686 = vld [vmem:[%s685] sm:$0xf]
      %689 = vst [vmem:[#allocation1] ss:$2 sm:$0xff] %v683
      %s690 = scalar_lea.vmem [#allocation1], 16
      %691 = vst [vmem:[%s690] ss:$2 sm:$0xff] %v684
      %v692 = vld.sshfl [vmem:[#allocation1] sm:$0xff pattern:$0x75316420]
      %v693 = vld.sshfl [vmem:[#allocation1 + $0x8] sm:$0xff pattern:$0x75316420]
      %v694 = vld.sshfl [vmem:[#allocation1 + $0x10] sm:$0xff pattern:$0x75316420]
      %695 = vrot.lane.b32.xlu0 %v692, 108
      %v696 = vpop.permute.xlu0 %695
      %697 = vrot.lane.b32.xlu0 %v693, 108
      %v698 = vpop.permute.xlu0 %697
      %699 = vrot.lane.b32.xlu0 %v694, 108
      %v700 = vpop.permute.xlu0 %699
      %vm701 = vcmask 883712
      %v702 = vsel %vm701, %v696, %v698
      %v703 = vsel %vm701, %v698, %v700
      %v705 = vsel %vm258, %v686, 0
      %v707 = vsel %vm262, %v702, 0
      %v709 = vsel %vm262, %v703, 0
      %v711 = vsel %vm262, %v700, 0
      %713 = vmatpush.msra.mxu0 0.0
      %714 = vmatpush.msra.mxu0 0.0
      %715 = vmatpush.msra.mxu0 0.0
      %716 = vmatpush.msra.mxu0 0.0
      %717 = vmatpush.msra.mxu0 0.0
      %718 = vmatpush.msra.mxu0 0.0
      %719 = vmatpush.msra.mxu0 0.0
      %720 = vmatpush.msra.mxu0 0.0
      %721 = vmatpush.msra.mxu0 0.0
      %722 = vmatpush.msra.mxu0 0.0
      %723 = vmatpush.msra.mxu0 0.0
      %724 = vmatpush.msra.mxu0 0.0
      %725 = vmatpush.msra.mxu0 0.0
      %726 = vmatpush.msra.mxu0 0.0
      %727 = vmatpush.msra.mxu0 0.0
      %728 = vmatpush.msra.mxu0 %v707
      %729 = vmatmul.f32.gmra.mxu0 %v705
      %v730 = vpop.f32.mrf.mxu0
      %v731 = vadd.f32 0.0, %v730
      %732 = vdwg.mxu0
      %733 = vmatpush.msra.mxu0 0.0
      %734 = vmatpush.msra.mxu0 0.0
      %735 = vmatpush.msra.mxu0 0.0
      %736 = vmatpush.msra.mxu0 0.0
      %737 = vmatpush.msra.mxu0 0.0
      %738 = vmatpush.msra.mxu0 0.0
      %739 = vmatpush.msra.mxu0 0.0
      %740 = vmatpush.msra.mxu0 0.0
      %741 = vmatpush.msra.mxu0 0.0
      %742 = vmatpush.msra.mxu0 0.0
      %743 = vmatpush.msra.mxu0 0.0
      %744 = vmatpush.msra.mxu0 0.0
      %745 = vmatpush.msra.mxu0 0.0
      %746 = vmatpush.msra.mxu0 0.0
      %747 = vmatpush.msra.mxu0 0.0
      %748 = vmatpush.msra.mxu0 %v709
      %749 = vmatmul.f32.gmra.mxu0 %v705
      %v750 = vpop.f32.mrf.mxu0
      %v751 = vadd.f32 0.0, %v750
      %752 = vdwg.mxu0
      %753 = vmatpush.msra.mxu0 0.0
      %754 = vmatpush.msra.mxu0 0.0
      %755 = vmatpush.msra.mxu0 0.0
      %756 = vmatpush.msra.mxu0 0.0
      %757 = vmatpush.msra.mxu0 0.0
      %758 = vmatpush.msra.mxu0 0.0
      %759 = vmatpush.msra.mxu0 0.0
      %760 = vmatpush.msra.mxu0 0.0
      %761 = vmatpush.msra.mxu0 0.0
      %762 = vmatpush.msra.mxu0 0.0
      %763 = vmatpush.msra.mxu0 0.0
      %764 = vmatpush.msra.mxu0 0.0
      %765 = vmatpush.msra.mxu0 0.0
      %766 = vmatpush.msra.mxu0 0.0
      %767 = vmatpush.msra.mxu0 0.0
      %768 = vmatpush.msra.mxu0 %v711
      %769 = vmatmul.f32.gmra.mxu0 %v705
      %v770 = vpop.f32.mrf.mxu0
      %v771 = vadd.f32 0.0, %v770
      %772 = vdwg.mxu0
      %v773 = vadd.f32 %v680, %v731
      %v774 = vadd.f32 %v681, %v751
      %v775 = vadd.f32 %v682, %v771
      %v776 = vld [vmem:[%s226] sm:$0xff]
      %v777 = vld [vmem:[%s226 + $0x8] sm:$0xf]
      %s778 = scalar_lea.vmem %s2, 24
      %v779 = vld [vmem:[%s778] sm:$0xf]
      %782 = vst [vmem:[#allocation1] ss:$2 sm:$0xff] %v776
      %s783 = scalar_lea.vmem [#allocation1], 16
      %784 = vst [vmem:[%s783] ss:$2 sm:$0xff] %v777
      %v785 = vld.sshfl [vmem:[#allocation1] sm:$0xff pattern:$0x75316420]
      %v786 = vld.sshfl [vmem:[#allocation1 + $0x8] sm:$0xff pattern:$0x75316420]
      %v787 = vld.sshfl [vmem:[#allocation1 + $0x10] sm:$0xff pattern:$0x75316420]
      %788 = vrot.lane.b32.xlu0 %v785, 92
      %v789 = vpop.permute.xlu0 %788
      %790 = vrot.lane.b32.xlu0 %v786, 92
      %v791 = vpop.permute.xlu0 %790
      %792 = vrot.lane.b32.xlu0 %v787, 92
      %v793 = vpop.permute.xlu0 %792
      %vm794 = vcmask 752640
      %v795 = vsel %vm794, %v789, %v791
      %v796 = vsel %vm794, %v791, %v793
      %v798 = vsel %vm258, %v779, 0
      %v800 = vsel %vm262, %v795, 0
      %v802 = vsel %vm262, %v796, 0
      %v804 = vsel %vm262, %v793, 0
      %806 = vmatpush.msra.mxu0 0.0
      %807 = vmatpush.msra.mxu0 0.0
      %808 = vmatpush.msra.mxu0 0.0
      %809 = vmatpush.msra.mxu0 0.0
      %810 = vmatpush.msra.mxu0 0.0
      %811 = vmatpush.msra.mxu0 0.0
      %812 = vmatpush.msra.mxu0 0.0
      %813 = vmatpush.msra.mxu0 0.0
      %814 = vmatpush.msra.mxu0 0.0
      %815 = vmatpush.msra.mxu0 0.0
      %816 = vmatpush.msra.mxu0 0.0
      %817 = vmatpush.msra.mxu0 0.0
      %818 = vmatpush.msra.mxu0 0.0
      %819 = vmatpush.msra.mxu0 0.0
      %820 = vmatpush.msra.mxu0 0.0
      %821 = vmatpush.msra.mxu0 %v800
      %822 = vmatmul.f32.gmra.mxu0 %v798
      %v823 = vpop.f32.mrf.mxu0
      %v824 = vadd.f32 0.0, %v823
      %825 = vdwg.mxu0
      %826 = vmatpush.msra.mxu0 0.0
      %827 = vmatpush.msra.mxu0 0.0
      %828 = vmatpush.msra.mxu0 0.0
      %829 = vmatpush.msra.mxu0 0.0
      %830 = vmatpush.msra.mxu0 0.0
      %831 = vmatpush.msra.mxu0 0.0
      %832 = vmatpush.msra.mxu0 0.0
      %833 = vmatpush.msra.mxu0 0.0
      %834 = vmatpush.msra.mxu0 0.0
      %835 = vmatpush.msra.mxu0 0.0
      %836 = vmatpush.msra.mxu0 0.0
      %837 = vmatpush.msra.mxu0 0.0
      %838 = vmatpush.msra.mxu0 0.0
      %839 = vmatpush.msra.mxu0 0.0
      %840 = vmatpush.msra.mxu0 0.0
      %841 = vmatpush.msra.mxu0 %v802
      %842 = vmatmul.f32.gmra.mxu0 %v798
      %v843 = vpop.f32.mrf.mxu0
      %v844 = vadd.f32 0.0, %v843
      %845 = vdwg.mxu0
      %846 = vmatpush.msra.mxu0 0.0
      %847 = vmatpush.msra.mxu0 0.0
      %848 = vmatpush.msra.mxu0 0.0
      %849 = vmatpush.msra.mxu0 0.0
      %850 = vmatpush.msra.mxu0 0.0
      %851 = vmatpush.msra.mxu0 0.0
      %852 = vmatpush.msra.mxu0 0.0
      %853 = vmatpush.msra.mxu0 0.0
      %854 = vmatpush.msra.mxu0 0.0
      %855 = vmatpush.msra.mxu0 0.0
      %856 = vmatpush.msra.mxu0 0.0
      %857 = vmatpush.msra.mxu0 0.0
      %858 = vmatpush.msra.mxu0 0.0
      %859 = vmatpush.msra.mxu0 0.0
      %860 = vmatpush.msra.mxu0 0.0
      %861 = vmatpush.msra.mxu0 %v804
      %862 = vmatmul.f32.gmra.mxu0 %v798
      %v863 = vpop.f32.mrf.mxu0
      %v864 = vadd.f32 0.0, %v863
      %865 = vdwg.mxu0
      %v866 = vadd.f32 %v773, %v824
      %v867 = vadd.f32 %v774, %v844
      %v868 = vadd.f32 %v775, %v864
      %v869 = vld [vmem:[%s226] sm:$0xff]
      %v870 = vld [vmem:[%s226 + $0x8] sm:$0xf]
      %s871 = scalar_lea.vmem %s2, 28
      %v872 = vld [vmem:[%s871] sm:$0xf]
      %875 = vst [vmem:[#allocation1] ss:$2 sm:$0xff] %v869
      %s876 = scalar_lea.vmem [#allocation1], 16
      %877 = vst [vmem:[%s876] ss:$2 sm:$0xff] %v870
      %v878 = vld.sshfl [vmem:[#allocation1] sm:$0xff pattern:$0x75316420]
      %v879 = vld.sshfl [vmem:[#allocation1 + $0x8] sm:$0xff pattern:$0x75316420]
      %v880 = vld.sshfl [vmem:[#allocation1 + $0x10] sm:$0xff pattern:$0x75316420]
      %881 = vrot.lane.b32.xlu0 %v878, 91
      %v882 = vpop.permute.xlu0 %881
      %883 = vrot.lane.b32.xlu0 %v879, 91
      %v884 = vpop.permute.xlu0 %883
      %885 = vrot.lane.b32.xlu0 %v880, 91
      %v886 = vpop.permute.xlu0 %885
      %vm887 = vcmask 744448
      %v888 = vsel %vm887, %v882, %v884
      %v889 = vsel %vm887, %v884, %v886
      %v891 = vsel %vm258, %v872, 0
      %v893 = vsel %vm262, %v888, 0
      %v895 = vsel %vm262, %v889, 0
      %v897 = vsel %vm262, %v886, 0
      %899 = vmatpush.msra.mxu0 0.0
      %900 = vmatpush.msra.mxu0 0.0
      %901 = vmatpush.msra.mxu0 0.0
      %902 = vmatpush.msra.mxu0 0.0
      %903 = vmatpush.msra.mxu0 0.0
      %904 = vmatpush.msra.mxu0 0.0
      %905 = vmatpush.msra.mxu0 0.0
      %906 = vmatpush.msra.mxu0 0.0
      %907 = vmatpush.msra.mxu0 0.0
      %908 = vmatpush.msra.mxu0 0.0
      %909 = vmatpush.msra.mxu0 0.0
      %910 = vmatpush.msra.mxu0 0.0
      %911 = vmatpush.msra.mxu0 0.0
      %912 = vmatpush.msra.mxu0 0.0
      %913 = vmatpush.msra.mxu0 0.0
      %914 = vmatpush.msra.mxu0 %v893
      %915 = vmatmul.f32.gmra.mxu0 %v891
      %v916 = vpop.f32.mrf.mxu0
      %v917 = vadd.f32 0.0, %v916
      %918 = vdwg.mxu0
      %919 = vmatpush.msra.mxu0 0.0
      %920 = vmatpush.msra.mxu0 0.0
      %921 = vmatpush.msra.mxu0 0.0
      %922 = vmatpush.msra.mxu0 0.0
      %923 = vmatpush.msra.mxu0 0.0
      %924 = vmatpush.msra.mxu0 0.0
      %925 = vmatpush.msra.mxu0 0.0
      %926 = vmatpush.msra.mxu0 0.0
      %927 = vmatpush.msra.mxu0 0.0
      %928 = vmatpush.msra.mxu0 0.0
      %929 = vmatpush.msra.mxu0 0.0
      %930 = vmatpush.msra.mxu0 0.0
      %931 = vmatpush.msra.mxu0 0.0
      %932 = vmatpush.msra.mxu0 0.0
      %933 = vmatpush.msra.mxu0 0.0
      %934 = vmatpush.msra.mxu0 %v895
      %935 = vmatmul.f32.gmra.mxu0 %v891
      %v936 = vpop.f32.mrf.mxu0
      %v937 = vadd.f32 0.0, %v936
      %938 = vdwg.mxu0
      %939 = vmatpush.msra.mxu0 0.0
      %940 = vmatpush.msra.mxu0 0.0
      %941 = vmatpush.msra.mxu0 0.0
      %942 = vmatpush.msra.mxu0 0.0
      %943 = vmatpush.msra.mxu0 0.0
      %944 = vmatpush.msra.mxu0 0.0
      %945 = vmatpush.msra.mxu0 0.0
      %946 = vmatpush.msra.mxu0 0.0
      %947 = vmatpush.msra.mxu0 0.0
      %948 = vmatpush.msra.mxu0 0.0
      %949 = vmatpush.msra.mxu0 0.0
      %950 = vmatpush.msra.mxu0 0.0
      %951 = vmatpush.msra.mxu0 0.0
      %952 = vmatpush.msra.mxu0 0.0
      %953 = vmatpush.msra.mxu0 0.0
      %954 = vmatpush.msra.mxu0 %v897
      %955 = vmatmul.f32.gmra.mxu0 %v891
      %v956 = vpop.f32.mrf.mxu0
      %v957 = vadd.f32 0.0, %v956
      %958 = vdwg.mxu0
      %v959 = vadd.f32 %v866, %v917
      %v960 = vadd.f32 %v867, %v937
      %v961 = vadd.f32 %v868, %v957
      %v962 = vld [vmem:[%s226] sm:$0xff]
      %v963 = vld [vmem:[%s226 + $0x8] sm:$0xf]
      %s964 = scalar_lea.vmem %s2, 32
      %v965 = vld [vmem:[%s964] sm:$0xf]
      %968 = vst [vmem:[#allocation1] ss:$2 sm:$0xff] %v962
      %s969 = scalar_lea.vmem [#allocation1], 16
      %970 = vst [vmem:[%s969] ss:$2 sm:$0xff] %v963
      %v971 = vld.sshfl [vmem:[#allocation1] sm:$0xff pattern:$0x75316420]
      %v972 = vld.sshfl [vmem:[#allocation1 + $0x8] sm:$0xff pattern:$0x75316420]
      %v973 = vld.sshfl [vmem:[#allocation1 + $0x10] sm:$0xff pattern:$0x75316420]
      %974 = vrot.lane.b32.xlu0 %v971, 90
      %v975 = vpop.permute.xlu0 %974
      %976 = vrot.lane.b32.xlu0 %v972, 90
      %v977 = vpop.permute.xlu0 %976
      %978 = vrot.lane.b32.xlu0 %v973, 90
      %v979 = vpop.permute.xlu0 %978
      %vm980 = vcmask 736256
      %v981 = vsel %vm980, %v975, %v977
      %v982 = vsel %vm980, %v977, %v979
      %v984 = vsel %vm258, %v965, 0
      %v986 = vsel %vm262, %v981, 0
      %v988 = vsel %vm262, %v982, 0
      %v990 = vsel %vm262, %v979, 0
      %992 = vmatpush.msra.mxu0 0.0
      %993 = vmatpush.msra.mxu0 0.0
      %994 = vmatpush.msra.mxu0 0.0
      %995 = vmatpush.msra.mxu0 0.0
      %996 = vmatpush.msra.mxu0 0.0
      %997 = vmatpush.msra.mxu0 0.0
      %998 = vmatpush.msra.mxu0 0.0
      %999 = vmatpush.msra.mxu0 0.0
      %1000 = vmatpush.msra.mxu0 0.0
      %1001 = vmatpush.msra.mxu0 0.0
      %1002 = vmatpush.msra.mxu0 0.0
      %1003 = vmatpush.msra.mxu0 0.0
      %1004 = vmatpush.msra.mxu0 0.0
      %1005 = vmatpush.msra.mxu0 0.0
      %1006 = vmatpush.msra.mxu0 0.0
      %1007 = vmatpush.msra.mxu0 %v986
      %1008 = vmatmul.f32.gmra.mxu0 %v984
      %v1009 = vpop.f32.mrf.mxu0
      %v1010 = vadd.f32 0.0, %v1009
      %1011 = vdwg.mxu0
      %1012 = vmatpush.msra.mxu0 0.0
      %1013 = vmatpush.msra.mxu0 0.0
      %1014 = vmatpush.msra.mxu0 0.0
      %1015 = vmatpush.msra.mxu0 0.0
      %1016 = vmatpush.msra.mxu0 0.0
      %1017 = vmatpush.msra.mxu0 0.0
      %1018 = vmatpush.msra.mxu0 0.0
      %1019 = vmatpush.msra.mxu0 0.0
      %1020 = vmatpush.msra.mxu0 0.0
      %1021 = vmatpush.msra.mxu0 0.0
      %1022 = vmatpush.msra.mxu0 0.0
      %1023 = vmatpush.msra.mxu0 0.0
      %1024 = vmatpush.msra.mxu0 0.0
      %1025 = vmatpush.msra.mxu0 0.0
      %1026 = vmatpush.msra.mxu0 0.0
      %1027 = vmatpush.msra.mxu0 %v988
      %1028 = vmatmul.f32.gmra.mxu0 %v984
      %v1029 = vpop.f32.mrf.mxu0
      %v1030 = vadd.f32 0.0, %v1029
      %1031 = vdwg.mxu0
      %1032 = vmatpush.msra.mxu0 0.0
      %1033 = vmatpush.msra.mxu0 0.0
      %1034 = vmatpush.msra.mxu0 0.0
      %1035 = vmatpush.msra.mxu0 0.0
      %1036 = vmatpush.msra.mxu0 0.0
      %1037 = vmatpush.msra.mxu0 0.0
      %1038 = vmatpush.msra.mxu0 0.0
      %1039 = vmatpush.msra.mxu0 0.0
      %1040 = vmatpush.msra.mxu0 0.0
      %1041 = vmatpush.msra.mxu0 0.0
      %1042 = vmatpush.msra.mxu0 0.0
      %1043 = vmatpush.msra.mxu0 0.0
      %1044 = vmatpush.msra.mxu0 0.0
      %1045 = vmatpush.msra.mxu0 0.0
      %1046 = vmatpush.msra.mxu0 0.0
      %1047 = vmatpush.msra.mxu0 %v990
      %1048 = vmatmul.f32.gmra.mxu0 %v984
      %v1049 = vpop.f32.mrf.mxu0
      %v1050 = vadd.f32 0.0, %v1049
      %1051 = vdwg.mxu0
      %v1052 = vadd.f32 %v959, %v1010
      %v1053 = vadd.f32 %v960, %v1030
      %v1054 = vadd.f32 %v961, %v1050
      %v1055 = vld [vmem:[%s3] sm:$0xf]
      %1057 = vset.pattern.permute.xlu0 0
      %1058 = vperm.xlu0 %1057, %v1055
      %v1059 = vpop.permute.xlu0 %1058
      %v1061 = vadd.f32 %v1052, %v1059
      %v1062 = vadd.f32 %v1053, %v1059
      %v1063 = vadd.f32 %v1054, %v1059
      %v1066 = vrot.slane %v1062, 4
      %v1067 = vsel %vm262, %v1061, %v1066
      %1069 = vst [vmem:[%s231] sm:$0xff] %v1067
      %vm1070 = vcmask 240640
      %1071 = vst.msk [vmem:[%s231 + $0x8] sm:$0xf] %vm1070, %v1063
      %v1072 = vld [vmem:[%s1] sm:$0x7]
      %v1074 = vperm.slane %v1072, 0
      %v1075 = vperm.slane %v1072, 1
      %v1076 = vperm.slane %v1072, 2
      %v1080 = vmul.f32 %v1061, %v1074
      %v1081 = vmul.f32 %v1062, %v1075
      %v1082 = vmul.f32 %v1063, %v1076
      %v1083 = vsel %vm262, %v1080, 0.0
      %v1084 = vsel %vm262, %v1081, 0.0
      %v1085 = vadd.f32 %v1083, %v1084
      %v1086 = vsel %vm1070, %v1082, 0.0
      %v1087 = vadd.f32 %v1085, %v1086
      %1088 = vadd.xlane.f32.xlu0 %v1087
      %v1089 = vpop.xlane.xlu0 %1088
      %vm1090 = vcmask 3072
      %1091 = vst.msk [vmem:[%s235] sm:$0xf] %vm1090, %v1089
      %v1092 = vmul.f32 %v1080, %v1061
      %v1093 = vmul.f32 %v1081, %v1062
      %v1094 = vmul.f32 %v1082, %v1063
      %v1095 = vsel %vm262, %v1092, 0.0
      %v1096 = vsel %vm262, %v1093, 0.0
      %v1097 = vadd.f32 %v1095, %v1096
      %v1098 = vsel %vm1070, %v1094, 0.0
      %v1099 = vadd.f32 %v1097, %v1098
      %1100 = vadd.xlane.f32.xlu0 %v1099
      %v1101 = vpop.xlane.xlu0 %1100
      %vm1102 = vcmask 11272
      %1103 = vst.msk [vmem:[%s235] sm:$0xf] %vm1102, %v1101
      %p1104 = scmp.lt.s32.totalorder %s17, 1
      %s1105 = scalar_select %p1104, %s17, 1
      %s1106 = smul.addr %s1105, 3
      %s1107 = smul.addr %s1106, 4
      %s1108 = scalar_lea.vmem %s4, %s1107
      %p1109 = scmp.lt.s32.totalorder %s17, 1
      %s1110 = scalar_select %p1109, %s17, 1
      %s1111 = smul.addr %s1110, 4
      %s1112 = scalar_lea.vmem %s5, %s1111
      // Predicated region
      $region37: #{residual_block_pallas.3} parent=35 // pred_check
        %p1113 = pneg %p124
      $region38: #{residual_block_pallas.3} parent=35 // pred_check_branch
        %1115 = sbr.rel (%p1113) target = $region40
      $region39: #{residual_block_pallas.3} parent=35 // pred_region
        _
      $region40: #{residual_block_pallas.3} parent=35 // pred_fallthru
        _
      // Predicated region
      $region41: #{residual_block_pallas.3} parent=35 // pred_check
        %p1116 = pneg %p150
      $region42: #{residual_block_pallas.3} parent=35 // pred_check_branch
        %1118 = sbr.rel (%p1116) target = $region44
      $region43: #{residual_block_pallas.3} parent=35 // pred_region
        _
      $region44: #{residual_block_pallas.3} parent=35 // pred_fallthru
        _
    $region36: #{residual_block_pallas.3} parent=5 // pred_fallthru
      _
    %p1119 = scmp.le.s32.totalorder 2, %s12
    // Predicated region
    $region45: #{residual_block_pallas.3} parent=5 // pred_check
      %p1120 = pneg %p1119
    $region46: #{residual_block_pallas.3} parent=5 // pred_check_branch
      %1122 = sbr.rel (%p1120) target = $region48
    $region47: #{residual_block_pallas.3} parent=5 // pred_region
      %s1123 = ssub.s32 %s12, 2
      // Predicated region
      $region49: #{residual_block_pallas.3} parent=47 // pred_check
        %p1124 = pneg %p130
      $region50: #{residual_block_pallas.3} parent=47 // pred_check_branch
        %1126 = sbr.rel (%p1124) target = $region52
      $region51: #{residual_block_pallas.3} parent=47 // pred_region
        %p1127 = scmp.lt.s32.totalorder %s18, 1
        %s1128 = scalar_select %p1127, %s18, 1
        %s1129 = smul.addr %s1128, 3
        %s1130 = smul.addr %s1129, 4
        %s1131 = scalar_lea.vmem %s4, %s1130
      $region52: #{residual_block_pallas.3} parent=47 // pred_fallthru
        _
      // Predicated region
      $region53: #{residual_block_pallas.3} parent=47 // pred_check
        %p1132 = pneg %p156
      $region54: #{residual_block_pallas.3} parent=47 // pred_check_branch
        %1134 = sbr.rel (%p1132) target = $region56
      $region55: #{residual_block_pallas.3} parent=47 // pred_region
        %p1135 = scmp.lt.s32.totalorder %s18, 1
        %s1136 = scalar_select %p1135, %s18, 1
        %s1137 = smul.addr %s1136, 4
        %s1138 = scalar_lea.vmem %s5, %s1137
      $region56: #{residual_block_pallas.3} parent=47 // pred_fallthru
        _
    $region48: #{residual_block_pallas.3} parent=5 // pred_fallthru
      _
  $region6: #{residual_block_pallas.3} parent=0 // loop_footer
    %s16 = sadd.s32 1, %s12
  $region7: #{residual_block_pallas.3} parent=0 // loop_footer_branch
    %11 = sbr.rel target = $region3
  $region8: #{residual_block_pallas.3} parent=0 // loop_exit
    _

// kernel: residual_block_pallas.4
$region0: #{residual_block_pallas.4}
  #allocation0 [shape = 'u32[]', space=smem, size = 0x4, offset = 0x4, fixed_abs, tag = 'smem constant byte address 0x4 - core index']
  #allocation1 [shape = 'u32[72,128]{1,0:T(1,128)}', space=vmem, size = 0x9000, scoped, tag = 'internal scratch']
  #allocation2 [shape = 'f32[4,324]{1,0:T(4,128)}', space=vmem, size = 0x1800, scoped, tag = 'scratch operand']
  %s0 = inlined_call_operand.vmem [shape: f32[2,4,286], index: 0, kind: input, shape index: {}]
  %s1 = inlined_call_operand.vmem [shape: f32[1,286], index: 1, kind: input, shape index: {}]
  %s2 = inlined_call_operand.vmem [shape: f32[4,1], index: 2, kind: input, shape index: {}]
  %s3 = inlined_call_operand.vmem [shape: f32[4,1], index: 3, kind: input, shape index: {}]
  %s4 = inlined_call_operand.vmem [shape: f32[9,4,4], index: 4, kind: input, shape index: {}]
  %s5 = inlined_call_operand.vmem [shape: f32[4,1], index: 5, kind: input, shape index: {}]
  %s6 = inlined_call_operand.vmem [shape: f32[2,4,286], index: 6, kind: output, shape index: {0}]
  %s7 = inlined_call_operand.vmem [shape: f32[2,4,2], index: 7, kind: output, shape index: {1}]
  %8 = xla_tuple %s6, %s7
  %s9 = sld [smem:[#allocation0]]
  $region65: #{residual_block_pallas.4} parent=0
    _
  %s11 = ssub.s32 1, %s9
  %s12 = scalar_select 0, %s11, %s9
  loop: start=0, step=1, limit=4
  $region2: #{residual_block_pallas.4} parent=0 // loop_pre_header
    _
  $region3: #{residual_block_pallas.4} parent=0 // loop_header
    %s14 = sphi 0, %s18
    %p15 = scmp.ge.s32.totalorder %s14, 4
    %s24 = sphi 0, %s26
    %s27 = sphi 0, %s24
    %s28 = sphi 0, %s27
    %s44 = sphi 0, %s28
    %s48 = sphi 0, %s48
    %s50 = sphi 0, %s48
    %s51 = sphi 0, %s50
    %s65 = sphi 0, %s51
    %s69 = sphi 0, %s69
    %s71 = sphi 0, %s69
    %s72 = sphi 0, %s71
    %s86 = sphi 0, %s72
    %s90 = sphi 0, %s90
    %s92 = sphi 0, %s90
    %s93 = sphi 0, %s92
    %s107 = sphi 0, %s93
    %s111 = sphi 0, %s111
    %s113 = sphi 0, %s111
    %s114 = sphi 0, %s113
    %s128 = sphi 0, %s114
    %s132 = sphi 0, %s132
    %s134 = sphi 0, %s132
    %s135 = sphi 0, %s134
    %s149 = sphi 0, %s135
    %s155 = sphi 0, %s157
    %s158 = sphi 0, %s155
    %s159 = sphi 0, %s158
    %s175 = sphi 0, %s159
    %s181 = sphi 0, %s183
    %s184 = sphi 0, %s181
    %s185 = sphi 0, %s184
    %s201 = sphi 0, %s185
  $region4: #{residual_block_pallas.4} parent=0 // loop_header_branch
    %17 = sbr.rel (%p15) target = $region8
  $region5: #{residual_block_pallas.4} parent=0 // loop_body
    %s19 = ssub.s32 %s14, 1
    %s20 = ssub.s32 %s14, 2
    %s21 = sadd.s32 %s14, 1
    %s22 = ssub.s32 %s14, %s21
    %p23 = scmp.eq.s32.totalorder %s22, 0
    %s25 = sadd.s32 %s24, 1
    %s26 = scalar_select %p23, %s24, %s25
    %p29 = pneg %p23
    %p30 = scmp.eq.s32.totalorder %s14, 1
    %p31 = por %p29, %p30
    %p32 = scmp.ne.s32.totalorder %s24, %s27
    %p33 = scmp.eq.s32.totalorder %s14, 0
    %p34 = por %p32, %p33
    %p35 = scmp.ne.s32.totalorder %s24, %s27
    %p36 = scmp.eq.s32.totalorder %s19, 1
    %p37 = por %p35, %p36
    %p38 = scmp.ne.s32.totalorder %s27, %s28
    %p39 = scmp.eq.s32.totalorder %s19, 0
    %p40 = por %p38, %p39
    %p41 = scmp.ne.s32.totalorder %s27, %s28
    %p42 = scmp.eq.s32.totalorder %s20, 1
    %p43 = por %p41, %p42
    %p45 = scmp.ne.s32.totalorder %s28, %s44
    %p46 = scmp.eq.s32.totalorder %s20, 0
    %p47 = por %p45, %p46
    %s49 = sadd.s32 %s48, 1
    %p52 = scmp.eq.s32.totalorder %s14, 1
    %p53 = scmp.ne.s32.totalorder %s48, %s50
    %p54 = scmp.eq.s32.totalorder %s14, 0
    %p55 = por %p53, %p54
    %p56 = scmp.ne.s32.totalorder %s48, %s50
    %p57 = scmp.eq.s32.totalorder %s19, 1
    %p58 = por %p56, %p57
    %p59 = scmp.ne.s32.totalorder %s50, %s51
    %p60 = scmp.eq.s32.totalorder %s19, 0
    %p61 = por %p59, %p60
    %p62 = scmp.ne.s32.totalorder %s50, %s51
    %p63 = scmp.eq.s32.totalorder %s20, 1
    %p64 = por %p62, %p63
    %p66 = scmp.ne.s32.totalorder %s51, %s65
    %p67 = scmp.eq.s32.totalorder %s20, 0
    %p68 = por %p66, %p67
    %s70 = sadd.s32 %s69, 1
    %p73 = scmp.eq.s32.totalorder %s14, 1
    %p74 = scmp.ne.s32.totalorder %s69, %s71
    %p75 = scmp.eq.s32.totalorder %s14, 0
    %p76 = por %p74, %p75
    %p77 = scmp.ne.s32.totalorder %s69, %s71
    %p78 = scmp.eq.s32.totalorder %s19, 1
    %p79 = por %p77, %p78
    %p80 = scmp.ne.s32.totalorder %s71, %s72
    %p81 = scmp.eq.s32.totalorder %s19, 0
    %p82 = por %p80, %p81
    %p83 = scmp.ne.s32.totalorder %s71, %s72
    %p84 = scmp.eq.s32.totalorder %s20, 1
    %p85 = por %p83, %p84
    %p87 = scmp.ne.s32.totalorder %s72, %s86
    %p88 = scmp.eq.s32.totalorder %s20, 0
    %p89 = por %p87, %p88
    %s91 = sadd.s32 %s90, 1
    %p94 = scmp.eq.s32.totalorder %s14, 1
    %p95 = scmp.ne.s32.totalorder %s90, %s92
    %p96 = scmp.eq.s32.totalorder %s14, 0
    %p97 = por %p95, %p96
    %p98 = scmp.ne.s32.totalorder %s90, %s92
    %p99 = scmp.eq.s32.totalorder %s19, 1
    %p100 = por %p98, %p99
    %p101 = scmp.ne.s32.totalorder %s92, %s93
    %p102 = scmp.eq.s32.totalorder %s19, 0
    %p103 = por %p101, %p102
    %p104 = scmp.ne.s32.totalorder %s92, %s93
    %p105 = scmp.eq.s32.totalorder %s20, 1
    %p106 = por %p104, %p105
    %p108 = scmp.ne.s32.totalorder %s93, %s107
    %p109 = scmp.eq.s32.totalorder %s20, 0
    %p110 = por %p108, %p109
    %s112 = sadd.s32 %s111, 1
    %p115 = scmp.eq.s32.totalorder %s14, 1
    %p116 = scmp.ne.s32.totalorder %s111, %s113
    %p117 = scmp.eq.s32.totalorder %s14, 0
    %p118 = por %p116, %p117
    %p119 = scmp.ne.s32.totalorder %s111, %s113
    %p120 = scmp.eq.s32.totalorder %s19, 1
    %p121 = por %p119, %p120
    %p122 = scmp.ne.s32.totalorder %s113, %s114
    %p123 = scmp.eq.s32.totalorder %s19, 0
    %p124 = por %p122, %p123
    %p125 = scmp.ne.s32.totalorder %s113, %s114
    %p126 = scmp.eq.s32.totalorder %s20, 1
    %p127 = por %p125, %p126
    %p129 = scmp.ne.s32.totalorder %s114, %s128
    %p130 = scmp.eq.s32.totalorder %s20, 0
    %p131 = por %p129, %p130
    %s133 = sadd.s32 %s132, 1
    %p136 = scmp.eq.s32.totalorder %s14, 1
    %p137 = scmp.ne.s32.totalorder %s132, %s134
    %p138 = scmp.eq.s32.totalorder %s14, 0
    %p139 = por %p137, %p138
    %p140 = scmp.ne.s32.totalorder %s132, %s134
    %p141 = scmp.eq.s32.totalorder %s19, 1
    %p142 = por %p140, %p141
    %p143 = scmp.ne.s32.totalorder %s134, %s135
    %p144 = scmp.eq.s32.totalorder %s19, 0
    %p145 = por %p143, %p144
    %p146 = scmp.ne.s32.totalorder %s134, %s135
    %p147 = scmp.eq.s32.totalorder %s20, 1
    %p148 = por %p146, %p147
    %p150 = scmp.ne.s32.totalorder %s135, %s149
    %p151 = scmp.eq.s32.totalorder %s20, 0
    %p152 = por %p150, %p151
    %s153 = ssub.s32 %s14, %s21
    %p154 = scmp.eq.s32.totalorder %s153, 0
    %s156 = sadd.s32 %s155, 1
    %s157 = scalar_select %p154, %s155, %s156
    %p160 = pneg %p154
    %p161 = scmp.eq.s32.totalorder %s14, 1
    %p162 = por %p160, %p161
    %p163 = scmp.ne.s32.totalorder %s155, %s158
    %p164 = scmp.eq.s32.totalorder %s14, 0
    %p165 = por %p163, %p164
    %p166 = scmp.ne.s32.totalorder %s155, %s158
    %p167 = scmp.eq.s32.totalorder %s19, 1
    %p168 = por %p166, %p167
    %p169 = scmp.ne.s32.totalorder %s158, %s159
    %p170 = scmp.eq.s32.totalorder %s19, 0
    %p171 = por %p169, %p170
    %p172 = scmp.ne.s32.totalorder %s158, %s159
    %p173 = scmp.eq.s32.totalorder %s20, 1
    %p174 = por %p172, %p173
    %p176 = scmp.ne.s32.totalorder %s159, %s175
    %p177 = scmp.eq.s32.totalorder %s20, 0
    %p178 = por %p176, %p177
    %s179 = ssub.s32 %s14, %s21
    %p180 = scmp.eq.s32.totalorder %s179, 0
    %s182 = sadd.s32 %s181, 1
    %s183 = scalar_select %p180, %s181, %s182
    %p186 = pneg %p180
    %p187 = scmp.eq.s32.totalorder %s14, 1
    %p188 = por %p186, %p187
    %p189 = scmp.ne.s32.totalorder %s181, %s184
    %p190 = scmp.eq.s32.totalorder %s14, 0
    %p191 = por %p189, %p190
    %p192 = scmp.ne.s32.totalorder %s181, %s184
    %p193 = scmp.eq.s32.totalorder %s19, 1
    %p194 = por %p192, %p193
    %p195 = scmp.ne.s32.totalorder %s184, %s185
    %p196 = scmp.eq.s32.totalorder %s19, 0
    %p197 = por %p195, %p196
    %p198 = scmp.ne.s32.totalorder %s184, %s185
    %p199 = scmp.eq.s32.totalorder %s20, 1
    %p200 = por %p198, %p199
    %p202 = scmp.ne.s32.totalorder %s185, %s201
    %p203 = scmp.eq.s32.totalorder %s20, 0
    %p204 = por %p202, %p203
    %p205 = scmp.le.s32.totalorder 1, %s14
    %p206 = scmp.lt.s32.totalorder %s14, 3
    %p207 = pnand %p205, %p206
    %p208 = pneg %p207
    // Predicated region
    $region9: #{residual_block_pallas.4} parent=5 // pred_check
      _
    $region10: #{residual_block_pallas.4} parent=5 // pred_check_branch
      %210 = sbr.rel (%p207) target = $region12
    $region11: #{residual_block_pallas.4} parent=5 // pred_region
      %s211 = ssub.s32 %s14, 1
      // Predicated region
      $region13: #{residual_block_pallas.4} parent=11 // pred_check
        %p212 = pneg %p61
      $region14: #{residual_block_pallas.4} parent=11 // pred_check_branch
        %214 = sbr.rel (%p212) target = $region16
      $region15: #{residual_block_pallas.4} parent=11 // pred_region
        _
      $region16: #{residual_block_pallas.4} parent=11 // pred_fallthru
        _
      // Predicated region
      $region17: #{residual_block_pallas.4} parent=11 // pred_check
        %p215 = pneg %p82
      $region18: #{residual_block_pallas.4} parent=11 // pred_check_branch
        %217 = sbr.rel (%p215) target = $region20
      $region19: #{residual_block_pallas.4} parent=11 // pred_region
        _
      $region20: #{residual_block_pallas.4} parent=11 // pred_fallthru
        _
      // Predicated region
      $region21: #{residual_block_pallas.4} parent=11 // pred_check
        %p218 = pneg %p103
      $region22: #{residual_block_pallas.4} parent=11 // pred_check_branch
        %220 = sbr.rel (%p218) target = $region24
      $region23: #{residual_block_pallas.4} parent=11 // pred_region
        _
      $region24: #{residual_block_pallas.4} parent=11 // pred_fallthru
        _
      // Predicated region
      $region25: #{residual_block_pallas.4} parent=11 // pred_check
        %p221 = pneg %p124
      $region26: #{residual_block_pallas.4} parent=11 // pred_check_branch
        %223 = sbr.rel (%p221) target = $region28
      $region27: #{residual_block_pallas.4} parent=11 // pred_region
        _
      $region28: #{residual_block_pallas.4} parent=11 // pred_fallthru
        _
      // Predicated region
      $region29: #{residual_block_pallas.4} parent=11 // pred_check
        %p224 = pneg %p145
      $region30: #{residual_block_pallas.4} parent=11 // pred_check_branch
        %226 = sbr.rel (%p224) target = $region32
      $region31: #{residual_block_pallas.4} parent=11 // pred_region
        _
      $region32: #{residual_block_pallas.4} parent=11 // pred_fallthru
        _
    $region12: #{residual_block_pallas.4} parent=5 // pred_fallthru
      _
    %p227 = scmp.lt.s32.totalorder %s14, 2
    // Predicated region
    $region33: #{residual_block_pallas.4} parent=5 // pred_check
      %p228 = pneg %p227
    $region34: #{residual_block_pallas.4} parent=5 // pred_check_branch
      %230 = sbr.rel (%p228) target = $region36
    $region35: #{residual_block_pallas.4} parent=5 // pred_region
      // Predicated region
      $region37: #{residual_block_pallas.4} parent=35 // pred_check
        %p231 = pneg %p34
      $region38: #{residual_block_pallas.4} parent=35 // pred_check_branch
        %233 = sbr.rel (%p231) target = $region40
      $region39: #{residual_block_pallas.4} parent=35 // pred_region
        %p234 = scmp.lt.s32.totalorder %s14, 1
        %s235 = scalar_select %p234, %s14, 1
        %s236 = smul.addr %s235, 3
        %s237 = smul.addr %s236, 4
        %s238 = scalar_lea.vmem %s0, %s237
      $region40: #{residual_block_pallas.4} parent=35 // pred_fallthru
        _
    $region36: #{residual_block_pallas.4} parent=5 // pred_fallthru
      _
    %p239 = scmp.le.s32.totalorder 1, %s14
    %p240 = scmp.lt.s32.totalorder %s14, 3
    %p241 = pnand %p239, %p240
    %p242 = pneg %p241
    // Predicated region
    $region41: #{residual_block_pallas.4} parent=5 // pred_check
      _
    $region42: #{residual_block_pallas.4} parent=5 // pred_check_branch
      %244 = sbr.rel (%p241) target = $region44
    $region43: #{residual_block_pallas.4} parent=5 // pred_region
      %s245 = ssub.s32 %s14, 1
      %p246 = scmp.lt.s32.totalorder %s19, 1
      %s247 = scalar_select %p246, %s19, 1
      %s248 = smul.addr %s247, 3
      %s249 = smul.addr %s248, 4
      %s250 = scalar_lea.vmem %s0, %s249
      %p251 = pneg %p40
      %p252 = pneg %p37
      %p253 = pneg %p61
      %p254 = pneg %p58
      %p255 = pneg %p82
      %p256 = pneg %p79
      %p257 = pneg %p103
      %p258 = pneg %p100
      %p259 = pneg %p124
      %p260 = pneg %p121
      %p261 = pneg %p145
      %p262 = pneg %p142
      %p263 = pneg %p171
      %p264 = pneg %p168
      %p265 = scmp.lt.s32.totalorder %s19, 1
      %s266 = scalar_select %p265, %s19, 1
      %s267 = smul.addr %s266, 3
      %s268 = smul.addr %s267, 4
      %s269 = scalar_lea.vmem %s6, %s268
      %p270 = pneg %p197
      %p271 = pneg %p194
      %p272 = scmp.lt.s32.totalorder %s19, 1
      %s273 = scalar_select %p272, %s19, 1
      %s274 = smul.addr %s273, 4
      %s275 = scalar_lea.vmem %s7, %s274
      %p276 = scmp.lt.s32.totalorder %s19, 1
      %s277 = scalar_select %p276, %s19, 1
      %s278 = smul.addr %s277, 3
      %s279 = smul.addr %s278, 4
      %s280 = scalar_lea.vmem %s0, %s279
      %p281 = scmp.lt.s32.totalorder %s19, 1
      %s282 = scalar_select %p281, %s19, 1
      %s283 = smul.addr %s282, 3
      %s284 = smul.addr %s283, 4
      %s285 = scalar_lea.vmem %s6, %s284
      %p286 = scmp.lt.s32.totalorder %s19, 1
      %s287 = scalar_select %p286, %s19, 1
      %s288 = smul.addr %s287, 4
      %s289 = scalar_lea.vmem %s7, %s288
      %v290 = vld [vmem:[%s1] sm:$0x7]
      %v291 = vld [vmem:[%s280] sm:$0xff]
      %v292 = vld [vmem:[%s280 + $0x8] sm:$0xf]
      %v293 = vld [vmem:[%s2] sm:$0xf]
      %295 = vset.pattern.permute.xlu0 0
      %296 = vperm.xlu0 %295, %v293
      %v297 = vpop.permute.xlu0 %296
      %v299 = vunpack.c.l.s4 839922192
      %v300 = vunpack.c.0.s8 %v299
      %v301 = vperm.slane %v297, %v300
      %v303 = vmul.f32 %v291, %v301
      %v304 = vmul.f32 %v292, %v301
      %v305 = vld [vmem:[%s3] sm:$0xf]
      %307 = vset.pattern.permute.xlu0 0
      %308 = vperm.xlu0 %307, %v305
      %v309 = vpop.permute.xlu0 %308
      %v311 = vunpack.c.l.s4 839922192
      %v312 = vunpack.c.0.s8 %v311
      %v313 = vperm.slane %v309, %v312
      %v315 = vadd.f32 %v303, %v313
      %v316 = vadd.f32 %v304, %v313
      %v317 = vmax.f32 %v315, 0.0
      %v318 = vmax.f32 %v316, 0.0
      %v320 = vperm.slane %v290, 0
      %v321 = vperm.slane %v290, 1
      %v322 = vperm.slane %v290, 2
      %v326 = vrot.slane %v321, 4
      %vm327 = vcmask 1043456
      %v328 = vsel %vm327, %v320, %v326
      %v330 = vmul.f32 %v317, %v328
      %v331 = vmul.f32 %v318, %v322
      %vm332 = vcmask 150528
      %333 = vst.msk [vmem:[#allocation2] sm:$0xf] %vm332, 0.0
      %336 = vrot.lane.b32.xlu0 %v330, 19
      %v337 = vpop.permute.xlu0 %336
      %338 = vrot.lane.b32.xlu0 %v331, 19
      %v339 = vpop.permute.xlu0 %338
      %v340 = vrot.slane %v337, 4
      %vm341 = vcmask 154624
      %v342 = vsel %vm341, %v340, %v337
      %v343 = vsel %vm341, %v340, %v339
      %vm346 = vcmask 1043608
      %vm347 = vcmask 1047556
      %vm348 = vmor %vm347, %vm346
      %349 = vst.msk [vmem:[#allocation2] sm:$0xff] %vm348, %v342
      %vm350 = vcmask 396288
      %351 = vst.msk [vmem:[#allocation2 + $0x8] sm:$0xf] %vm350, %v343
      %vm352 = vcmask 552328
      %353 = vst.msk [vmem:[#allocation2 + $0x8] sm:$0xf] %vm352, 0.0
      %v354 = vld [vmem:[#allocation2] sm:$0xff]
      %v355 = vld [vmem:[#allocation2 + $0x8] sm:$0xf]
      %v356 = vld [vmem:[%s4] sm:$0xf]
      %s357 = scalar_lea.vmem %s4, 4
      %v358 = vld [vmem:[%s357] sm:$0xf]
      %361 = vst [vmem:[#allocation1] ss:$2 sm:$0xff] %v354
      %s362 = scalar_lea.vmem [#allocation1], 16
      %363 = vst [vmem:[%s362] ss:$2 sm:$0xff] %v355
      %v364 = vld.sshfl [vmem:[#allocation1] sm:$0xff pattern:$0x75316420]
      %v365 = vld.sshfl [vmem:[#allocation1 + $0x8] sm:$0xff pattern:$0x75316420]
      %v366 = vld.sshfl [vmem:[#allocation1 + $0x10] sm:$0xff pattern:$0x75316420]
      %367 = vrot.lane.b32.xlu0 %v364, 127
      %v368 = vpop.permute.xlu0 %367
      %369 = vrot.lane.b32.xlu0 %v365, 127
      %v370 = vpop.permute.xlu0 %369
      %371 = vrot.lane.b32.xlu0 %v366, 127
      %v372 = vpop.permute.xlu0 %371
      %vm373 = vcmask 1039360
      %v374 = vsel %vm373, %v368, %v370
      %v375 = vsel %vm373, %v370, %v372
      %vm376 = vcmask 31744
      %v378 = vsel %vm376, %v358, 0
      %v380 = vsel %vm327, %v374, 0
      %v382 = vsel %vm327, %v375, 0
      %v384 = vsel %vm327, %v372, 0
      %386 = vmatpush.msra.mxu0 0.0
      %387 = vmatpush.msra.mxu0 0.0
      %388 = vmatpush.msra.mxu0 0.0
      %389 = vmatpush.msra.mxu0 0.0
      %390 = vmatpush.msra.mxu0 0.0
      %391 = vmatpush.msra.mxu0 0.0
      %392 = vmatpush.msra.mxu0 0.0
      %393 = vmatpush.msra.mxu0 0.0
      %394 = vmatpush.msra.mxu0 0.0
      %395 = vmatpush.msra.mxu0 0.0
      %396 = vmatpush.msra.mxu0 0.0
      %397 = vmatpush.msra.mxu0 0.0
      %398 = vmatpush.msra.mxu0 0.0
      %399 = vmatpush.msra.mxu0 0.0
      %400 = vmatpush.msra.mxu0 0.0
      %401 = vmatpush.msra.mxu0 %v380
      %402 = vmatmul.f32.gmra.mxu0 %v378
      %v403 = vpop.f32.mrf.mxu0
      %v404 = vadd.f32 0.0, %v403
      %405 = vdwg.mxu0
      %406 = vmatpush.msra.mxu0 0.0
      %407 = vmatpush.msra.mxu0 0.0
      %408 = vmatpush.msra.mxu0 0.0
      %409 = vmatpush.msra.mxu0 0.0
      %410 = vmatpush.msra.mxu0 0.0
      %411 = vmatpush.msra.mxu0 0.0
      %412 = vmatpush.msra.mxu0 0.0
      %413 = vmatpush.msra.mxu0 0.0
      %414 = vmatpush.msra.mxu0 0.0
      %415 = vmatpush.msra.mxu0 0.0
      %416 = vmatpush.msra.mxu0 0.0
      %417 = vmatpush.msra.mxu0 0.0
      %418 = vmatpush.msra.mxu0 0.0
      %419 = vmatpush.msra.mxu0 0.0
      %420 = vmatpush.msra.mxu0 0.0
      %421 = vmatpush.msra.mxu0 %v382
      %422 = vmatmul.f32.gmra.mxu0 %v378
      %v423 = vpop.f32.mrf.mxu0
      %v424 = vadd.f32 0.0, %v423
      %425 = vdwg.mxu0
      %426 = vmatpush.msra.mxu0 0.0
      %427 = vmatpush.msra.mxu0 0.0
      %428 = vmatpush.msra.mxu0 0.0
      %429 = vmatpush.msra.mxu0 0.0
      %430 = vmatpush.msra.mxu0 0.0
      %431 = vmatpush.msra.mxu0 0.0
      %432 = vmatpush.msra.mxu0 0.0
      %433 = vmatpush.msra.mxu0 0.0
      %434 = vmatpush.msra.mxu0 0.0
      %435 = vmatpush.msra.mxu0 0.0
      %436 = vmatpush.msra.mxu0 0.0
      %437 = vmatpush.msra.mxu0 0.0
      %438 = vmatpush.msra.mxu0 0.0
      %439 = vmatpush.msra.mxu0 0.0
      %440 = vmatpush.msra.mxu0 0.0
      %441 = vmatpush.msra.mxu0 %v384
      %442 = vmatmul.f32.gmra.mxu0 %v378
      %v443 = vpop.f32.mrf.mxu0
      %v444 = vadd.f32 0.0, %v443
      %445 = vdwg.mxu0
      %446 = vst [vmem:[#allocation1] ss:$2 sm:$0xff] %v354
      %s447 = scalar_lea.vmem [#allocation1], 16
      %448 = vst [vmem:[%s447] ss:$2 sm:$0xff] %v355
      %v449 = vld.sshfl [vmem:[#allocation1] sm:$0xff pattern:$0x75316420]
      %v450 = vld.sshfl [vmem:[#allocation1 + $0x8] sm:$0xff pattern:$0x75316420]
      %v451 = vld.sshfl [vmem:[#allocation1 + $0x10] sm:$0xff pattern:$0x75316420]
      %v453 = vsel %vm376, %v356, 0
      %v455 = vsel %vm327, %v449, 0
      %v457 = vsel %vm327, %v450, 0
      %v459 = vsel %vm327, %v451, 0
      %461 = vmatpush.msra.mxu0 0.0
      %462 = vmatpush.msra.mxu0 0.0
      %463 = vmatpush.msra.mxu0 0.0
      %464 = vmatpush.msra.mxu0 0.0
      %465 = vmatpush.msra.mxu0 0.0
      %466 = vmatpush.msra.mxu0 0.0
      %467 = vmatpush.msra.mxu0 0.0
      %468 = vmatpush.msra.mxu0 0.0
      %469 = vmatpush.msra.mxu0 0.0
      %470 = vmatpush.msra.mxu0 0.0
      %471 = vmatpush.msra.mxu0 0.0
      %472 = vmatpush.msra.mxu0 0.0
      %473 = vmatpush.msra.mxu0 0.0
      %474 = vmatpush.msra.mxu0 0.0
      %475 = vmatpush.msra.mxu0 0.0
      %476 = vmatpush.msra.mxu0 %v455
      %477 = vmatmul.f32.gmra.mxu0 %v453
      %v478 = vpop.f32.mrf.mxu0
      %v479 = vadd.f32 %v404, %v478
      %480 = vdwg.mxu0
      %481 = vmatpush.msra.mxu0 0.0
      %482 = vmatpush.msra.mxu0 0.0
      %483 = vmatpush.msra.mxu0 0.0
      %484 = vmatpush.msra.mxu0 0.0
      %485 = vmatpush.msra.mxu0 0.0
      %486 = vmatpush.msra.mxu0 0.0
      %487 = vmatpush.msra.mxu0 0.0
      %488 = vmatpush.msra.mxu0 0.0
      %489 = vmatpush.msra.mxu0 0.0
      %490 = vmatpush.msra.mxu0 0.0
      %491 = vmatpush.msra.mxu0 0.0
      %492 = vmatpush.msra.mxu0 0.0
      %493 = vmatpush.msra.mxu0 0.0
      %494 = vmatpush.msra.mxu0 0.0
      %495 = vmatpush.msra.mxu0 0.0
      %496 = vmatpush.msra.mxu0 %v457
      %497 = vmatmul.f32.gmra.mxu0 %v453
      %v498 = vpop.f32.mrf.mxu0
      %v499 = vadd.f32 %v424, %v498
      %500 = vdwg.mxu0
      %501 = vmatpush.msra.mxu0 0.0
      %502 = vmatpush.msra.mxu0 0.0
      %503 = vmatpush.msra.mxu0 0.0
      %504 = vmatpush.msra.mxu0 0.0
      %505 = vmatpush.msra.mxu0 0.0
      %506 = vmatpush.msra.mxu0 0.0
      %507 = vmatpush.msra.mxu0 0.0
      %508 = vmatpush.msra.mxu0 0.0
      %509 = vmatpush.msra.mxu0 0.0
      %510 = vmatpush.msra.mxu0 0.0
      %511 = vmatpush.msra.mxu0 0.0
      %512 = vmatpush.msra.mxu0 0.0
      %513 = vmatpush.msra.mxu0 0.0
      %514 = vmatpush.msra.mxu0 0.0
      %515 = vmatpush.msra.mxu0 0.0
      %516 = vmatpush.msra.mxu0 %v459
      %517 = vmatmul.f32.gmra.mxu0 %v453
      %v518 = vpop.f32.mrf.mxu0
      %v519 = vadd.f32 %v444, %v518
      %520 = vdwg.mxu0
      %v521 = vld [vmem:[#allocation2] sm:$0xff]
      %v522 = vld [vmem:[#allocation2 + $0x8] sm:$0xf]
      %s523 = scalar_lea.vmem %s4, 8
      %v524 = vld [vmem:[%s523] sm:$0xf]
      %527 = vst [vmem:[#allocation1] ss:$2 sm:$0xff] %v521
      %s528 = scalar_lea.vmem [#allocation1], 16
      %529 = vst [vmem:[%s528] ss:$2 sm:$0xff] %v522
      %v530 = vld.sshfl [vmem:[#allocation1] sm:$0xff pattern:$0x75316420]
      %v531 = vld.sshfl [vmem:[#allocation1 + $0x8] sm:$0xff pattern:$0x75316420]
      %v532 = vld.sshfl [vmem:[#allocation1 + $0x10] sm:$0xff pattern:$0x75316420]
      %533 = vrot.lane.b32.xlu0 %v530, 126
      %v534 = vpop.permute.xlu0 %533
      %535 = vrot.lane.b32.xlu0 %v531, 126
      %v536 = vpop.permute.xlu0 %535
      %537 = vrot.lane.b32.xlu0 %v532, 126
      %v538 = vpop.permute.xlu0 %537
      %vm539 = vcmask 1031168
      %v540 = vsel %vm539, %v534, %v536
      %v541 = vsel %vm539, %v536, %v538
      %v543 = vsel %vm376, %v524, 0
      %v545 = vsel %vm327, %v540, 0
      %v547 = vsel %vm327, %v541, 0
      %v549 = vsel %vm327, %v538, 0
      %551 = vmatpush.msra.mxu0 0.0
      %552 = vmatpush.msra.mxu0 0.0
      %553 = vmatpush.msra.mxu0 0.0
      %554 = vmatpush.msra.mxu0 0.0
      %555 = vmatpush.msra.mxu0 0.0
      %556 = vmatpush.msra.mxu0 0.0
      %557 = vmatpush.msra.mxu0 0.0
      %558 = vmatpush.msra.mxu0 0.0
      %559 = vmatpush.msra.mxu0 0.0
      %560 = vmatpush.msra.mxu0 0.0
      %561 = vmatpush.msra.mxu0 0.0
      %562 = vmatpush.msra.mxu0 0.0
      %563 = vmatpush.msra.mxu0 0.0
      %564 = vmatpush.msra.mxu0 0.0
      %565 = vmatpush.msra.mxu0 0.0
      %566 = vmatpush.msra.mxu0 %v545
      %567 = vmatmul.f32.gmra.mxu0 %v543
      %v568 = vpop.f32.mrf.mxu0
      %v569 = vadd.f32 0.0, %v568
      %570 = vdwg.mxu0
      %571 = vmatpush.msra.mxu0 0.0
      %572 = vmatpush.msra.mxu0 0.0
      %573 = vmatpush.msra.mxu0 0.0
      %574 = vmatpush.msra.mxu0 0.0
      %575 = vmatpush.msra.mxu0 0.0
      %576 = vmatpush.msra.mxu0 0.0
      %577 = vmatpush.msra.mxu0 0.0
      %578 = vmatpush.msra.mxu0 0.0
      %579 = vmatpush.msra.mxu0 0.0
      %580 = vmatpush.msra.mxu0 0.0
      %581 = vmatpush.msra.mxu0 0.0
      %582 = vmatpush.msra.mxu0 0.0
      %583 = vmatpush.msra.mxu0 0.0
      %584 = vmatpush.msra.mxu0 0.0
      %585 = vmatpush.msra.mxu0 0.0
      %586 = vmatpush.msra.mxu0 %v547
      %587 = vmatmul.f32.gmra.mxu0 %v543
      %v588 = vpop.f32.mrf.mxu0
      %v589 = vadd.f32 0.0, %v588
      %590 = vdwg.mxu0
      %591 = vmatpush.msra.mxu0 0.0
      %592 = vmatpush.msra.mxu0 0.0
      %593 = vmatpush.msra.mxu0 0.0
      %594 = vmatpush.msra.mxu0 0.0
      %595 = vmatpush.msra.mxu0 0.0
      %596 = vmatpush.msra.mxu0 0.0
      %597 = vmatpush.msra.mxu0 0.0
      %598 = vmatpush.msra.mxu0 0.0
      %599 = vmatpush.msra.mxu0 0.0
      %600 = vmatpush.msra.mxu0 0.0
      %601 = vmatpush.msra.mxu0 0.0
      %602 = vmatpush.msra.mxu0 0.0
      %603 = vmatpush.msra.mxu0 0.0
      %604 = vmatpush.msra.mxu0 0.0
      %605 = vmatpush.msra.mxu0 0.0
      %606 = vmatpush.msra.mxu0 %v549
      %607 = vmatmul.f32.gmra.mxu0 %v543
      %v608 = vpop.f32.mrf.mxu0
      %v609 = vadd.f32 0.0, %v608
      %610 = vdwg.mxu0
      %v611 = vadd.f32 %v479, %v569
      %v612 = vadd.f32 %v499, %v589
      %v613 = vadd.f32 %v519, %v609
      %v614 = vld [vmem:[#allocation2] sm:$0xff]
      %v615 = vld [vmem:[#allocation2 + $0x8] sm:$0xf]
      %s616 = scalar_lea.vmem %s4, 12
      %v617 = vld [vmem:[%s616] sm:$0xf]
      %620 = vst [vmem:[#allocation1] ss:$2 sm:$0xff] %v614
      %s621 = scalar_lea.vmem [#allocation1], 16
      %622 = vst [vmem:[%s621] ss:$2 sm:$0xff] %v615
      %v623 = vld.sshfl [vmem:[#allocation1] sm:$0xff pattern:$0x75316420]
      %v624 = vld.sshfl [vmem:[#allocation1 + $0x8] sm:$0xff pattern:$0x75316420]
      %v625 = vld.sshfl [vmem:[#allocation1 + $0x10] sm:$0xff pattern:$0x75316420]
      %626 = vrot.lane.b32.xlu0 %v623, 110
      %v627 = vpop.permute.xlu0 %626
      %628 = vrot.lane.b32.xlu0 %v624, 110
      %v629 = vpop.permute.xlu0 %628
      %630 = vrot.lane.b32.xlu0 %v625, 110
      %v631 = vpop.permute.xlu0 %630
      %vm632 = vcmask 900096
      %v633 = vsel %vm632, %v627, %v629
      %v634 = vsel %vm632, %v629, %v631
      %v636 = vsel %vm376, %v617, 0
      %v638 = vsel %vm327, %v633, 0
      %v640 = vsel %vm327, %v634, 0
      %v642 = vsel %vm327, %v631, 0
      %644 = vmatpush.msra.mxu0 0.0
      %645 = vmatpush.msra.mxu0 0.0
      %646 = vmatpush.msra.mxu0 0.0
      %647 = vmatpush.msra.mxu0 0.0
      %648 = vmatpush.msra.mxu0 0.0
      %649 = vmatpush.msra.mxu0 0.0
      %650 = vmatpush.msra.mxu0 0.0
      %651 = vmatpush.msra.mxu0 0.0
      %652 = vmatpush.msra.mxu0 0.0
      %653 = vmatpush.msra.mxu0 0.0
      %654 = vmatpush.msra.mxu0 0.0
      %655 = vmatpush.msra.mxu0 0.0
      %656 = vmatpush.msra.mxu0 0.0
      %657 = vmatpush.msra.mxu0 0.0
      %658 = vmatpush.msra.mxu0 0.0
      %659 = vmatpush.msra.mxu0 %v638
      %660 = vmatmul.f32.gmra.mxu0 %v636
      %v661 = vpop.f32.mrf.mxu0
      %v662 = vadd.f32 0.0, %v661
      %663 = vdwg.mxu0
      %664 = vmatpush.msra.mxu0 0.0
      %665 = vmatpush.msra.mxu0 0.0
      %666 = vmatpush.msra.mxu0 0.0
      %667 = vmatpush.msra.mxu0 0.0
      %668 = vmatpush.msra.mxu0 0.0
      %669 = vmatpush.msra.mxu0 0.0
      %670 = vmatpush.msra.mxu0 0.0
      %671 = vmatpush.msra.mxu0 0.0
      %672 = vmatpush.msra.mxu0 0.0
      %673 = vmatpush.msra.mxu0 0.0
      %674 = vmatpush.msra.mxu0 0.0
      %675 = vmatpush.msra.mxu0 0.0
      %676 = vmatpush.msra.mxu0 0.0
      %677 = vmatpush.msra.mxu0 0.0
      %678 = vmatpush.msra.mxu0 0.0
      %679 = vmatpush.msra.mxu0 %v640
      %680 = vmatmul.f32.gmra.mxu0 %v636
      %v681 = vpop.f32.mrf.mxu0
      %v682 = vadd.f32 0.0, %v681
      %683 = vdwg.mxu0
      %684 = vmatpush.msra.mxu0 0.0
      %685 = vmatpush.msra.mxu0 0.0
      %686 = vmatpush.msra.mxu0 0.0
      %687 = vmatpush.msra.mxu0 0.0
      %688 = vmatpush.msra.mxu0 0.0
      %689 = vmatpush.msra.mxu0 0.0
      %690 = vmatpush.msra.mxu0 0.0
      %691 = vmatpush.msra.mxu0 0.0
      %692 = vmatpush.msra.mxu0 0.0
      %693 = vmatpush.msra.mxu0 0.0
      %694 = vmatpush.msra.mxu0 0.0
      %695 = vmatpush.msra.mxu0 0.0
      %696 = vmatpush.msra.mxu0 0.0
      %697 = vmatpush.msra.mxu0 0.0
      %698 = vmatpush.msra.mxu0 0.0
      %699 = vmatpush.msra.mxu0 %v642
      %700 = vmatmul.f32.gmra.mxu0 %v636
      %v701 = vpop.f32.mrf.mxu0
      %v702 = vadd.f32 0.0, %v701
      %703 = vdwg.mxu0
      %v704 = vadd.f32 %v611, %v662
      %v705 = vadd.f32 %v612, %v682
      %v706 = vadd.f32 %v613, %v702
      %v707 = vld [vmem:[#allocation2] sm:$0xff]
      %v708 = vld [vmem:[#allocation2 + $0x8] sm:$0xf]
      %s709 = scalar_lea.vmem %s4, 16
      %v710 = vld [vmem:[%s709] sm:$0xf]
      %713 = vst [vmem:[#allocation1] ss:$2 sm:$0xff] %v707
      %s714 = scalar_lea.vmem [#allocation1], 16
      %715 = vst [vmem:[%s714] ss:$2 sm:$0xff] %v708
      %v716 = vld.sshfl [vmem:[#allocation1] sm:$0xff pattern:$0x75316420]
      %v717 = vld.sshfl [vmem:[#allocation1 + $0x8] sm:$0xff pattern:$0x75316420]
      %v718 = vld.sshfl [vmem:[#allocation1 + $0x10] sm:$0xff pattern:$0x75316420]
      %719 = vrot.lane.b32.xlu0 %v716, 109
      %v720 = vpop.permute.xlu0 %719
      %721 = vrot.lane.b32.xlu0 %v717, 109
      %v722 = vpop.permute.xlu0 %721
      %723 = vrot.lane.b32.xlu0 %v718, 109
      %v724 = vpop.permute.xlu0 %723
      %vm725 = vcmask 891904
      %v726 = vsel %vm725, %v720, %v722
      %v727 = vsel %vm725, %v722, %v724
      %v729 = vsel %vm376, %v710, 0
      %v731 = vsel %vm327, %v726, 0
      %v733 = vsel %vm327, %v727, 0
      %v735 = vsel %vm327, %v724, 0
      %737 = vmatpush.msra.mxu0 0.0
      %738 = vmatpush.msra.mxu0 0.0
      %739 = vmatpush.msra.mxu0 0.0
      %740 = vmatpush.msra.mxu0 0.0
      %741 = vmatpush.msra.mxu0 0.0
      %742 = vmatpush.msra.mxu0 0.0
      %743 = vmatpush.msra.mxu0 0.0
      %744 = vmatpush.msra.mxu0 0.0
      %745 = vmatpush.msra.mxu0 0.0
      %746 = vmatpush.msra.mxu0 0.0
      %747 = vmatpush.msra.mxu0 0.0
      %748 = vmatpush.msra.mxu0 0.0
      %749 = vmatpush.msra.mxu0 0.0
      %750 = vmatpush.msra.mxu0 0.0
      %751 = vmatpush.msra.mxu0 0.0
      %752 = vmatpush.msra.mxu0 %v731
      %753 = vmatmul.f32.gmra.mxu0 %v729
      %v754 = vpop.f32.mrf.mxu0
      %v755 = vadd.f32 0.0, %v754
      %756 = vdwg.mxu0
      %757 = vmatpush.msra.mxu0 0.0
      %758 = vmatpush.msra.mxu0 0.0
      %759 = vmatpush.msra.mxu0 0.0
      %760 = vmatpush.msra.mxu0 0.0
      %761 = vmatpush.msra.mxu0 0.0
      %762 = vmatpush.msra.mxu0 0.0
      %763 = vmatpush.msra.mxu0 0.0
      %764 = vmatpush.msra.mxu0 0.0
      %765 = vmatpush.msra.mxu0 0.0
      %766 = vmatpush.msra.mxu0 0.0
      %767 = vmatpush.msra.mxu0 0.0
      %768 = vmatpush.msra.mxu0 0.0
      %769 = vmatpush.msra.mxu0 0.0
      %770 = vmatpush.msra.mxu0 0.0
      %771 = vmatpush.msra.mxu0 0.0
      %772 = vmatpush.msra.mxu0 %v733
      %773 = vmatmul.f32.gmra.mxu0 %v729
      %v774 = vpop.f32.mrf.mxu0
      %v775 = vadd.f32 0.0, %v774
      %776 = vdwg.mxu0
      %777 = vmatpush.msra.mxu0 0.0
      %778 = vmatpush.msra.mxu0 0.0
      %779 = vmatpush.msra.mxu0 0.0
      %780 = vmatpush.msra.mxu0 0.0
      %781 = vmatpush.msra.mxu0 0.0
      %782 = vmatpush.msra.mxu0 0.0
      %783 = vmatpush.msra.mxu0 0.0
      %784 = vmatpush.msra.mxu0 0.0
      %785 = vmatpush.msra.mxu0 0.0
      %786 = vmatpush.msra.mxu0 0.0
      %787 = vmatpush.msra.mxu0 0.0
      %788 = vmatpush.msra.mxu0 0.0
      %789 = vmatpush.msra.mxu0 0.0
      %790 = vmatpush.msra.mxu0 0.0
      %791 = vmatpush.msra.mxu0 0.0
      %792 = vmatpush.msra.mxu0 %v735
      %793 = vmatmul.f32.gmra.mxu0 %v729
      %v794 = vpop.f32.mrf.mxu0
      %v795 = vadd.f32 0.0, %v794
      %796 = vdwg.mxu0
      %v797 = vadd.f32 %v704, %v755
      %v798 = vadd.f32 %v705, %v775
      %v799 = vadd.f32 %v706, %v795
      %v800 = vld [vmem:[#allocation2] sm:$0xff]
      %v801 = vld [vmem:[#allocation2 + $0x8] sm:$0xf]
      %s802 = scalar_lea.vmem %s4, 20
      %v803 = vld [vmem:[%s802] sm:$0xf]
      %806 = vst [vmem:[#allocation1] ss:$2 sm:$0xff] %v800
      %s807 = scalar_lea.vmem [#allocation1], 16
      %808 = vst [vmem:[%s807] ss:$2 sm:$0xff] %v801
      %v809 = vld.sshfl [vmem:[#allocation1] sm:$0xff pattern:$0x75316420]
      %v810 = vld.sshfl [vmem:[#allocation1 + $0x8] sm:$0xff pattern:$0x75316420]
      %v811 = vld.sshfl [vmem:[#allocation1 + $0x10] sm:$0xff pattern:$0x75316420]
      %812 = vrot.lane.b32.xlu0 %v809, 108
      %v813 = vpop.permute.xlu0 %812
      %814 = vrot.lane.b32.xlu0 %v810, 108
      %v815 = vpop.permute.xlu0 %814
      %816 = vrot.lane.b32.xlu0 %v811, 108
      %v817 = vpop.permute.xlu0 %816
      %vm818 = vcmask 883712
      %v819 = vsel %vm818, %v813, %v815
      %v820 = vsel %vm818, %v815, %v817
      %v822 = vsel %vm376, %v803, 0
      %v824 = vsel %vm327, %v819, 0
      %v826 = vsel %vm327, %v820, 0
      %v828 = vsel %vm327, %v817, 0
      %830 = vmatpush.msra.mxu0 0.0
      %831 = vmatpush.msra.mxu0 0.0
      %832 = vmatpush.msra.mxu0 0.0
      %833 = vmatpush.msra.mxu0 0.0
      %834 = vmatpush.msra.mxu0 0.0
      %835 = vmatpush.msra.mxu0 0.0
      %836 = vmatpush.msra.mxu0 0.0
      %837 = vmatpush.msra.mxu0 0.0
      %838 = vmatpush.msra.mxu0 0.0
      %839 = vmatpush.msra.mxu0 0.0
      %840 = vmatpush.msra.mxu0 0.0
      %841 = vmatpush.msra.mxu0 0.0
      %842 = vmatpush.msra.mxu0 0.0
      %843 = vmatpush.msra.mxu0 0.0
      %844 = vmatpush.msra.mxu0 0.0
      %845 = vmatpush.msra.mxu0 %v824
      %846 = vmatmul.f32.gmra.mxu0 %v822
      %v847 = vpop.f32.mrf.mxu0
      %v848 = vadd.f32 0.0, %v847
      %849 = vdwg.mxu0
      %850 = vmatpush.msra.mxu0 0.0
      %851 = vmatpush.msra.mxu0 0.0
      %852 = vmatpush.msra.mxu0 0.0
      %853 = vmatpush.msra.mxu0 0.0
      %854 = vmatpush.msra.mxu0 0.0
      %855 = vmatpush.msra.mxu0 0.0
      %856 = vmatpush.msra.mxu0 0.0
      %857 = vmatpush.msra.mxu0 0.0
      %858 = vmatpush.msra.mxu0 0.0
      %859 = vmatpush.msra.mxu0 0.0
      %860 = vmatpush.msra.mxu0 0.0
      %861 = vmatpush.msra.mxu0 0.0
      %862 = vmatpush.msra.mxu0 0.0
      %863 = vmatpush.msra.mxu0 0.0
      %864 = vmatpush.msra.mxu0 0.0
      %865 = vmatpush.msra.mxu0 %v826
      %866 = vmatmul.f32.gmra.mxu0 %v822
      %v867 = vpop.f32.mrf.mxu0
      %v868 = vadd.f32 0.0, %v867
      %869 = vdwg.mxu0
      %870 = vmatpush.msra.mxu0 0.0
      %871 = vmatpush.msra.mxu0 0.0
      %872 = vmatpush.msra.mxu0 0.0
      %873 = vmatpush.msra.mxu0 0.0
      %874 = vmatpush.msra.mxu0 0.0
      %875 = vmatpush.msra.mxu0 0.0
      %876 = vmatpush.msra.mxu0 0.0
      %877 = vmatpush.msra.mxu0 0.0
      %878 = vmatpush.msra.mxu0 0.0
      %879 = vmatpush.msra.mxu0 0.0
      %880 = vmatpush.msra.mxu0 0.0
      %881 = vmatpush.msra.mxu0 0.0
      %882 = vmatpush.msra.mxu0 0.0
      %883 = vmatpush.msra.mxu0 0.0
      %884 = vmatpush.msra.mxu0 0.0
      %885 = vmatpush.msra.mxu0 %v828
      %886 = vmatmul.f32.gmra.mxu0 %v822
      %v887 = vpop.f32.mrf.mxu0
      %v888 = vadd.f32 0.0, %v887
      %889 = vdwg.mxu0
      %v890 = vadd.f32 %v797, %v848
      %v891 = vadd.f32 %v798, %v868
      %v892 = vadd.f32 %v799, %v888
      %v893 = vld [vmem:[#allocation2] sm:$0xff]
      %v894 = vld [vmem:[#allocation2 + $0x8] sm:$0xf]
      %s895 = scalar_lea.vmem %s4, 24
      %v896 = vld [vmem:[%s895] sm:$0xf]
      %899 = vst [vmem:[#allocation1] ss:$2 sm:$0xff] %v893
      %s900 = scalar_lea.vmem [#allocation1], 16
      %901 = vst [vmem:[%s900] ss:$2 sm:$0xff] %v894
      %v902 = vld.sshfl [vmem:[#allocation1] sm:$0xff pattern:$0x75316420]
      %v903 = vld.sshfl [vmem:[#allocation1 + $0x8] sm:$0xff pattern:$0x75316420]
      %v904 = vld.sshfl [vmem:[#allocation1 + $0x10] sm:$0xff pattern:$0x75316420]
      %905 = vrot.lane.b32.xlu0 %v902, 92
      %v906 = vpop.permute.xlu0 %905
      %907 = vrot.lane.b32.xlu0 %v903, 92
      %v908 = vpop.permute.xlu0 %907
      %909 = vrot.lane.b32.xlu0 %v904, 92
      %v910 = vpop.permute.xlu0 %909
      %vm911 = vcmask 752640
      %v912 = vsel %vm911, %v906, %v908
      %v913 = vsel %vm911, %v908, %v910
      %v915 = vsel %vm376, %v896, 0
      %v917 = vsel %vm327, %v912, 0
      %v919 = vsel %vm327, %v913, 0
      %v921 = vsel %vm327, %v910, 0
      %923 = vmatpush.msra.mxu0 0.0
      %924 = vmatpush.msra.mxu0 0.0
      %925 = vmatpush.msra.mxu0 0.0
      %926 = vmatpush.msra.mxu0 0.0
      %927 = vmatpush.msra.mxu0 0.0
      %928 = vmatpush.msra.mxu0 0.0
      %929 = vmatpush.msra.mxu0 0.0
      %930 = vmatpush.msra.mxu0 0.0
      %931 = vmatpush.msra.mxu0 0.0
      %932 = vmatpush.msra.mxu0 0.0
      %933 = vmatpush.msra.mxu0 0.0
      %934 = vmatpush.msra.mxu0 0.0
      %935 = vmatpush.msra.mxu0 0.0
      %936 = vmatpush.msra.mxu0 0.0
      %937 = vmatpush.msra.mxu0 0.0
      %938 = vmatpush.msra.mxu0 %v917
      %939 = vmatmul.f32.gmra.mxu0 %v915
      %v940 = vpop.f32.mrf.mxu0
      %v941 = vadd.f32 0.0, %v940
      %942 = vdwg.mxu0
      %943 = vmatpush.msra.mxu0 0.0
      %944 = vmatpush.msra.mxu0 0.0
      %945 = vmatpush.msra.mxu0 0.0
      %946 = vmatpush.msra.mxu0 0.0
      %947 = vmatpush.msra.mxu0 0.0
      %948 = vmatpush.msra.mxu0 0.0
      %949 = vmatpush.msra.mxu0 0.0
      %950 = vmatpush.msra.mxu0 0.0
      %951 = vmatpush.msra.mxu0 0.0
      %952 = vmatpush.msra.mxu0 0.0
      %953 = vmatpush.msra.mxu0 0.0
      %954 = vmatpush.msra.mxu0 0.0
      %955 = vmatpush.msra.mxu0 0.0
      %956 = vmatpush.msra.mxu0 0.0
      %957 = vmatpush.msra.mxu0 0.0
      %958 = vmatpush.msra.mxu0 %v919
      %959 = vmatmul.f32.gmra.mxu0 %v915
      %v960 = vpop.f32.mrf.mxu0
      %v961 = vadd.f32 0.0, %v960
      %962 = vdwg.mxu0
      %963 = vmatpush.msra.mxu0 0.0
      %964 = vmatpush.msra.mxu0 0.0
      %965 = vmatpush.msra.mxu0 0.0
      %966 = vmatpush.msra.mxu0 0.0
      %967 = vmatpush.msra.mxu0 0.0
      %968 = vmatpush.msra.mxu0 0.0
      %969 = vmatpush.msra.mxu0 0.0
      %970 = vmatpush.msra.mxu0 0.0
      %971 = vmatpush.msra.mxu0 0.0
      %972 = vmatpush.msra.mxu0 0.0
      %973 = vmatpush.msra.mxu0 0.0
      %974 = vmatpush.msra.mxu0 0.0
      %975 = vmatpush.msra.mxu0 0.0
      %976 = vmatpush.msra.mxu0 0.0
      %977 = vmatpush.msra.mxu0 0.0
      %978 = vmatpush.msra.mxu0 %v921
      %979 = vmatmul.f32.gmra.mxu0 %v915
      %v980 = vpop.f32.mrf.mxu0
      %v981 = vadd.f32 0.0, %v980
      %982 = vdwg.mxu0
      %v983 = vadd.f32 %v890, %v941
      %v984 = vadd.f32 %v891, %v961
      %v985 = vadd.f32 %v892, %v981
      %v986 = vld [vmem:[#allocation2] sm:$0xff]
      %v987 = vld [vmem:[#allocation2 + $0x8] sm:$0xf]
      %s988 = scalar_lea.vmem %s4, 28
      %v989 = vld [vmem:[%s988] sm:$0xf]
      %992 = vst [vmem:[#allocation1] ss:$2 sm:$0xff] %v986
      %s993 = scalar_lea.vmem [#allocation1], 16
      %994 = vst [vmem:[%s993] ss:$2 sm:$0xff] %v987
      %v995 = vld.sshfl [vmem:[#allocation1] sm:$0xff pattern:$0x75316420]
      %v996 = vld.sshfl [vmem:[#allocation1 + $0x8] sm:$0xff pattern:$0x75316420]
      %v997 = vld.sshfl [vmem:[#allocation1 + $0x10] sm:$0xff pattern:$0x75316420]
      %998 = vrot.lane.b32.xlu0 %v995, 91
      %v999 = vpop.permute.xlu0 %998
      %1000 = vrot.lane.b32.xlu0 %v996, 91
      %v1001 = vpop.permute.xlu0 %1000
      %1002 = vrot.lane.b32.xlu0 %v997, 91
      %v1003 = vpop.permute.xlu0 %1002
      %vm1004 = vcmask 744448
      %v1005 = vsel %vm1004, %v999, %v1001
      %v1006 = vsel %vm1004, %v1001, %v1003
      %v1008 = vsel %vm376, %v989, 0
      %v1010 = vsel %vm327, %v1005, 0
      %v1012 = vsel %vm327, %v1006, 0
      %v1014 = vsel %vm327, %v1003, 0
      %1016 = vmatpush.msra.mxu0 0.0
      %1017 = vmatpush.msra.mxu0 0.0
      %1018 = vmatpush.msra.mxu0 0.0
      %1019 = vmatpush.msra.mxu0 0.0
      %1020 = vmatpush.msra.mxu0 0.0
      %1021 = vmatpush.msra.mxu0 0.0
      %1022 = vmatpush.msra.mxu0 0.0
      %1023 = vmatpush.msra.mxu0 0.0
      %1024 = vmatpush.msra.mxu0 0.0
      %1025 = vmatpush.msra.mxu0 0.0
      %1026 = vmatpush.msra.mxu0 0.0
      %1027 = vmatpush.msra.mxu0 0.0
      %1028 = vmatpush.msra.mxu0 0.0
      %1029 = vmatpush.msra.mxu0 0.0
      %1030 = vmatpush.msra.mxu0 0.0
      %1031 = vmatpush.msra.mxu0 %v1010
      %1032 = vmatmul.f32.gmra.mxu0 %v1008
      %v1033 = vpop.f32.mrf.mxu0
      %v1034 = vadd.f32 0.0, %v1033
      %1035 = vdwg.mxu0
      %1036 = vmatpush.msra.mxu0 0.0
      %1037 = vmatpush.msra.mxu0 0.0
      %1038 = vmatpush.msra.mxu0 0.0
      %1039 = vmatpush.msra.mxu0 0.0
      %1040 = vmatpush.msra.mxu0 0.0
      %1041 = vmatpush.msra.mxu0 0.0
      %1042 = vmatpush.msra.mxu0 0.0
      %1043 = vmatpush.msra.mxu0 0.0
      %1044 = vmatpush.msra.mxu0 0.0
      %1045 = vmatpush.msra.mxu0 0.0
      %1046 = vmatpush.msra.mxu0 0.0
      %1047 = vmatpush.msra.mxu0 0.0
      %1048 = vmatpush.msra.mxu0 0.0
      %1049 = vmatpush.msra.mxu0 0.0
      %1050 = vmatpush.msra.mxu0 0.0
      %1051 = vmatpush.msra.mxu0 %v1012
      %1052 = vmatmul.f32.gmra.mxu0 %v1008
      %v1053 = vpop.f32.mrf.mxu0
      %v1054 = vadd.f32 0.0, %v1053
      %1055 = vdwg.mxu0
      %1056 = vmatpush.msra.mxu0 0.0
      %1057 = vmatpush.msra.mxu0 0.0
      %1058 = vmatpush.msra.mxu0 0.0
      %1059 = vmatpush.msra.mxu0 0.0
      %1060 = vmatpush.msra.mxu0 0.0
      %1061 = vmatpush.msra.mxu0 0.0
      %1062 = vmatpush.msra.mxu0 0.0
      %1063 = vmatpush.msra.mxu0 0.0
      %1064 = vmatpush.msra.mxu0 0.0
      %1065 = vmatpush.msra.mxu0 0.0
      %1066 = vmatpush.msra.mxu0 0.0
      %1067 = vmatpush.msra.mxu0 0.0
      %1068 = vmatpush.msra.mxu0 0.0
      %1069 = vmatpush.msra.mxu0 0.0
      %1070 = vmatpush.msra.mxu0 0.0
      %1071 = vmatpush.msra.mxu0 %v1014
      %1072 = vmatmul.f32.gmra.mxu0 %v1008
      %v1073 = vpop.f32.mrf.mxu0
      %v1074 = vadd.f32 0.0, %v1073
      %1075 = vdwg.mxu0
      %v1076 = vadd.f32 %v983, %v1034
      %v1077 = vadd.f32 %v984, %v1054
      %v1078 = vadd.f32 %v985, %v1074
      %v1079 = vld [vmem:[#allocation2] sm:$0xff]
      %v1080 = vld [vmem:[#allocation2 + $0x8] sm:$0xf]
      %s1081 = scalar_lea.vmem %s4, 32
      %v1082 = vld [vmem:[%s1081] sm:$0xf]
      %1085 = vst [vmem:[#allocation1] ss:$2 sm:$0xff] %v1079
      %s1086 = scalar_lea.vmem [#allocation1], 16
      %1087 = vst [vmem:[%s1086] ss:$2 sm:$0xff] %v1080
      %v1088 = vld.sshfl [vmem:[#allocation1] sm:$0xff pattern:$0x75316420]
      %v1089 = vld.sshfl [vmem:[#allocation1 + $0x8] sm:$0xff pattern:$0x75316420]
      %v1090 = vld.sshfl [vmem:[#allocation1 + $0x10] sm:$0xff pattern:$0x75316420]
      %1091 = vrot.lane.b32.xlu0 %v1088, 90
      %v1092 = vpop.permute.xlu0 %1091
      %1093 = vrot.lane.b32.xlu0 %v1089, 90
      %v1094 = vpop.permute.xlu0 %1093
      %1095 = vrot.lane.b32.xlu0 %v1090, 90
      %v1096 = vpop.permute.xlu0 %1095
      %vm1097 = vcmask 736256
      %v1098 = vsel %vm1097, %v1092, %v1094
      %v1099 = vsel %vm1097, %v1094, %v1096
      %v1101 = vsel %vm376, %v1082, 0
      %v1103 = vsel %vm327, %v1098, 0
      %v1105 = vsel %vm327, %v1099, 0
      %v1107 = vsel %vm327, %v1096, 0
      %1109 = vmatpush.msra.mxu0 0.0
      %1110 = vmatpush.msra.mxu0 0.0
      %1111 = vmatpush.msra.mxu0 0.0
      %1112 = vmatpush.msra.mxu0 0.0
      %1113 = vmatpush.msra.mxu0 0.0
      %1114 = vmatpush.msra.mxu0 0.0
      %1115 = vmatpush.msra.mxu0 0.0
      %1116 = vmatpush.msra.mxu0 0.0
      %1117 = vmatpush.msra.mxu0 0.0
      %1118 = vmatpush.msra.mxu0 0.0
      %1119 = vmatpush.msra.mxu0 0.0
      %1120 = vmatpush.msra.mxu0 0.0
      %1121 = vmatpush.msra.mxu0 0.0
      %1122 = vmatpush.msra.mxu0 0.0
      %1123 = vmatpush.msra.mxu0 0.0
      %1124 = vmatpush.msra.mxu0 %v1103
      %1125 = vmatmul.f32.gmra.mxu0 %v1101
      %v1126 = vpop.f32.mrf.mxu0
      %v1127 = vadd.f32 0.0, %v1126
      %1128 = vdwg.mxu0
      %1129 = vmatpush.msra.mxu0 0.0
      %1130 = vmatpush.msra.mxu0 0.0
      %1131 = vmatpush.msra.mxu0 0.0
      %1132 = vmatpush.msra.mxu0 0.0
      %1133 = vmatpush.msra.mxu0 0.0
      %1134 = vmatpush.msra.mxu0 0.0
      %1135 = vmatpush.msra.mxu0 0.0
      %1136 = vmatpush.msra.mxu0 0.0
      %1137 = vmatpush.msra.mxu0 0.0
      %1138 = vmatpush.msra.mxu0 0.0
      %1139 = vmatpush.msra.mxu0 0.0
      %1140 = vmatpush.msra.mxu0 0.0
      %1141 = vmatpush.msra.mxu0 0.0
      %1142 = vmatpush.msra.mxu0 0.0
      %1143 = vmatpush.msra.mxu0 0.0
      %1144 = vmatpush.msra.mxu0 %v1105
      %1145 = vmatmul.f32.gmra.mxu0 %v1101
      %v1146 = vpop.f32.mrf.mxu0
      %v1147 = vadd.f32 0.0, %v1146
      %1148 = vdwg.mxu0
      %1149 = vmatpush.msra.mxu0 0.0
      %1150 = vmatpush.msra.mxu0 0.0
      %1151 = vmatpush.msra.mxu0 0.0
      %1152 = vmatpush.msra.mxu0 0.0
      %1153 = vmatpush.msra.mxu0 0.0
      %1154 = vmatpush.msra.mxu0 0.0
      %1155 = vmatpush.msra.mxu0 0.0
      %1156 = vmatpush.msra.mxu0 0.0
      %1157 = vmatpush.msra.mxu0 0.0
      %1158 = vmatpush.msra.mxu0 0.0
      %1159 = vmatpush.msra.mxu0 0.0
      %1160 = vmatpush.msra.mxu0 0.0
      %1161 = vmatpush.msra.mxu0 0.0
      %1162 = vmatpush.msra.mxu0 0.0
      %1163 = vmatpush.msra.mxu0 0.0
      %1164 = vmatpush.msra.mxu0 %v1107
      %1165 = vmatmul.f32.gmra.mxu0 %v1101
      %v1166 = vpop.f32.mrf.mxu0
      %v1167 = vadd.f32 0.0, %v1166
      %1168 = vdwg.mxu0
      %v1169 = vadd.f32 %v1076, %v1127
      %v1170 = vadd.f32 %v1077, %v1147
      %v1171 = vadd.f32 %v1078, %v1167
      %v1172 = vld [vmem:[%s5] sm:$0xf]
      %1174 = vset.pattern.permute.xlu0 0
      %1175 = vperm.xlu0 %1174, %v1172
      %v1176 = vpop.permute.xlu0 %1175
      %v1178 = vadd.f32 %v1169, %v1176
      %v1179 = vadd.f32 %v1170, %v1176
      %v1180 = vadd.f32 %v1171, %v1176
      %v1183 = vrot.slane %v1179, 4
      %v1184 = vsel %vm327, %v1178, %v1183
      %1186 = vst [vmem:[%s285] sm:$0xff] %v1184
      %vm1187 = vcmask 240640
      %1188 = vst.msk [vmem:[%s285 + $0x8] sm:$0xf] %vm1187, %v1180
      %v1189 = vmul.f32 %v1178, %v320
      %v1190 = vmul.f32 %v1179, %v321
      %v1191 = vmul.f32 %v1180, %v322
      %v1192 = vsel %vm327, %v1189, 0.0
      %v1193 = vsel %vm327, %v1190, 0.0
      %v1194 = vadd.f32 %v1192, %v1193
      %v1195 = vsel %vm1187, %v1191, 0.0
      %v1196 = vadd.f32 %v1194, %v1195
      %1197 = vadd.xlane.f32.xlu0 %v1196
      %v1198 = vpop.xlane.xlu0 %1197
      %vm1199 = vcmask 3072
      %1200 = vst.msk [vmem:[%s289] sm:$0xf] %vm1199, %v1198
      %v1201 = vmul.f32 %v1189, %v1178
      %v1202 = vmul.f32 %v1190, %v1179
      %v1203 = vmul.f32 %v1191, %v1180
      %v1204 = vsel %vm327, %v1201, 0.0
      %v1205 = vsel %vm327, %v1202, 0.0
      %v1206 = vadd.f32 %v1204, %v1205
      %v1207 = vsel %vm1187, %v1203, 0.0
      %v1208 = vadd.f32 %v1206, %v1207
      %1209 = vadd.xlane.f32.xlu0 %v1208
      %v1210 = vpop.xlane.xlu0 %1209
      %vm1211 = vcmask 11272
      %1212 = vst.msk [vmem:[%s289] sm:$0xf] %vm1211, %v1210
      %p1213 = scmp.lt.s32.totalorder %s19, 1
      %s1214 = scalar_select %p1213, %s19, 1
      %s1215 = smul.addr %s1214, 3
      %s1216 = smul.addr %s1215, 4
      %s1217 = scalar_lea.vmem %s6, %s1216
      %p1218 = scmp.lt.s32.totalorder %s19, 1
      %s1219 = scalar_select %p1218, %s19, 1
      %s1220 = smul.addr %s1219, 4
      %s1221 = scalar_lea.vmem %s7, %s1220
      // Predicated region
      $region45: #{residual_block_pallas.4} parent=43 // pred_check
        %p1222 = pneg %p168
      $region46: #{residual_block_pallas.4} parent=43 // pred_check_branch
        %1224 = sbr.rel (%p1222) target = $region48
      $region47: #{residual_block_pallas.4} parent=43 // pred_region
        _
      $region48: #{residual_block_pallas.4} parent=43 // pred_fallthru
        _
      // Predicated region
      $region49: #{residual_block_pallas.4} parent=43 // pred_check
        %p1225 = pneg %p194
      $region50: #{residual_block_pallas.4} parent=43 // pred_check_branch
        %1227 = sbr.rel (%p1225) target = $region52
      $region51: #{residual_block_pallas.4} parent=43 // pred_region
        _
      $region52: #{residual_block_pallas.4} parent=43 // pred_fallthru
        _
    $region44: #{residual_block_pallas.4} parent=5 // pred_fallthru
      _
    %p1228 = scmp.le.s32.totalorder 2, %s14
    // Predicated region
    $region53: #{residual_block_pallas.4} parent=5 // pred_check
      %p1229 = pneg %p1228
    $region54: #{residual_block_pallas.4} parent=5 // pred_check_branch
      %1231 = sbr.rel (%p1229) target = $region56
    $region55: #{residual_block_pallas.4} parent=5 // pred_region
      %s1232 = ssub.s32 %s14, 2
      // Predicated region
      $region57: #{residual_block_pallas.4} parent=55 // pred_check
        %p1233 = pneg %p174
      $region58: #{residual_block_pallas.4} parent=55 // pred_check_branch
        %1235 = sbr.rel (%p1233) target = $region60
      $region59: #{residual_block_pallas.4} parent=55 // pred_region
        %p1236 = scmp.lt.s32.totalorder %s20, 1
        %s1237 = scalar_select %p1236, %s20, 1
        %s1238 = smul.addr %s1237, 3
        %s1239 = smul.addr %s1238, 4
        %s1240 = scalar_lea.vmem %s6, %s1239
      $region60: #{residual_block_pallas.4} parent=55 // pred_fallthru
        _
      // Predicated region
      $region61: #{residual_block_pallas.4} parent=55 // pred_check
        %p1241 = pneg %p200
      $region62: #{residual_block_pallas.4} parent=55 // pred_check_branch
        %1243 = sbr.rel (%p1241) target = $region64
      $region63: #{residual_block_pallas.4} parent=55 // pred_region
        %p1244 = scmp.lt.s32.totalorder %s20, 1
        %s1245 = scalar_select %p1244, %s20, 1
        %s1246 = smul.addr %s1245, 4
        %s1247 = scalar_lea.vmem %s7, %s1246
      $region64: #{residual_block_pallas.4} parent=55 // pred_fallthru
        _
    $region56: #{residual_block_pallas.4} parent=5 // pred_fallthru
      _
  $region6: #{residual_block_pallas.4} parent=0 // loop_footer
    %s18 = sadd.s32 1, %s14
  $region7: #{residual_block_pallas.4} parent=0 // loop_footer_branch
    %13 = sbr.rel target = $region3
  $region8: #{residual_block_pallas.4} parent=0 // loop_exit
    _

</llo_original>
